<compile_context>
chip_gen: v5e
topology: v5e:2x2
jax: 0.10.0
libtpu: 0.0.40
codegen_flags: <defaults>
</compile_context>

<pallas_src>
import functools

import jax
import jax.numpy as jnp
from jax.experimental import pallas as pl
from jax.experimental.pallas import tpu as pltpu


CPAD = 128  # internal (lane-dense) channel padding


# -----------------------------------------------------------------------------
# Glue: pad + strided patch extraction (pure data movement, stays in JAX).
# -----------------------------------------------------------------------------
def _pad_spatial(x, pad, fill):
    """Pad H/W by `pad`. fill: None -> 0, scalar, or per-channel (C,) array."""
    if pad == 0:
        return x
    B, H, W, C = x.shape
    if fill is None:
        return jnp.pad(x, ((0, 0), (pad, pad), (pad, pad), (0, 0)))
    fill = jnp.asarray(fill, x.dtype)
    if fill.ndim == 0:
        return jnp.pad(x, ((0, 0), (pad, pad), (pad, pad), (0, 0)),
                       constant_values=fill)
    base = jnp.broadcast_to(fill.reshape(1, 1, 1, C),
                            (B, H + 2 * pad, W + 2 * pad, C)).astype(x.dtype)
    return jax.lax.dynamic_update_slice(base, x, (0, pad, pad, 0))


def _shifted_views(x, kh, kw, stride, pad, fill):
    B, H, W, C = x.shape
    xp = _pad_spatial(x, pad, fill)
    Hp, Wp = H + 2 * pad, W + 2 * pad
    Ho = (Hp - kh) // stride + 1
    Wo = (Wp - kw) // stride + 1
    views = []
    for i in range(kh):
        for j in range(kw):
            sl = jax.lax.slice(
                xp,
                (0, i, j, 0),
                (B, i + (Ho - 1) * stride + 1, j + (Wo - 1) * stride + 1, C),
                (1, stride, stride, 1))
            views.append(sl.reshape(B, Ho * Wo, C))
    return views, Ho, Wo


def extract_patches_matmul(x, kh, kw, stride, pad, fill=None):
    """-> (B, Ho*Wo, KH*KW*C): K folded into the matmul contraction dim."""
    views, Ho, Wo = _shifted_views(x, kh, kw, stride, pad, fill)
    return jnp.concatenate(views, axis=-1), Ho, Wo


def extract_patches_stacked(x, kh, kw, stride, pad, fill):
    """-> (B, KH*KW, Ho*Wo, C): K on a separate axis (for the max-pool reduce)."""
    views, Ho, Wo = _shifted_views(x, kh, kw, stride, pad, fill)
    return jnp.stack(views, axis=1), Ho, Wo


def _pick_hw_tile(hw, max_tile=512):
    if hw <= max_tile:
        return hw
    for t in range(max_tile - max_tile % 8, 7, -8):
        if hw % t == 0:
            return t
    return hw


# -----------------------------------------------------------------------------
# Kernel 1: conv (single matmul, K*Cin contraction) + frozen-BN affine + ReLU
# -----------------------------------------------------------------------------
def conv_kernel(p_ref, w_ref, scale_ref, shift_ref, o_ref, *, relu):
    y = jnp.dot(p_ref[...], w_ref[...], preferred_element_type=jnp.float32)
    y = y * scale_ref[...] + shift_ref[...]
    if relu:
        y = jnp.maximum(y, 0.0)
    o_ref[...] = y.astype(o_ref.dtype)


def conv_bn_relu(x, w, scale, shift, *, stride=1, pad=0, relu=True,
                 pad_fill=None, cout_pad=CPAD, mxu_dtype=jnp.float32):
    """x: (B,H,W,Cx) NHWC (Cx may already be lane-padded); w: (KH,KW,Ci,Co) HWIO."""
    B, H, W, Cx = x.shape
    KH, KW, Ci, Co = w.shape
    # zero-pad weight to the padded in/out channel widths (exact: padded input
    # channels are zero and padded output channels compute 0*1+0 = 0).
    wp = jnp.pad(w, ((0, 0), (0, 0), (0, Cx - Ci), (0, cout_pad - Co)))
    patches, Ho, Wo = extract_patches_matmul(x, KH, KW, stride, pad, pad_fill)
    HW, KC = Ho * Wo, KH * KW * Cx
    wmat = wp.reshape(KC, cout_pad)
    scale_p = jnp.pad(scale, (0, cout_pad - Co)).reshape(1, cout_pad)
    shift_p = jnp.pad(shift, (0, cout_pad - Co)).reshape(1, cout_pad)

    tile = _pick_hw_tile(HW)
    nt = HW // tile
    out = pl.pallas_call(
        functools.partial(conv_kernel, relu=relu),
        out_shape=jax.ShapeDtypeStruct((B, HW, cout_pad), jnp.float32),
        grid_spec=pltpu.PrefetchScalarGridSpec(
            num_scalar_prefetch=0,
            grid=(B, nt),
            in_specs=[
                pl.BlockSpec((None, tile, KC), lambda b, t: (b, t, 0)),
                pl.BlockSpec((KC, cout_pad), lambda b, t: (0, 0)),
                pl.BlockSpec((1, cout_pad), lambda b, t: (0, 0)),
                pl.BlockSpec((1, cout_pad), lambda b, t: (0, 0)),
            ],
            out_specs=pl.BlockSpec((None, tile, cout_pad),
                                   lambda b, t: (b, t, 0)),
        ),
        compiler_params=pltpu.CompilerParams(
            dimension_semantics=("parallel", "parallel")),
    )(patches.astype(mxu_dtype), wmat.astype(mxu_dtype), scale_p, shift_p)
    return out.reshape(B, Ho, Wo, cout_pad)


# -----------------------------------------------------------------------------
# Kernel 2: max pool (max-reduce over the KH*KW patch axis; lane-dense C)
# -----------------------------------------------------------------------------
def maxpool_kernel(p_ref, o_ref):
    o_ref[...] = jnp.max(p_ref[...], axis=0)


def maxpool2d(x, ksize, stride, pad):
    B, H, W, C = x.shape
    patches, Ho, Wo = extract_patches_stacked(x, ksize, ksize, stride, pad,
                                              float("-inf"))
    K, HW = ksize * ksize, Ho * Wo
    out = pl.pallas_call(
        maxpool_kernel,
        out_shape=jax.ShapeDtypeStruct((B, HW, C), x.dtype),
        grid_spec=pltpu.PrefetchScalarGridSpec(
            num_scalar_prefetch=0,
            grid=(B,),
            in_specs=[pl.BlockSpec((None, K, HW, C), lambda b: (b, 0, 0, 0))],
            out_specs=pl.BlockSpec((None, HW, C), lambda b: (b, 0, 0)),
        ),
        compiler_params=pltpu.CompilerParams(dimension_semantics=("parallel",)),
    )(patches)
    return out.reshape(B, Ho, Wo, C)


# -----------------------------------------------------------------------------
# Kernel 3: fused FPN merge -- lateral 1x1 convs + nearest-2x upsample (as a
# constant 0/1 matmul) + top-down add, all in one kernel.
# -----------------------------------------------------------------------------
def fpn_merge_kernel(c2_ref, c3_ref, w2_ref, b2_ref, w3_ref, b3_ref, u_ref,
                     o_ref):
    y3 = jnp.dot(c3_ref[...], w3_ref[...],
                 preferred_element_type=jnp.float32) + b3_ref[...]
    up = jnp.dot(u_ref[...], y3, preferred_element_type=jnp.float32)
    y2 = jnp.dot(c2_ref[...], w2_ref[...],
                 preferred_element_type=jnp.float32) + b2_ref[...]
    o_ref[...] = (y2 + up).astype(o_ref.dtype)


def fpn_merge(c2, c3, w2, b2, w3, b3, *, cout_pad=CPAD, mxu_dtype=jnp.float32):
    B, H2, W2, C2 = c2.shape
    _, H3, W3, C3 = c3.shape
    assert H2 == 2 * H3 and W2 == 2 * W3, "nearest-2x top-down requires 2x dims"
    HW2, HW3 = H2 * W2, H3 * W3

    w2p = jnp.pad(w2.reshape(w2.shape[2], w2.shape[3]),
                  ((0, C2 - w2.shape[2]), (0, cout_pad - w2.shape[3])))
    w3p = jnp.pad(w3.reshape(w3.shape[2], w3.shape[3]),
                  ((0, C3 - w3.shape[2]), (0, cout_pad - w3.shape[3])))
    b2p = jnp.pad(b2, (0, cout_pad - b2.shape[0])).reshape(1, cout_pad)
    b3p = jnp.pad(b3, (0, cout_pad - b3.shape[0])).reshape(1, cout_pad)

    # constant nearest-neighbour 2x upsample matrix: up = U @ y3
    r3 = (jnp.arange(H2)[:, None] // 2) * W3 + (jnp.arange(W2)[None, :] // 2)
    umat = jax.nn.one_hot(r3.reshape(-1), HW3, dtype=jnp.float32)  # (HW2, HW3)

    out = pl.pallas_call(
        fpn_merge_kernel,
        out_shape=jax.ShapeDtypeStruct((B, HW2, cout_pad), jnp.float32),
        grid_spec=pltpu.PrefetchScalarGridSpec(
            num_scalar_prefetch=0,
            grid=(B,),
            in_specs=[
                pl.BlockSpec((None, HW2, C2), lambda b: (b, 0, 0)),
                pl.BlockSpec((None, HW3, C3), lambda b: (b, 0, 0)),
                pl.BlockSpec((C2, cout_pad), lambda b: (0, 0)),
                pl.BlockSpec((1, cout_pad), lambda b: (0, 0)),
                pl.BlockSpec((C3, cout_pad), lambda b: (0, 0)),
                pl.BlockSpec((1, cout_pad), lambda b: (0, 0)),
                pl.BlockSpec((HW2, HW3), lambda b: (0, 0)),
            ],
            out_specs=pl.BlockSpec((None, HW2, cout_pad), lambda b: (b, 0, 0)),
        ),
        compiler_params=pltpu.CompilerParams(dimension_semantics=("parallel",)),
    )(c2.reshape(B, HW2, C2).astype(mxu_dtype),
      c3.reshape(B, HW3, C3).astype(mxu_dtype),
      w2p.astype(mxu_dtype), b2p, w3p.astype(mxu_dtype), b3p, umat)
    return out.reshape(B, H2, W2, cout_pad)


# -----------------------------------------------------------------------------
# Kernel 4: fused FPN output conv (3x3, bias, no act) + adaptive avg pool +
# flatten(2).transpose(1,2). Pool = constant averaging-matrix matmul.
# -----------------------------------------------------------------------------
def conv_pool_kernel(p_ref, w_ref, scale_ref, shift_ref, pmat_ref, o_ref):
    y = jnp.dot(p_ref[...], w_ref[...], preferred_element_type=jnp.float32)
    y = y * scale_ref[...] + shift_ref[...]
    o_ref[...] = jnp.dot(pmat_ref[...], y,
                         preferred_element_type=jnp.float32).astype(o_ref.dtype)


def conv_bn_pool_flatten(x, w, scale, shift, pool_shape, *, pad=1,
                         cout_pad=CPAD, mxu_dtype=jnp.float32):
    B, H, W, Cx = x.shape
    KH, KW, Ci, Co = w.shape
    patches, Ho, Wo = extract_patches_matmul(x, KH, KW, 1, pad, None)
    Ph, Pw = pool_shape
    # TODO(synk): AdaptiveAvgPool2d with non-divisible spatial dims (uneven
    #             windows) is not handled; the divisible case == uniform pool.
    assert Ho % Ph == 0 and Wo % Pw == 0, "adaptive == uniform only if divisible"
    kh, kw = Ho // Ph, Wo // Pw
    HW, KC, P = Ho * Wo, KH * KW * Cx, Ph * Pw

    wmat = jnp.pad(w, ((0, 0), (0, 0), (0, Cx - Ci),
                       (0, cout_pad - Co))).reshape(KC, cout_pad)
    scale_p = jnp.pad(scale, (0, cout_pad - Co)).reshape(1, cout_pad)
    shift_p = jnp.pad(shift, (0, cout_pad - Co)).reshape(1, cout_pad)

    # constant averaging matrix: pooled = P @ y, P[(ph,pw), (h,w)] = 1/(kh*kw)
    pidx = ((jnp.arange(Ho)[:, None] // kh) * Pw
            + (jnp.arange(Wo)[None, :] // kw)).reshape(-1)
    pmat = jax.nn.one_hot(pidx, P, dtype=jnp.float32).T / float(kh * kw)

    out = pl.pallas_call(
        conv_pool_kernel,
        out_shape=jax.ShapeDtypeStruct((B, P, cout_pad), jnp.float32),
        grid_spec=pltpu.PrefetchScalarGridSpec(
            num_scalar_prefetch=0,
            grid=(B,),
            in_specs=[
                pl.BlockSpec((None, HW, KC), lambda b: (b, 0, 0)),
                pl.BlockSpec((KC, cout_pad), lambda b: (0, 0)),
                pl.BlockSpec((1, cout_pad), lambda b: (0, 0)),
                pl.BlockSpec((1, cout_pad), lambda b: (0, 0)),
                pl.BlockSpec((P, HW), lambda b: (0, 0)),
            ],
            out_specs=pl.BlockSpec((None, P, cout_pad), lambda b: (b, 0, 0)),
        ),
        compiler_params=pltpu.CompilerParams(dimension_semantics=("parallel",)),
    )(patches.astype(mxu_dtype), wmat.astype(mxu_dtype), scale_p, shift_p, pmat)
    return out  # (B, Ph*Pw, cout_pad)


# -----------------------------------------------------------------------------
# VisualBackbone forward
# -----------------------------------------------------------------------------
def visual_backbone_forward(images_nchw, params, pool_shape=(4, 4),
                            mxu_dtype=jnp.float32):
    # NOTE: pass mxu_dtype=jnp.bfloat16 on v6e/v7x for the fast MXU path
    # (accumulation / epilogue stay in f32).
    x = jnp.transpose(images_nchw, (0, 2, 3, 1)).astype(jnp.float32)  # NHWC
    mean, std = params["pixel_mean"], params["pixel_std"]
    inv_std = 1.0 / std

    # --- fold (x - mean)/std into the stem conv (exact; border padded w/ mean)
    stem_w = params["stem_w"] * inv_std[None, None, :, None]
    stem_shift = params["stem_shift"] - params["stem_scale"] * jnp.einsum(
        "hwio,i->o", stem_w, mean)

    # --- backbone (small ResNet-like, frozen BN folded into scale/shift) ---
    x = conv_bn_relu(x, stem_w, params["stem_scale"], stem_shift,
                     stride=2, pad=1, relu=True, pad_fill=mean,
                     mxu_dtype=mxu_dtype)
    x = maxpool2d(x, ksize=3, stride=2, pad=1)

    c2 = conv_bn_relu(x, params["res2_w"], params["res2_scale"],
                      params["res2_shift"], stride=1, pad=1, relu=True,
                      mxu_dtype=mxu_dtype)
    c3 = conv_bn_relu(c2, params["res3_w"], params["res3_scale"],
                      params["res3_shift"], stride=2, pad=1, relu=True,
                      mxu_dtype=mxu_dtype)

    # --- FPN: fused laterals + nearest-2x upsample + add ---
    merged = fpn_merge(c2, c3, params["lat2_w"], params["lat2_b"],
                       params["lat3_w"], params["lat3_b"], mxu_dtype=mxu_dtype)

    # --- fused p2 output conv + adaptive avg pool + flatten(2).transpose(1,2)
    fpn_c = params["out2_w"].shape[-1]
    feats = conv_bn_pool_flatten(merged, params["out2_w"],
                                 jnp.ones((fpn_c,), jnp.float32),
                                 params["out2_b"], pool_shape, pad=1,
                                 mxu_dtype=mxu_dtype)
    return feats[:, :, :fpn_c]  # drop lane padding -> (B, Ph*Pw, fpn_c)


# -----------------------------------------------------------------------------
# Deterministic synthetic parameters
# -----------------------------------------------------------------------------
def make_params(key, cin=3, stem_c=8, c2=16, c3=32, fpn_c=32):
    ks = jax.random.split(key, 12)
    n = lambda k, s, sc=0.1: sc * jax.random.normal(k, s, jnp.float32)
    return {
        # detectron2 default BGR pixel statistics
        "pixel_mean": jnp.array([103.53, 116.28, 123.675], jnp.float32),
        "pixel_std": jnp.array([57.375, 57.12, 58.395], jnp.float32),
        # HWIO conv weights (PyTorch OIHW transposed), frozen-BN scale/shift
        "stem_w": n(ks[0], (3, 3, cin, stem_c)),
        "stem_scale": 1.0 + n(ks[1], (stem_c,), 0.05),
        "stem_shift": n(ks[2], (stem_c,), 0.05),
        "res2_w": n(ks[3], (3, 3, stem_c, c2)),
        "res2_scale": 1.0 + n(ks[4], (c2,), 0.05),
        "res2_shift": n(ks[5], (c2,), 0.05),
        "res3_w": n(ks[6], (3, 3, c2, c3)),
        "res3_scale": 1.0 + n(ks[7], (c3,), 0.05),
        "res3_shift": n(ks[8], (c3,), 0.05),
        # FPN convs (bias, no norm)
        "lat3_w": n(ks[9], (1, 1, c3, fpn_c)),
        "lat3_b": jnp.zeros((fpn_c,), jnp.float32),
        "lat2_w": n(ks[10], (1, 1, c2, fpn_c)),
        "lat2_b": jnp.zeros((fpn_c,), jnp.float32),
        "out2_w": n(ks[11], (3, 3, fpn_c, fpn_c)),
        "out2_b": jnp.zeros((fpn_c,), jnp.float32),
    }


if __name__ == "__main__":
    key = jax.random.PRNGKey(0)
    pkey, xkey = jax.random.split(key)
    params = make_params(pkey)

    # Small NCHW input (module normally takes (B, 3, 224, 224)).
    images = 255.0 * jax.random.uniform(xkey, (2, 3, 32, 32), jnp.float32)

    fwd = jax.jit(lambda imgs: visual_backbone_forward(imgs, params,
                                                       pool_shape=(4, 4)))
    feats = jax.block_until_ready(fwd(images))
    assert feats.shape == (2, 16, 32), feats.shape
    assert bool(jnp.all(jnp.isfinite(feats)))
    print("KERNEL_OK")
</pallas_src>

<mosaic_0001>
module attributes {stable_mosaic.version = 11 : i64} {
  func.func @conv_kernel(%arg0: i32, %arg1: i32, %arg2: memref<1x256x27xf32, #tpu.memory_space<vmem>>, %arg3: memref<27x128xf32, #tpu.memory_space<vmem>>, %arg4: memref<1x128xf32, #tpu.memory_space<vmem>>, %arg5: memref<1x128xf32, #tpu.memory_space<vmem>>, %arg6: memref<1x256x128xf32, #tpu.memory_space<vmem>>) attributes {dimension_semantics = [#tpu.dimension_semantics<parallel>, #tpu.dimension_semantics<parallel>], iteration_bounds = array<i64: 2, 1>, scalar_prefetch = 0 : i64, scratch_operands = 0 : i64, tpu.core_type = #tpu.core_type<tc>, window_params = [{transform_indices = @transform_0, window_bounds = array<i64: 1, 256, 27>}, {pipeline_mode = #tpu.pipeline_mode<synchronous>, transform_indices = @transform_1, window_bounds = array<i64: 27, 128>}, {pipeline_mode = #tpu.pipeline_mode<synchronous>, transform_indices = @transform_2, window_bounds = array<i64: 1, 128>}, {pipeline_mode = #tpu.pipeline_mode<synchronous>, transform_indices = @transform_3, window_bounds = array<i64: 1, 128>}, {transform_indices = @transform_4, window_bounds = array<i64: 1, 256, 128>}]} {
    %c0 = arith.constant 0 : index
    %c0_0 = arith.constant 0 : index
    %c0_1 = arith.constant 0 : index
    %0 = vector.load %arg2[%c0, %c0_0, %c0_1] : memref<1x256x27xf32, #tpu.memory_space<vmem>>, vector<1x256x27xf32>
    %1 = vector.shape_cast %0 : vector<1x256x27xf32> to vector<256x27xf32>
    %c0_2 = arith.constant 0 : index
    %c0_3 = arith.constant 0 : index
    %2 = vector.load %arg3[%c0_2, %c0_3] : memref<27x128xf32, #tpu.memory_space<vmem>>, vector<27x128xf32>
    %cst = arith.constant dense<0.000000e+00> : vector<256x128xf32>
    %3 = tpu.matmul %1, %2, %cst {dimension_numbers = #tpu.dot_dimension_numbers<[1], [0], [0], [1], [0, 0, 1, 1], [], []>} : vector<256x27xf32>, vector<27x128xf32>, vector<256x128xf32> -> vector<256x128xf32>
    %c0_4 = arith.constant 0 : index
    %c0_5 = arith.constant 0 : index
    %4 = vector.load %arg4[%c0_4, %c0_5] : memref<1x128xf32, #tpu.memory_space<vmem>>, vector<1x128xf32>
    %5 = vector.broadcast %4 : vector<1x128xf32> to vector<256x128xf32>
    %6 = arith.mulf %3, %5 : vector<256x128xf32>
    %c0_6 = arith.constant 0 : index
    %c0_7 = arith.constant 0 : index
    %7 = vector.load %arg5[%c0_6, %c0_7] : memref<1x128xf32, #tpu.memory_space<vmem>>, vector<1x128xf32>
    %8 = vector.broadcast %7 : vector<1x128xf32> to vector<256x128xf32>
    %9 = arith.addf %6, %8 : vector<256x128xf32>
    %cst_8 = arith.constant 0.000000e+00 : f32
    %10 = vector.broadcast %cst_8 : f32 to vector<256x128xf32>
    %11 = arith.maximumf %9, %10 : vector<256x128xf32>
    %c0_9 = arith.constant 0 : index
    %c0_10 = arith.constant 0 : index
    %c0_11 = arith.constant 0 : index
    %12 = vector.load %arg6[%c0_9, %c0_10, %c0_11] : memref<1x256x128xf32, #tpu.memory_space<vmem>>, vector<1x256x128xf32>
    %13 = vector.shape_cast %12 : vector<1x256x128xf32> to vector<256x128xf32>
    %14 = vector.shape_cast %11 : vector<256x128xf32> to vector<1x256x128xf32>
    tpu.vector_store %arg6[%c0_9, %c0_10, %c0_11], %14 {strides = array<i32>} : memref<1x256x128xf32, #tpu.memory_space<vmem>>, vector<1x256x128xf32>,
    return
  }
  func.func @transform_0(%arg0: i32, %arg1: i32) -> (i32, i32, i32) {
    %c0_i32 = arith.constant 0 : i32
    %c0_i32_0 = arith.constant 0 : i32
    return %arg0, %arg1, %c0_i32 : i32, i32, i32
  }
  func.func @transform_1(%arg0: i32, %arg1: i32) -> (i32, i32) {
    %c0_i32 = arith.constant 0 : i32
    %c0_i32_0 = arith.constant 0 : i32
    %c0_i32_1 = arith.constant 0 : i32
    return %c0_i32, %c0_i32_0 : i32, i32
  }
  func.func @transform_2(%arg0: i32, %arg1: i32) -> (i32, i32) {
    %c0_i32 = arith.constant 0 : i32
    %c0_i32_0 = arith.constant 0 : i32
    %c0_i32_1 = arith.constant 0 : i32
    return %c0_i32, %c0_i32_0 : i32, i32
  }
  func.func @transform_3(%arg0: i32, %arg1: i32) -> (i32, i32) {
    %c0_i32 = arith.constant 0 : i32
    %c0_i32_0 = arith.constant 0 : i32
    %c0_i32_1 = arith.constant 0 : i32
    return %c0_i32, %c0_i32_0 : i32, i32
  }
  func.func @transform_4(%arg0: i32, %arg1: i32) -> (i32, i32, i32) {
    %c0_i32 = arith.constant 0 : i32
    %c0_i32_0 = arith.constant 0 : i32
    return %arg0, %arg1, %c0_i32 : i32, i32, i32
  }
}

module attributes {stable_mosaic.version = 11 : i64} {
  func.func @maxpool_kernel(%arg0: i32, %arg1: memref<1x9x64x128xf32, #tpu.memory_space<vmem>>, %arg2: memref<1x64x128xf32, #tpu.memory_space<vmem>>) attributes {dimension_semantics = [#tpu.dimension_semantics<parallel>], iteration_bounds = array<i64: 2>, scalar_prefetch = 0 : i64, scratch_operands = 0 : i64, tpu.core_type = #tpu.core_type<tc>, window_params = [{transform_indices = @transform_0, window_bounds = array<i64: 1, 9, 64, 128>}, {transform_indices = @transform_1, window_bounds = array<i64: 1, 64, 128>}]} {
    %c0 = arith.constant 0 : index
    %c0_0 = arith.constant 0 : index
    %c0_1 = arith.constant 0 : index
    %c0_2 = arith.constant 0 : index
    %0 = vector.load %arg1[%c0, %c0_0, %c0_1, %c0_2] : memref<1x9x64x128xf32, #tpu.memory_space<vmem>>, vector<1x9x64x128xf32>
    %1 = vector.shape_cast %0 : vector<1x9x64x128xf32> to vector<9x64x128xf32>
    %cst = arith.constant dense<0xFF800000> : vector<64x128xf32>
    %2 = vector.multi_reduction <maximumf>, %1, %cst [0] : vector<9x64x128xf32> to vector<64x128xf32>
    %c0_3 = arith.constant 0 : index
    %c0_4 = arith.constant 0 : index
    %c0_5 = arith.constant 0 : index
    %3 = vector.load %arg2[%c0_3, %c0_4, %c0_5] : memref<1x64x128xf32, #tpu.memory_space<vmem>>, vector<1x64x128xf32>
    %4 = vector.shape_cast %3 : vector<1x64x128xf32> to vector<64x128xf32>
    %5 = vector.shape_cast %2 : vector<64x128xf32> to vector<1x64x128xf32>
    tpu.vector_store %arg2[%c0_3, %c0_4, %c0_5], %5 {strides = array<i32>} : memref<1x64x128xf32, #tpu.memory_space<vmem>>, vector<1x64x128xf32>,
    return
  }
  func.func @transform_0(%arg0: i32) -> (i32, i32, i32, i32) {
    %c0_i32 = arith.constant 0 : i32
    %c0_i32_0 = arith.constant 0 : i32
    %c0_i32_1 = arith.constant 0 : i32
    %c0_i32_2 = arith.constant 0 : i32
    return %arg0, %c0_i32, %c0_i32_0, %c0_i32_1 : i32, i32, i32, i32
  }
  func.func @transform_1(%arg0: i32) -> (i32, i32, i32) {
    %c0_i32 = arith.constant 0 : i32
    %c0_i32_0 = arith.constant 0 : i32
    %c0_i32_1 = arith.constant 0 : i32
    return %arg0, %c0_i32, %c0_i32_0 : i32, i32, i32
  }
}

module attributes {stable_mosaic.version = 11 : i64} {
  func.func @conv_kernel(%arg0: i32, %arg1: i32, %arg2: memref<1x64x1152xf32, #tpu.memory_space<vmem>>, %arg3: memref<1152x128xf32, #tpu.memory_space<vmem>>, %arg4: memref<1x128xf32, #tpu.memory_space<vmem>>, %arg5: memref<1x128xf32, #tpu.memory_space<vmem>>, %arg6: memref<1x64x128xf32, #tpu.memory_space<vmem>>) attributes {dimension_semantics = [#tpu.dimension_semantics<parallel>, #tpu.dimension_semantics<parallel>], iteration_bounds = array<i64: 2, 1>, scalar_prefetch = 0 : i64, scratch_operands = 0 : i64, tpu.core_type = #tpu.core_type<tc>, window_params = [{transform_indices = @transform_0, window_bounds = array<i64: 1, 64, 1152>}, {pipeline_mode = #tpu.pipeline_mode<synchronous>, transform_indices = @transform_1, window_bounds = array<i64: 1152, 128>}, {pipeline_mode = #tpu.pipeline_mode<synchronous>, transform_indices = @transform_2, window_bounds = array<i64: 1, 128>}, {pipeline_mode = #tpu.pipeline_mode<synchronous>, transform_indices = @transform_3, window_bounds = array<i64: 1, 128>}, {transform_indices = @transform_4, window_bounds = array<i64: 1, 64, 128>}]} {
    %c0 = arith.constant 0 : index
    %c0_0 = arith.constant 0 : index
    %c0_1 = arith.constant 0 : index
    %0 = vector.load %arg2[%c0, %c0_0, %c0_1] : memref<1x64x1152xf32, #tpu.memory_space<vmem>>, vector<1x64x1152xf32>
    %1 = vector.shape_cast %0 : vector<1x64x1152xf32> to vector<64x1152xf32>
    %c0_2 = arith.constant 0 : index
    %c0_3 = arith.constant 0 : index
    %2 = vector.load %arg3[%c0_2, %c0_3] : memref<1152x128xf32, #tpu.memory_space<vmem>>, vector<1152x128xf32>
    %cst = arith.constant dense<0.000000e+00> : vector<64x128xf32>
    %3 = tpu.matmul %1, %2, %cst {dimension_numbers = #tpu.dot_dimension_numbers<[1], [0], [0], [1], [0, 0, 1, 1], [], []>} : vector<64x1152xf32>, vector<1152x128xf32>, vector<64x128xf32> -> vector<64x128xf32>
    %c0_4 = arith.constant 0 : index
    %c0_5 = arith.constant 0 : index
    %4 = vector.load %arg4[%c0_4, %c0_5] : memref<1x128xf32, #tpu.memory_space<vmem>>, vector<1x128xf32>
    %5 = vector.broadcast %4 : vector<1x128xf32> to vector<64x128xf32>
    %6 = arith.mulf %3, %5 : vector<64x128xf32>
    %c0_6 = arith.constant 0 : index
    %c0_7 = arith.constant 0 : index
    %7 = vector.load %arg5[%c0_6, %c0_7] : memref<1x128xf32, #tpu.memory_space<vmem>>, vector<1x128xf32>
    %8 = vector.broadcast %7 : vector<1x128xf32> to vector<64x128xf32>
    %9 = arith.addf %6, %8 : vector<64x128xf32>
    %cst_8 = arith.constant 0.000000e+00 : f32
    %10 = vector.broadcast %cst_8 : f32 to vector<64x128xf32>
    %11 = arith.maximumf %9, %10 : vector<64x128xf32>
    %c0_9 = arith.constant 0 : index
    %c0_10 = arith.constant 0 : index
    %c0_11 = arith.constant 0 : index
    %12 = vector.load %arg6[%c0_9, %c0_10, %c0_11] : memref<1x64x128xf32, #tpu.memory_space<vmem>>, vector<1x64x128xf32>
    %13 = vector.shape_cast %12 : vector<1x64x128xf32> to vector<64x128xf32>
    %14 = vector.shape_cast %11 : vector<64x128xf32> to vector<1x64x128xf32>
    tpu.vector_store %arg6[%c0_9, %c0_10, %c0_11], %14 {strides = array<i32>} : memref<1x64x128xf32, #tpu.memory_space<vmem>>, vector<1x64x128xf32>,
    return
  }
  func.func @transform_0(%arg0: i32, %arg1: i32) -> (i32, i32, i32) {
    %c0_i32 = arith.constant 0 : i32
    %c0_i32_0 = arith.constant 0 : i32
    return %arg0, %arg1, %c0_i32 : i32, i32, i32
  }
  func.func @transform_1(%arg0: i32, %arg1: i32) -> (i32, i32) {
    %c0_i32 = arith.constant 0 : i32
    %c0_i32_0 = arith.constant 0 : i32
    %c0_i32_1 = arith.constant 0 : i32
    return %c0_i32, %c0_i32_0 : i32, i32
  }
  func.func @transform_2(%arg0: i32, %arg1: i32) -> (i32, i32) {
    %c0_i32 = arith.constant 0 : i32
    %c0_i32_0 = arith.constant 0 : i32
    %c0_i32_1 = arith.constant 0 : i32
    return %c0_i32, %c0_i32_0 : i32, i32
  }
  func.func @transform_3(%arg0: i32, %arg1: i32) -> (i32, i32) {
    %c0_i32 = arith.constant 0 : i32
    %c0_i32_0 = arith.constant 0 : i32
    %c0_i32_1 = arith.constant 0 : i32
    return %c0_i32, %c0_i32_0 : i32, i32
  }
  func.func @transform_4(%arg0: i32, %arg1: i32) -> (i32, i32, i32) {
    %c0_i32 = arith.constant 0 : i32
    %c0_i32_0 = arith.constant 0 : i32
    return %arg0, %arg1, %c0_i32 : i32, i32, i32
  }
}

module attributes {stable_mosaic.version = 11 : i64} {
  func.func @conv_kernel(%arg0: i32, %arg1: i32, %arg2: memref<1x16x1152xf32, #tpu.memory_space<vmem>>, %arg3: memref<1152x128xf32, #tpu.memory_space<vmem>>, %arg4: memref<1x128xf32, #tpu.memory_space<vmem>>, %arg5: memref<1x128xf32, #tpu.memory_space<vmem>>, %arg6: memref<1x16x128xf32, #tpu.memory_space<vmem>>) attributes {dimension_semantics = [#tpu.dimension_semantics<parallel>, #tpu.dimension_semantics<parallel>], iteration_bounds = array<i64: 2, 1>, scalar_prefetch = 0 : i64, scratch_operands = 0 : i64, tpu.core_type = #tpu.core_type<tc>, window_params = [{transform_indices = @transform_0, window_bounds = array<i64: 1, 16, 1152>}, {pipeline_mode = #tpu.pipeline_mode<synchronous>, transform_indices = @transform_1, window_bounds = array<i64: 1152, 128>}, {pipeline_mode = #tpu.pipeline_mode<synchronous>, transform_indices = @transform_2, window_bounds = array<i64: 1, 128>}, {pipeline_mode = #tpu.pipeline_mode<synchronous>, transform_indices = @transform_3, window_bounds = array<i64: 1, 128>}, {transform_indices = @transform_4, window_bounds = array<i64: 1, 16, 128>}]} {
    %c0 = arith.constant 0 : index
    %c0_0 = arith.constant 0 : index
    %c0_1 = arith.constant 0 : index
    %0 = vector.load %arg2[%c0, %c0_0, %c0_1] : memref<1x16x1152xf32, #tpu.memory_space<vmem>>, vector<1x16x1152xf32>
    %1 = vector.shape_cast %0 : vector<1x16x1152xf32> to vector<16x1152xf32>
    %c0_2 = arith.constant 0 : index
    %c0_3 = arith.constant 0 : index
    %2 = vector.load %arg3[%c0_2, %c0_3] : memref<1152x128xf32, #tpu.memory_space<vmem>>, vector<1152x128xf32>
    %cst = arith.constant dense<0.000000e+00> : vector<16x128xf32>
    %3 = tpu.matmul %1, %2, %cst {dimension_numbers = #tpu.dot_dimension_numbers<[1], [0], [0], [1], [0, 0, 1, 1], [], []>} : vector<16x1152xf32>, vector<1152x128xf32>, vector<16x128xf32> -> vector<16x128xf32>
    %c0_4 = arith.constant 0 : index
    %c0_5 = arith.constant 0 : index
    %4 = vector.load %arg4[%c0_4, %c0_5] : memref<1x128xf32, #tpu.memory_space<vmem>>, vector<1x128xf32>
    %5 = vector.broadcast %4 : vector<1x128xf32> to vector<16x128xf32>
    %6 = arith.mulf %3, %5 : vector<16x128xf32>
    %c0_6 = arith.constant 0 : index
    %c0_7 = arith.constant 0 : index
    %7 = vector.load %arg5[%c0_6, %c0_7] : memref<1x128xf32, #tpu.memory_space<vmem>>, vector<1x128xf32>
    %8 = vector.broadcast %7 : vector<1x128xf32> to vector<16x128xf32>
    %9 = arith.addf %6, %8 : vector<16x128xf32>
    %cst_8 = arith.constant 0.000000e+00 : f32
    %10 = vector.broadcast %cst_8 : f32 to vector<16x128xf32>
    %11 = arith.maximumf %9, %10 : vector<16x128xf32>
    %c0_9 = arith.constant 0 : index
    %c0_10 = arith.constant 0 : index
    %c0_11 = arith.constant 0 : index
    %12 = vector.load %arg6[%c0_9, %c0_10, %c0_11] : memref<1x16x128xf32, #tpu.memory_space<vmem>>, vector<1x16x128xf32>
    %13 = vector.shape_cast %12 : vector<1x16x128xf32> to vector<16x128xf32>
    %14 = vector.shape_cast %11 : vector<16x128xf32> to vector<1x16x128xf32>
    tpu.vector_store %arg6[%c0_9, %c0_10, %c0_11], %14 {strides = array<i32>} : memref<1x16x128xf32, #tpu.memory_space<vmem>>, vector<1x16x128xf32>,
    return
  }
  func.func @transform_0(%arg0: i32, %arg1: i32) -> (i32, i32, i32) {
    %c0_i32 = arith.constant 0 : i32
    %c0_i32_0 = arith.constant 0 : i32
    return %arg0, %arg1, %c0_i32 : i32, i32, i32
  }
  func.func @transform_1(%arg0: i32, %arg1: i32) -> (i32, i32) {
    %c0_i32 = arith.constant 0 : i32
    %c0_i32_0 = arith.constant 0 : i32
    %c0_i32_1 = arith.constant 0 : i32
    return %c0_i32, %c0_i32_0 : i32, i32
  }
  func.func @transform_2(%arg0: i32, %arg1: i32) -> (i32, i32) {
    %c0_i32 = arith.constant 0 : i32
    %c0_i32_0 = arith.constant 0 : i32
    %c0_i32_1 = arith.constant 0 : i32
    return %c0_i32, %c0_i32_0 : i32, i32
  }
  func.func @transform_3(%arg0: i32, %arg1: i32) -> (i32, i32) {
    %c0_i32 = arith.constant 0 : i32
    %c0_i32_0 = arith.constant 0 : i32
    %c0_i32_1 = arith.constant 0 : i32
    return %c0_i32, %c0_i32_0 : i32, i32
  }
  func.func @transform_4(%arg0: i32, %arg1: i32) -> (i32, i32, i32) {
    %c0_i32 = arith.constant 0 : i32
    %c0_i32_0 = arith.constant 0 : i32
    return %arg0, %arg1, %c0_i32 : i32, i32, i32
  }
}

module attributes {stable_mosaic.version = 11 : i64} {
  func.func @conv_pool_kernel(%arg0: i32, %arg1: memref<1x64x1152xf32, #tpu.memory_space<vmem>>, %arg2: memref<1152x128xf32, #tpu.memory_space<vmem>>, %arg3: memref<1x128xf32, #tpu.memory_space<vmem>>, %arg4: memref<1x128xf32, #tpu.memory_space<vmem>>, %arg5: memref<16x64xf32, #tpu.memory_space<vmem>>, %arg6: memref<1x16x128xf32, #tpu.memory_space<vmem>>) attributes {dimension_semantics = [#tpu.dimension_semantics<parallel>], iteration_bounds = array<i64: 2>, scalar_prefetch = 0 : i64, scratch_operands = 0 : i64, tpu.core_type = #tpu.core_type<tc>, window_params = [{transform_indices = @transform_0, window_bounds = array<i64: 1, 64, 1152>}, {pipeline_mode = #tpu.pipeline_mode<synchronous>, transform_indices = @transform_1, window_bounds = array<i64: 1152, 128>}, {pipeline_mode = #tpu.pipeline_mode<synchronous>, transform_indices = @transform_2, window_bounds = array<i64: 1, 128>}, {pipeline_mode = #tpu.pipeline_mode<synchronous>, transform_indices = @transform_3, window_bounds = array<i64: 1, 128>}, {pipeline_mode = #tpu.pipeline_mode<synchronous>, transform_indices = @transform_4, window_bounds = array<i64: 16, 64>}, {transform_indices = @transform_5, window_bounds = array<i64: 1, 16, 128>}]} {
    %c0 = arith.constant 0 : index
    %c0_0 = arith.constant 0 : index
    %c0_1 = arith.constant 0 : index
    %0 = vector.load %arg1[%c0, %c0_0, %c0_1] : memref<1x64x1152xf32, #tpu.memory_space<vmem>>, vector<1x64x1152xf32>
    %1 = vector.shape_cast %0 : vector<1x64x1152xf32> to vector<64x1152xf32>
    %c0_2 = arith.constant 0 : index
    %c0_3 = arith.constant 0 : index
    %2 = vector.load %arg2[%c0_2, %c0_3] : memref<1152x128xf32, #tpu.memory_space<vmem>>, vector<1152x128xf32>
    %cst = arith.constant dense<0.000000e+00> : vector<64x128xf32>
    %3 = tpu.matmul %1, %2, %cst {dimension_numbers = #tpu.dot_dimension_numbers<[1], [0], [0], [1], [0, 0, 1, 1], [], []>} : vector<64x1152xf32>, vector<1152x128xf32>, vector<64x128xf32> -> vector<64x128xf32>
    %c0_4 = arith.constant 0 : index
    %c0_5 = arith.constant 0 : index
    %4 = vector.load %arg3[%c0_4, %c0_5] : memref<1x128xf32, #tpu.memory_space<vmem>>, vector<1x128xf32>
    %5 = vector.broadcast %4 : vector<1x128xf32> to vector<64x128xf32>
    %6 = arith.mulf %3, %5 : vector<64x128xf32>
    %c0_6 = arith.constant 0 : index
    %c0_7 = arith.constant 0 : index
    %7 = vector.load %arg4[%c0_6, %c0_7] : memref<1x128xf32, #tpu.memory_space<vmem>>, vector<1x128xf32>
    %8 = vector.broadcast %7 : vector<1x128xf32> to vector<64x128xf32>
    %9 = arith.addf %6, %8 : vector<64x128xf32>
    %c0_8 = arith.constant 0 : index
    %c0_9 = arith.constant 0 : index
    %10 = vector.load %arg5[%c0_8, %c0_9] : memref<16x64xf32, #tpu.memory_space<vmem>>, vector<16x64xf32>
    %cst_10 = arith.constant dense<0.000000e+00> : vector<16x128xf32>
    %11 = tpu.matmul %10, %9, %cst_10 {dimension_numbers = #tpu.dot_dimension_numbers<[1], [0], [0], [1], [0, 0, 1, 1], [], []>} : vector<16x64xf32>, vector<64x128xf32>, vector<16x128xf32> -> vector<16x128xf32>
    %c0_11 = arith.constant 0 : index
    %c0_12 = arith.constant 0 : index
    %c0_13 = arith.constant 0 : index
    %12 = vector.load %arg6[%c0_11, %c0_12, %c0_13] : memref<1x16x128xf32, #tpu.memory_space<vmem>>, vector<1x16x128xf32>
    %13 = vector.shape_cast %12 : vector<1x16x128xf32> to vector<16x128xf32>
    %14 = vector.shape_cast %11 : vector<16x128xf32> to vector<1x16x128xf32>
    tpu.vector_store %arg6[%c0_11, %c0_12, %c0_13], %14 {strides = array<i32>} : memref<1x16x128xf32, #tpu.memory_space<vmem>>, vector<1x16x128xf32>,
    return
  }
  func.func @transform_0(%arg0: i32) -> (i32, i32, i32) {
    %c0_i32 = arith.constant 0 : i32
    %c0_i32_0 = arith.constant 0 : i32
    %c0_i32_1 = arith.constant 0 : i32
    return %arg0, %c0_i32, %c0_i32_0 : i32, i32, i32
  }
  func.func @transform_1(%arg0: i32) -> (i32, i32) {
    %c0_i32 = arith.constant 0 : i32
    %c0_i32_0 = arith.constant 0 : i32
    %c0_i32_1 = arith.constant 0 : i32
    return %c0_i32, %c0_i32_0 : i32, i32
  }
  func.func @transform_2(%arg0: i32) -> (i32, i32) {
    %c0_i32 = arith.constant 0 : i32
    %c0_i32_0 = arith.constant 0 : i32
    %c0_i32_1 = arith.constant 0 : i32
    return %c0_i32, %c0_i32_0 : i32, i32
  }
  func.func @transform_3(%arg0: i32) -> (i32, i32) {
    %c0_i32 = arith.constant 0 : i32
    %c0_i32_0 = arith.constant 0 : i32
    %c0_i32_1 = arith.constant 0 : i32
    return %c0_i32, %c0_i32_0 : i32, i32
  }
  func.func @transform_4(%arg0: i32) -> (i32, i32) {
    %c0_i32 = arith.constant 0 : i32
    %c0_i32_0 = arith.constant 0 : i32
    %c0_i32_1 = arith.constant 0 : i32
    return %c0_i32, %c0_i32_0 : i32, i32
  }
  func.func @transform_5(%arg0: i32) -> (i32, i32, i32) {
    %c0_i32 = arith.constant 0 : i32
    %c0_i32_0 = arith.constant 0 : i32
    %c0_i32_1 = arith.constant 0 : i32
    return %arg0, %c0_i32, %c0_i32_0 : i32, i32, i32
  }
}

module attributes {stable_mosaic.version = 11 : i64} {
  func.func @fpn_merge_kernel(%arg0: i32, %arg1: memref<1x64x128xf32, #tpu.memory_space<vmem>>, %arg2: memref<1x16x128xf32, #tpu.memory_space<vmem>>, %arg3: memref<128x128xf32, #tpu.memory_space<vmem>>, %arg4: memref<1x128xf32, #tpu.memory_space<vmem>>, %arg5: memref<128x128xf32, #tpu.memory_space<vmem>>, %arg6: memref<1x128xf32, #tpu.memory_space<vmem>>, %arg7: memref<64x16xf32, #tpu.memory_space<vmem>>, %arg8: memref<1x64x128xf32, #tpu.memory_space<vmem>>) attributes {dimension_semantics = [#tpu.dimension_semantics<parallel>], iteration_bounds = array<i64: 2>, scalar_prefetch = 0 : i64, scratch_operands = 0 : i64, tpu.core_type = #tpu.core_type<tc>, window_params = [{transform_indices = @transform_0, window_bounds = array<i64: 1, 64, 128>}, {transform_indices = @transform_1, window_bounds = array<i64: 1, 16, 128>}, {pipeline_mode = #tpu.pipeline_mode<synchronous>, transform_indices = @transform_2, window_bounds = array<i64: 128, 128>}, {pipeline_mode = #tpu.pipeline_mode<synchronous>, transform_indices = @transform_3, window_bounds = array<i64: 1, 128>}, {pipeline_mode = #tpu.pipeline_mode<synchronous>, transform_indices = @transform_4, window_bounds = array<i64: 128, 128>}, {pipeline_mode = #tpu.pipeline_mode<synchronous>, transform_indices = @transform_5, window_bounds = array<i64: 1, 128>}, {pipeline_mode = #tpu.pipeline_mode<synchronous>, transform_indices = @transform_6, window_bounds = array<i64: 64, 16>}, {transform_indices = @transform_7, window_bounds = array<i64: 1, 64, 128>}]} {
    %c0 = arith.constant 0 : index
    %c0_0 = arith.constant 0 : index
    %c0_1 = arith.constant 0 : index
    %0 = vector.load %arg2[%c0, %c0_0, %c0_1] : memref<1x16x128xf32, #tpu.memory_space<vmem>>, vector<1x16x128xf32>
    %1 = vector.shape_cast %0 : vector<1x16x128xf32> to vector<16x128xf32>
    %c0_2 = arith.constant 0 : index
    %c0_3 = arith.constant 0 : index
    %2 = vector.load %arg5[%c0_2, %c0_3] : memref<128x128xf32, #tpu.memory_space<vmem>>, vector<128x128xf32>
    %cst = arith.constant dense<0.000000e+00> : vector<16x128xf32>
    %3 = tpu.matmul %1, %2, %cst {dimension_numbers = #tpu.dot_dimension_numbers<[1], [0], [0], [1], [0, 0, 1, 1], [], []>} : vector<16x128xf32>, vector<128x128xf32>, vector<16x128xf32> -> vector<16x128xf32>
    %c0_4 = arith.constant 0 : index
    %c0_5 = arith.constant 0 : index
    %4 = vector.load %arg6[%c0_4, %c0_5] : memref<1x128xf32, #tpu.memory_space<vmem>>, vector<1x128xf32>
    %5 = vector.broadcast %4 : vector<1x128xf32> to vector<16x128xf32>
    %6 = arith.addf %3, %5 : vector<16x128xf32>
    %c0_6 = arith.constant 0 : index
    %c0_7 = arith.constant 0 : index
    %7 = vector.load %arg7[%c0_6, %c0_7] : memref<64x16xf32, #tpu.memory_space<vmem>>, vector<64x16xf32>
    %cst_8 = arith.constant dense<0.000000e+00> : vector<64x128xf32>
    %8 = tpu.matmul %7, %6, %cst_8 {dimension_numbers = #tpu.dot_dimension_numbers<[1], [0], [0], [1], [0, 0, 1, 1], [], []>} : vector<64x16xf32>, vector<16x128xf32>, vector<64x128xf32> -> vector<64x128xf32>
    %c0_9 = arith.constant 0 : index
    %c0_10 = arith.constant 0 : index
    %c0_11 = arith.constant 0 : index
    %9 = vector.load %arg1[%c0_9, %c0_10, %c0_11] : memref<1x64x128xf32, #tpu.memory_space<vmem>>, vector<1x64x128xf32>
    %10 = vector.shape_cast %9 : vector<1x64x128xf32> to vector<64x128xf32>
    %c0_12 = arith.constant 0 : index
    %c0_13 = arith.constant 0 : index
    %11 = vector.load %arg3[%c0_12, %c0_13] : memref<128x128xf32, #tpu.memory_space<vmem>>, vector<128x128xf32>
    %cst_14 = arith.constant dense<0.000000e+00> : vector<64x128xf32>
    %12 = tpu.matmul %10, %11, %cst_14 {dimension_numbers = #tpu.dot_dimension_numbers<[1], [0], [0], [1], [0, 0, 1, 1], [], []>} : vector<64x128xf32>, vector<128x128xf32>, vector<64x128xf32> -> vector<64x128xf32>
    %c0_15 = arith.constant 0 : index
    %c0_16 = arith.constant 0 : index
    %13 = vector.load %arg4[%c0_15, %c0_16] : memref<1x128xf32, #tpu.memory_space<vmem>>, vector<1x128xf32>
    %14 = vector.broadcast %13 : vector<1x128xf32> to vector<64x128xf32>
    %15 = arith.addf %12, %14 : vector<64x128xf32>
    %16 = arith.addf %15, %8 : vector<64x128xf32>
    %c0_17 = arith.constant 0 : index
    %c0_18 = arith.constant 0 : index
    %c0_19 = arith.constant 0 : index
    %17 = vector.load %arg8[%c0_17, %c0_18, %c0_19] : memref<1x64x128xf32, #tpu.memory_space<vmem>>, vector<1x64x128xf32>
    %18 = vector.shape_cast %17 : vector<1x64x128xf32> to vector<64x128xf32>
    %19 = vector.shape_cast %16 : vector<64x128xf32> to vector<1x64x128xf32>
    tpu.vector_store %arg8[%c0_17, %c0_18, %c0_19], %19 {strides = array<i32>} : memref<1x64x128xf32, #tpu.memory_space<vmem>>, vector<1x64x128xf32>,
    return
  }
  func.func @transform_0(%arg0: i32) -> (i32, i32, i32) {
    %c0_i32 = arith.constant 0 : i32
    %c0_i32_0 = arith.constant 0 : i32
    %c0_i32_1 = arith.constant 0 : i32
    return %arg0, %c0_i32, %c0_i32_0 : i32, i32, i32
  }
  func.func @transform_1(%arg0: i32) -> (i32, i32, i32) {
    %c0_i32 = arith.constant 0 : i32
    %c0_i32_0 = arith.constant 0 : i32
    %c0_i32_1 = arith.constant 0 : i32
    return %arg0, %c0_i32, %c0_i32_0 : i32, i32, i32
  }
  func.func @transform_2(%arg0: i32) -> (i32, i32) {
    %c0_i32 = arith.constant 0 : i32
    %c0_i32_0 = arith.constant 0 : i32
    %c0_i32_1 = arith.constant 0 : i32
    return %c0_i32, %c0_i32_0 : i32, i32
  }
  func.func @transform_3(%arg0: i32) -> (i32, i32) {
    %c0_i32 = arith.constant 0 : i32
    %c0_i32_0 = arith.constant 0 : i32
    %c0_i32_1 = arith.constant 0 : i32
    return %c0_i32, %c0_i32_0 : i32, i32
  }
  func.func @transform_4(%arg0: i32) -> (i32, i32) {
    %c0_i32 = arith.constant 0 : i32
    %c0_i32_0 = arith.constant 0 : i32
    %c0_i32_1 = arith.constant 0 : i32
    return %c0_i32, %c0_i32_0 : i32, i32
  }
  func.func @transform_5(%arg0: i32) -> (i32, i32) {
    %c0_i32 = arith.constant 0 : i32
    %c0_i32_0 = arith.constant 0 : i32
    %c0_i32_1 = arith.constant 0 : i32
    return %c0_i32, %c0_i32_0 : i32, i32
  }
  func.func @transform_6(%arg0: i32) -> (i32, i32) {
    %c0_i32 = arith.constant 0 : i32
    %c0_i32_0 = arith.constant 0 : i32
    %c0_i32_1 = arith.constant 0 : i32
    return %c0_i32, %c0_i32_0 : i32, i32
  }
  func.func @transform_7(%arg0: i32) -> (i32, i32, i32) {
    %c0_i32 = arith.constant 0 : i32
    %c0_i32_0 = arith.constant 0 : i32
    %c0_i32_1 = arith.constant 0 : i32
    return %arg0, %c0_i32, %c0_i32_0 : i32, i32, i32
  }
}

</mosaic_0001>

<llo_original>
// kernel: _lambda_.6
$region0: #{_lambda_.6}
  #allocation0 [shape = 'u32[]', space=smem, size = 0x4, offset = 0x4, fixed_abs, tag = 'smem constant byte address 0x4 - core index']
  #allocation1 [shape = 'u32[72,128]{1,0:T(1,128)}', space=vmem, size = 0x9000, scoped, tag = 'internal scratch']
  %s0 = inlined_call_operand.vmem [shape: f32[2,256,27], index: 0, kind: input, shape index: {}]
  %s1 = inlined_call_operand.vmem [shape: f32[27,128], index: 1, kind: input, shape index: {}]
  %s2 = inlined_call_operand.vmem [shape: f32[1,128], index: 2, kind: input, shape index: {}]
  %s3 = inlined_call_operand.vmem [shape: f32[1,128], index: 3, kind: input, shape index: {}]
  %s4 = inlined_call_operand.vmem [shape: f32[2,256,128], index: 4, kind: output, shape index: {}]
  %s5 = sld [smem:[#allocation0]]
  $region49: #{_lambda_.6} parent=0
    _
  %s7 = ssub.s32 1, %s5
  %s8 = scalar_select 0, %s7, %s5
  loop: start=0, step=1, limit=4
  $region2: #{_lambda_.6} parent=0 // loop_pre_header
    _
  $region3: #{_lambda_.6} parent=0 // loop_header
    %s10 = sphi 0, %s14
    %p11 = scmp.ge.s32.totalorder %s10, 4
    %s17 = sphi 0, %s29
    %s18 = sphi 0, %s25
    %s19 = sphi 0, %s17
    %s20 = sphi 0, %s18
    %s21 = sphi 0, %s19
    %s22 = sphi 0, %s20
    %s34 = sphi 0, %s36
    %s37 = sphi 0, %s34
    %s38 = sphi 0, %s37
    %s54 = sphi 0, %s38
    %s58 = sphi 0, %s58
    %s60 = sphi 0, %s58
    %s61 = sphi 0, %s60
    %s75 = sphi 0, %s61
    %s79 = sphi 0, %s79
    %s81 = sphi 0, %s79
    %s82 = sphi 0, %s81
    %s96 = sphi 0, %s82
    %s100 = sphi 0, %s100
    %s102 = sphi 0, %s100
    %s103 = sphi 0, %s102
    %s117 = sphi 0, %s103
    %s125 = sphi 0, %s127
    %s128 = sphi 0, %s125
    %s129 = sphi 0, %s128
    %s145 = sphi 0, %s129
  $region4: #{_lambda_.6} parent=0 // loop_header_branch
    %13 = sbr.rel (%p11) target = $region8
  $region5: #{_lambda_.6} parent=0 // loop_body
    %s15 = ssub.s32 %s10, 1
    %s16 = ssub.s32 %s10, 2
    %s23 = sadd.s32 1, %s18
    %p24 = scmp.ge.s32.totalorder %s23, 1
    %s25 = scalar_select %p24, 0, %s23
    %s26 = sadd.s32 1, %s17
    %s27 = scalar_select %p24, %s26, %s17
    %p28 = scmp.ge.s32.totalorder %s27, 2
    %s29 = scalar_select %p28, 0, %s27
    %s30 = ssub.s32 %s17, %s29
    %s31 = ssub.s32 %s18, %s25
    %s32 = sor.u32 %s30, %s31
    %p33 = scmp.eq.s32.totalorder %s32, 0
    %s35 = sadd.s32 %s34, 1
    %s36 = scalar_select %p33, %s34, %s35
    %p39 = pneg %p33
    %p40 = scmp.eq.s32.totalorder %s10, 1
    %p41 = por %p39, %p40
    %p42 = scmp.ne.s32.totalorder %s34, %s37
    %p43 = scmp.eq.s32.totalorder %s10, 0
    %p44 = por %p42, %p43
    %p45 = scmp.ne.s32.totalorder %s34, %s37
    %p46 = scmp.eq.s32.totalorder %s15, 1
    %p47 = por %p45, %p46
    %p48 = scmp.ne.s32.totalorder %s37, %s38
    %p49 = scmp.eq.s32.totalorder %s15, 0
    %p50 = por %p48, %p49
    %p51 = scmp.ne.s32.totalorder %s37, %s38
    %p52 = scmp.eq.s32.totalorder %s16, 1
    %p53 = por %p51, %p52
    %p55 = scmp.ne.s32.totalorder %s38, %s54
    %p56 = scmp.eq.s32.totalorder %s16, 0
    %p57 = por %p55, %p56
    %s59 = sadd.s32 %s58, 1
    %p62 = scmp.eq.s32.totalorder %s10, 1
    %p63 = scmp.ne.s32.totalorder %s58, %s60
    %p64 = scmp.eq.s32.totalorder %s10, 0
    %p65 = por %p63, %p64
    %p66 = scmp.ne.s32.totalorder %s58, %s60
    %p67 = scmp.eq.s32.totalorder %s15, 1
    %p68 = por %p66, %p67
    %p69 = scmp.ne.s32.totalorder %s60, %s61
    %p70 = scmp.eq.s32.totalorder %s15, 0
    %p71 = por %p69, %p70
    %p72 = scmp.ne.s32.totalorder %s60, %s61
    %p73 = scmp.eq.s32.totalorder %s16, 1
    %p74 = por %p72, %p73
    %p76 = scmp.ne.s32.totalorder %s61, %s75
    %p77 = scmp.eq.s32.totalorder %s16, 0
    %p78 = por %p76, %p77
    %s80 = sadd.s32 %s79, 1
    %p83 = scmp.eq.s32.totalorder %s10, 1
    %p84 = scmp.ne.s32.totalorder %s79, %s81
    %p85 = scmp.eq.s32.totalorder %s10, 0
    %p86 = por %p84, %p85
    %p87 = scmp.ne.s32.totalorder %s79, %s81
    %p88 = scmp.eq.s32.totalorder %s15, 1
    %p89 = por %p87, %p88
    %p90 = scmp.ne.s32.totalorder %s81, %s82
    %p91 = scmp.eq.s32.totalorder %s15, 0
    %p92 = por %p90, %p91
    %p93 = scmp.ne.s32.totalorder %s81, %s82
    %p94 = scmp.eq.s32.totalorder %s16, 1
    %p95 = por %p93, %p94
    %p97 = scmp.ne.s32.totalorder %s82, %s96
    %p98 = scmp.eq.s32.totalorder %s16, 0
    %p99 = por %p97, %p98
    %s101 = sadd.s32 %s100, 1
    %p104 = scmp.eq.s32.totalorder %s10, 1
    %p105 = scmp.ne.s32.totalorder %s100, %s102
    %p106 = scmp.eq.s32.totalorder %s10, 0
    %p107 = por %p105, %p106
    %p108 = scmp.ne.s32.totalorder %s100, %s102
    %p109 = scmp.eq.s32.totalorder %s15, 1
    %p110 = por %p108, %p109
    %p111 = scmp.ne.s32.totalorder %s102, %s103
    %p112 = scmp.eq.s32.totalorder %s15, 0
    %p113 = por %p111, %p112
    %p114 = scmp.ne.s32.totalorder %s102, %s103
    %p115 = scmp.eq.s32.totalorder %s16, 1
    %p116 = por %p114, %p115
    %p118 = scmp.ne.s32.totalorder %s103, %s117
    %p119 = scmp.eq.s32.totalorder %s16, 0
    %p120 = por %p118, %p119
    %s121 = ssub.s32 %s17, %s29
    %s122 = ssub.s32 %s18, %s25
    %s123 = sor.u32 %s121, %s122
    %p124 = scmp.eq.s32.totalorder %s123, 0
    %s126 = sadd.s32 %s125, 1
    %s127 = scalar_select %p124, %s125, %s126
    %p130 = pneg %p124
    %p131 = scmp.eq.s32.totalorder %s10, 1
    %p132 = por %p130, %p131
    %p133 = scmp.ne.s32.totalorder %s125, %s128
    %p134 = scmp.eq.s32.totalorder %s10, 0
    %p135 = por %p133, %p134
    %p136 = scmp.ne.s32.totalorder %s125, %s128
    %p137 = scmp.eq.s32.totalorder %s15, 1
    %p138 = por %p136, %p137
    %p139 = scmp.ne.s32.totalorder %s128, %s129
    %p140 = scmp.eq.s32.totalorder %s15, 0
    %p141 = por %p139, %p140
    %p142 = scmp.ne.s32.totalorder %s128, %s129
    %p143 = scmp.eq.s32.totalorder %s16, 1
    %p144 = por %p142, %p143
    %p146 = scmp.ne.s32.totalorder %s129, %s145
    %p147 = scmp.eq.s32.totalorder %s16, 0
    %p148 = por %p146, %p147
    %p149 = scmp.le.s32.totalorder 1, %s10
    %p150 = scmp.lt.s32.totalorder %s10, 3
    %p151 = pnand %p149, %p150
    %p152 = pneg %p151
    // Predicated region
    $region9: #{_lambda_.6} parent=5 // pred_check
      _
    $region10: #{_lambda_.6} parent=5 // pred_check_branch
      %154 = sbr.rel (%p151) target = $region12
    $region11: #{_lambda_.6} parent=5 // pred_region
      %s155 = ssub.s32 %s10, 1
      // Predicated region
      $region13: #{_lambda_.6} parent=11 // pred_check
        %p156 = pneg %p71
      $region14: #{_lambda_.6} parent=11 // pred_check_branch
        %158 = sbr.rel (%p156) target = $region16
      $region15: #{_lambda_.6} parent=11 // pred_region
        _
      $region16: #{_lambda_.6} parent=11 // pred_fallthru
        _
      // Predicated region
      $region17: #{_lambda_.6} parent=11 // pred_check
        %p159 = pneg %p92
      $region18: #{_lambda_.6} parent=11 // pred_check_branch
        %161 = sbr.rel (%p159) target = $region20
      $region19: #{_lambda_.6} parent=11 // pred_region
        _
      $region20: #{_lambda_.6} parent=11 // pred_fallthru
        _
      // Predicated region
      $region21: #{_lambda_.6} parent=11 // pred_check
        %p162 = pneg %p113
      $region22: #{_lambda_.6} parent=11 // pred_check_branch
        %164 = sbr.rel (%p162) target = $region24
      $region23: #{_lambda_.6} parent=11 // pred_region
        _
      $region24: #{_lambda_.6} parent=11 // pred_fallthru
        _
    $region12: #{_lambda_.6} parent=5 // pred_fallthru
      _
    %p165 = scmp.lt.s32.totalorder %s10, 2
    // Predicated region
    $region25: #{_lambda_.6} parent=5 // pred_check
      %p166 = pneg %p165
    $region26: #{_lambda_.6} parent=5 // pred_check_branch
      %168 = sbr.rel (%p166) target = $region28
    $region27: #{_lambda_.6} parent=5 // pred_region
      // Predicated region
      $region29: #{_lambda_.6} parent=27 // pred_check
        %p169 = pneg %p44
      $region30: #{_lambda_.6} parent=27 // pred_check_branch
        %171 = sbr.rel (%p169) target = $region32
      $region31: #{_lambda_.6} parent=27 // pred_region
        %s172 = smul.u32 32, %s18
        %p173 = scmp.lt.s32.totalorder %s17, 1
        %s174 = scalar_select %p173, %s17, 1
        %p175 = scmp.lt.s32.totalorder %s172, 31
        %s176 = scalar_select %p175, %s172, 31
        %s177 = smul.addr %s174, 32
        %s178 = sadd.s32 %s176, %s177
        %s179 = smul.addr %s178, 8
        %s180 = scalar_lea.vmem %s0, %s179
        %s181 = smul.u32 32, %s18
      $region32: #{_lambda_.6} parent=27 // pred_fallthru
        _
    $region28: #{_lambda_.6} parent=5 // pred_fallthru
      _
    %p182 = scmp.le.s32.totalorder 1, %s10
    %p183 = scmp.lt.s32.totalorder %s10, 3
    %p184 = pnand %p182, %p183
    %p185 = pneg %p184
    // Predicated region
    $region33: #{_lambda_.6} parent=5 // pred_check
      _
    $region34: #{_lambda_.6} parent=5 // pred_check_branch
      %187 = sbr.rel (%p184) target = $region36
    $region35: #{_lambda_.6} parent=5 // pred_region
      %s188 = ssub.s32 %s10, 1
      %s189 = smul.u32 32, %s20
      %p190 = scmp.lt.s32.totalorder %s19, 1
      %s191 = scalar_select %p190, %s19, 1
      %p192 = scmp.lt.s32.totalorder %s189, 31
      %s193 = scalar_select %p192, %s189, 31
      %s194 = smul.addr %s191, 32
      %s195 = sadd.s32 %s193, %s194
      %s196 = smul.addr %s195, 8
      %s197 = scalar_lea.vmem %s0, %s196
      %p198 = pneg %p50
      %p199 = pneg %p47
      %p200 = pneg %p71
      %p201 = pneg %p68
      %p202 = pneg %p92
      %p203 = pneg %p89
      %p204 = pneg %p113
      %p205 = pneg %p110
      %p206 = pneg %p141
      %p207 = pneg %p138
      %s208 = smul.u32 32, %s20
      %p209 = scmp.lt.s32.totalorder %s19, 1
      %s210 = scalar_select %p209, %s19, 1
      %p211 = scmp.lt.s32.totalorder %s208, 31
      %s212 = scalar_select %p211, %s208, 31
      %s213 = smul.addr %s210, 32
      %s214 = sadd.s32 %s212, %s213
      %s215 = smul.addr %s214, 8
      %s216 = scalar_lea.vmem %s4, %s215
      %s217 = smul.u32 32, %s20
      %p218 = scmp.lt.s32.totalorder %s19, 1
      %s219 = scalar_select %p218, %s19, 1
      %p220 = scmp.lt.s32.totalorder %s217, 31
      %s221 = scalar_select %p220, %s217, 31
      %s222 = smul.addr %s219, 32
      %s223 = sadd.s32 %s221, %s222
      %s224 = smul.addr %s223, 8
      %s225 = scalar_lea.vmem %s0, %s224
      %s226 = smul.u32 32, %s20
      %s227 = smul.u32 32, %s20
      %p228 = scmp.lt.s32.totalorder %s19, 1
      %s229 = scalar_select %p228, %s19, 1
      %p230 = scmp.lt.s32.totalorder %s227, 31
      %s231 = scalar_select %p230, %s227, 31
      %s232 = smul.addr %s229, 32
      %s233 = sadd.s32 %s231, %s232
      %s234 = smul.addr %s233, 8
      %s235 = scalar_lea.vmem %s4, %s234
      %s236 = smul.u32 32, %s20
      %v237 = vld [vmem:[%s225] sm:$0xff]
      %v238 = vld [vmem:[%s225 + $0x8] sm:$0xff]
      %v239 = vld [vmem:[%s225 + $0x10] sm:$0xff]
      %v240 = vld [vmem:[%s225 + $0x18] sm:$0xff]
      %v241 = vld [vmem:[%s225 + $0x20] sm:$0xff]
      %v242 = vld [vmem:[%s225 + $0x28] sm:$0xff]
      %v243 = vld [vmem:[%s225 + $0x30] sm:$0xff]
      %v244 = vld [vmem:[%s225 + $0x38] sm:$0xff]
      %v245 = vld [vmem:[%s225 + $0x40] sm:$0xff]
      %v246 = vld [vmem:[%s225 + $0x48] sm:$0xff]
      %v247 = vld [vmem:[%s225 + $0x50] sm:$0xff]
      %v248 = vld [vmem:[%s225 + $0x58] sm:$0xff]
      %v249 = vld [vmem:[%s225 + $0x60] sm:$0xff]
      %v250 = vld [vmem:[%s225 + $0x68] sm:$0xff]
      %v251 = vld [vmem:[%s225 + $0x70] sm:$0xff]
      %v252 = vld [vmem:[%s225 + $0x78] sm:$0xff]
      %v253 = vld [vmem:[%s225 + $0x80] sm:$0xff]
      %v254 = vld [vmem:[%s225 + $0x88] sm:$0xff]
      %v255 = vld [vmem:[%s225 + $0x90] sm:$0xff]
      %v256 = vld [vmem:[%s225 + $0x98] sm:$0xff]
      %v257 = vld [vmem:[%s225 + $0xa0] sm:$0xff]
      %v258 = vld [vmem:[%s225 + $0xa8] sm:$0xff]
      %v259 = vld [vmem:[%s225 + $0xb0] sm:$0xff]
      %v260 = vld [vmem:[%s225 + $0xb8] sm:$0xff]
      %v261 = vld [vmem:[%s225 + $0xc0] sm:$0xff]
      %v262 = vld [vmem:[%s225 + $0xc8] sm:$0xff]
      %v263 = vld [vmem:[%s225 + $0xd0] sm:$0xff]
      %v264 = vld [vmem:[%s225 + $0xd8] sm:$0xff]
      %v265 = vld [vmem:[%s225 + $0xe0] sm:$0xff]
      %v266 = vld [vmem:[%s225 + $0xe8] sm:$0xff]
      %v267 = vld [vmem:[%s225 + $0xf0] sm:$0xff]
      %v268 = vld [vmem:[%s225 + $0xf8] sm:$0xff]
      %v269 = vld [vmem:[%s1] sm:$0xff]
      %v270 = vld [vmem:[%s1 + $0x8] sm:$0xff]
      %v271 = vld [vmem:[%s1 + $0x10] sm:$0xff]
      %v272 = vld [vmem:[%s1 + $0x18] sm:$0x7]
      %vm273 = vcmask 220160
      %v275 = vsel %vm273, %v237, 0
      %v278 = vsel %vm273, %v238, 0
      %v281 = vsel %vm273, %v239, 0
      %v284 = vsel %vm273, %v240, 0
      %v287 = vsel %vm273, %v241, 0
      %v290 = vsel %vm273, %v242, 0
      %v293 = vsel %vm273, %v243, 0
      %v296 = vsel %vm273, %v244, 0
      %v299 = vsel %vm273, %v245, 0
      %v302 = vsel %vm273, %v246, 0
      %v305 = vsel %vm273, %v247, 0
      %v308 = vsel %vm273, %v248, 0
      %v311 = vsel %vm273, %v249, 0
      %v314 = vsel %vm273, %v250, 0
      %v317 = vsel %vm273, %v251, 0
      %v320 = vsel %vm273, %v252, 0
      %v323 = vsel %vm273, %v253, 0
      %v326 = vsel %vm273, %v254, 0
      %v329 = vsel %vm273, %v255, 0
      %v332 = vsel %vm273, %v256, 0
      %v335 = vsel %vm273, %v257, 0
      %v338 = vsel %vm273, %v258, 0
      %v341 = vsel %vm273, %v259, 0
      %v344 = vsel %vm273, %v260, 0
      %v347 = vsel %vm273, %v261, 0
      %v350 = vsel %vm273, %v262, 0
      %v353 = vsel %vm273, %v263, 0
      %v356 = vsel %vm273, %v264, 0
      %v359 = vsel %vm273, %v265, 0
      %v362 = vsel %vm273, %v266, 0
      %v365 = vsel %vm273, %v267, 0
      %v368 = vsel %vm273, %v268, 0
      %vm370 = vcmask 1042432
      %v372 = vsel %vm370, %v272, 0
      %374 = vmatpush.msra.mxu0 0.0
      %375 = vmatpush.msra.mxu0 0.0
      %376 = vmatpush.msra.mxu0 0.0
      %377 = vmatpush.msra.mxu0 0.0
      %378 = vmatpush.msra.mxu0 0.0
      %379 = vmatpush.msra.mxu0 0.0
      %380 = vmatpush.msra.mxu0 0.0
      %381 = vmatpush.msra.mxu0 0.0
      %382 = vmatpush.msra.mxu0 0.0
      %383 = vmatpush.msra.mxu0 0.0
      %384 = vmatpush.msra.mxu0 0.0
      %385 = vmatpush.msra.mxu0 0.0
      %386 = vmatpush.msra.mxu0 %v372
      %387 = vmatpush.msra.mxu0 %v271
      %388 = vmatpush.msra.mxu0 %v270
      %389 = vmatpush.msra.mxu0 %v269
      %390 = vmatmul.f32.gmra.mxu0 %v275
      %v391 = vpop.f32.mrf.mxu0
      %v392 = vadd.f32 0.0, %v391
      %393 = vmatmul.f32.gmra.mxu0 %v278
      %v394 = vpop.f32.mrf.mxu0
      %v395 = vadd.f32 0.0, %v394
      %396 = vmatmul.f32.gmra.mxu0 %v281
      %v397 = vpop.f32.mrf.mxu0
      %v398 = vadd.f32 0.0, %v397
      %399 = vmatmul.f32.gmra.mxu0 %v284
      %v400 = vpop.f32.mrf.mxu0
      %v401 = vadd.f32 0.0, %v400
      %402 = vmatmul.f32.gmra.mxu0 %v287
      %v403 = vpop.f32.mrf.mxu0
      %v404 = vadd.f32 0.0, %v403
      %405 = vmatmul.f32.gmra.mxu0 %v290
      %v406 = vpop.f32.mrf.mxu0
      %v407 = vadd.f32 0.0, %v406
      %408 = vmatmul.f32.gmra.mxu0 %v293
      %v409 = vpop.f32.mrf.mxu0
      %v410 = vadd.f32 0.0, %v409
      %411 = vmatmul.f32.gmra.mxu0 %v296
      %v412 = vpop.f32.mrf.mxu0
      %v413 = vadd.f32 0.0, %v412
      %414 = vmatmul.f32.gmra.mxu0 %v299
      %v415 = vpop.f32.mrf.mxu0
      %v416 = vadd.f32 0.0, %v415
      %417 = vmatmul.f32.gmra.mxu0 %v302
      %v418 = vpop.f32.mrf.mxu0
      %v419 = vadd.f32 0.0, %v418
      %420 = vmatmul.f32.gmra.mxu0 %v305
      %v421 = vpop.f32.mrf.mxu0
      %v422 = vadd.f32 0.0, %v421
      %423 = vmatmul.f32.gmra.mxu0 %v308
      %v424 = vpop.f32.mrf.mxu0
      %v425 = vadd.f32 0.0, %v424
      %426 = vmatmul.f32.gmra.mxu0 %v311
      %v427 = vpop.f32.mrf.mxu0
      %v428 = vadd.f32 0.0, %v427
      %429 = vmatmul.f32.gmra.mxu0 %v314
      %v430 = vpop.f32.mrf.mxu0
      %v431 = vadd.f32 0.0, %v430
      %432 = vmatmul.f32.gmra.mxu0 %v317
      %v433 = vpop.f32.mrf.mxu0
      %v434 = vadd.f32 0.0, %v433
      %435 = vmatmul.f32.gmra.mxu0 %v320
      %v436 = vpop.f32.mrf.mxu0
      %v437 = vadd.f32 0.0, %v436
      %438 = vmatmul.f32.gmra.mxu0 %v323
      %v439 = vpop.f32.mrf.mxu0
      %v440 = vadd.f32 0.0, %v439
      %441 = vmatmul.f32.gmra.mxu0 %v326
      %v442 = vpop.f32.mrf.mxu0
      %v443 = vadd.f32 0.0, %v442
      %444 = vmatmul.f32.gmra.mxu0 %v329
      %v445 = vpop.f32.mrf.mxu0
      %v446 = vadd.f32 0.0, %v445
      %447 = vmatmul.f32.gmra.mxu0 %v332
      %v448 = vpop.f32.mrf.mxu0
      %v449 = vadd.f32 0.0, %v448
      %450 = vmatmul.f32.gmra.mxu0 %v335
      %v451 = vpop.f32.mrf.mxu0
      %v452 = vadd.f32 0.0, %v451
      %453 = vmatmul.f32.gmra.mxu0 %v338
      %v454 = vpop.f32.mrf.mxu0
      %v455 = vadd.f32 0.0, %v454
      %456 = vmatmul.f32.gmra.mxu0 %v341
      %v457 = vpop.f32.mrf.mxu0
      %v458 = vadd.f32 0.0, %v457
      %459 = vmatmul.f32.gmra.mxu0 %v344
      %v460 = vpop.f32.mrf.mxu0
      %v461 = vadd.f32 0.0, %v460
      %462 = vmatmul.f32.gmra.mxu0 %v347
      %v463 = vpop.f32.mrf.mxu0
      %v464 = vadd.f32 0.0, %v463
      %465 = vmatmul.f32.gmra.mxu0 %v350
      %v466 = vpop.f32.mrf.mxu0
      %v467 = vadd.f32 0.0, %v466
      %468 = vmatmul.f32.gmra.mxu0 %v353
      %v469 = vpop.f32.mrf.mxu0
      %v470 = vadd.f32 0.0, %v469
      %471 = vmatmul.f32.gmra.mxu0 %v356
      %v472 = vpop.f32.mrf.mxu0
      %v473 = vadd.f32 0.0, %v472
      %474 = vmatmul.f32.gmra.mxu0 %v359
      %v475 = vpop.f32.mrf.mxu0
      %v476 = vadd.f32 0.0, %v475
      %477 = vmatmul.f32.gmra.mxu0 %v362
      %v478 = vpop.f32.mrf.mxu0
      %v479 = vadd.f32 0.0, %v478
      %480 = vmatmul.f32.gmra.mxu0 %v365
      %v481 = vpop.f32.mrf.mxu0
      %v482 = vadd.f32 0.0, %v481
      %483 = vmatmul.f32.gmra.mxu0 %v368
      %v484 = vpop.f32.mrf.mxu0
      %v485 = vadd.f32 0.0, %v484
      %486 = vdwg.mxu0
      %v487 = vld [vmem:[%s2] sm:$0x1]
      %v489 = vperm.slane %v487, 0
      %v491 = vmul.f32 %v392, %v489
      %v492 = vmul.f32 %v395, %v489
      %v493 = vmul.f32 %v398, %v489
      %v494 = vmul.f32 %v401, %v489
      %v495 = vmul.f32 %v404, %v489
      %v496 = vmul.f32 %v407, %v489
      %v497 = vmul.f32 %v410, %v489
      %v498 = vmul.f32 %v413, %v489
      %v499 = vmul.f32 %v416, %v489
      %v500 = vmul.f32 %v419, %v489
      %v501 = vmul.f32 %v422, %v489
      %v502 = vmul.f32 %v425, %v489
      %v503 = vmul.f32 %v428, %v489
      %v504 = vmul.f32 %v431, %v489
      %v505 = vmul.f32 %v434, %v489
      %v506 = vmul.f32 %v437, %v489
      %v507 = vmul.f32 %v440, %v489
      %v508 = vmul.f32 %v443, %v489
      %v509 = vmul.f32 %v446, %v489
      %v510 = vmul.f32 %v449, %v489
      %v511 = vmul.f32 %v452, %v489
      %v512 = vmul.f32 %v455, %v489
      %v513 = vmul.f32 %v458, %v489
      %v514 = vmul.f32 %v461, %v489
      %v515 = vmul.f32 %v464, %v489
      %v516 = vmul.f32 %v467, %v489
      %v517 = vmul.f32 %v470, %v489
      %v518 = vmul.f32 %v473, %v489
      %v519 = vmul.f32 %v476, %v489
      %v520 = vmul.f32 %v479, %v489
      %v521 = vmul.f32 %v482, %v489
      %v522 = vmul.f32 %v485, %v489
      %v523 = vld [vmem:[%s3] sm:$0x1]
      %v525 = vperm.slane %v523, 0
      %v527 = vadd.f32 %v491, %v525
      %v528 = vadd.f32 %v492, %v525
      %v529 = vadd.f32 %v493, %v525
      %v530 = vadd.f32 %v494, %v525
      %v531 = vadd.f32 %v495, %v525
      %v532 = vadd.f32 %v496, %v525
      %v533 = vadd.f32 %v497, %v525
      %v534 = vadd.f32 %v498, %v525
      %v535 = vadd.f32 %v499, %v525
      %v536 = vadd.f32 %v500, %v525
      %v537 = vadd.f32 %v501, %v525
      %v538 = vadd.f32 %v502, %v525
      %v539 = vadd.f32 %v503, %v525
      %v540 = vadd.f32 %v504, %v525
      %v541 = vadd.f32 %v505, %v525
      %v542 = vadd.f32 %v506, %v525
      %v543 = vadd.f32 %v507, %v525
      %v544 = vadd.f32 %v508, %v525
      %v545 = vadd.f32 %v509, %v525
      %v546 = vadd.f32 %v510, %v525
      %v547 = vadd.f32 %v511, %v525
      %v548 = vadd.f32 %v512, %v525
      %v549 = vadd.f32 %v513, %v525
      %v550 = vadd.f32 %v514, %v525
      %v551 = vadd.f32 %v515, %v525
      %v552 = vadd.f32 %v516, %v525
      %v553 = vadd.f32 %v517, %v525
      %v554 = vadd.f32 %v518, %v525
      %v555 = vadd.f32 %v519, %v525
      %v556 = vadd.f32 %v520, %v525
      %v557 = vadd.f32 %v521, %v525
      %v558 = vadd.f32 %v522, %v525
      %v559 = vmax.f32 %v527, 0.0
      %v560 = vmax.f32 %v528, 0.0
      %v561 = vmax.f32 %v529, 0.0
      %v562 = vmax.f32 %v530, 0.0
      %v563 = vmax.f32 %v531, 0.0
      %v564 = vmax.f32 %v532, 0.0
      %v565 = vmax.f32 %v533, 0.0
      %v566 = vmax.f32 %v534, 0.0
      %v567 = vmax.f32 %v535, 0.0
      %v568 = vmax.f32 %v536, 0.0
      %v569 = vmax.f32 %v537, 0.0
      %v570 = vmax.f32 %v538, 0.0
      %v571 = vmax.f32 %v539, 0.0
      %v572 = vmax.f32 %v540, 0.0
      %v573 = vmax.f32 %v541, 0.0
      %v574 = vmax.f32 %v542, 0.0
      %v575 = vmax.f32 %v543, 0.0
      %v576 = vmax.f32 %v544, 0.0
      %v577 = vmax.f32 %v545, 0.0
      %v578 = vmax.f32 %v546, 0.0
      %v579 = vmax.f32 %v547, 0.0
      %v580 = vmax.f32 %v548, 0.0
      %v581 = vmax.f32 %v549, 0.0
      %v582 = vmax.f32 %v550, 0.0
      %v583 = vmax.f32 %v551, 0.0
      %v584 = vmax.f32 %v552, 0.0
      %v585 = vmax.f32 %v553, 0.0
      %v586 = vmax.f32 %v554, 0.0
      %v587 = vmax.f32 %v555, 0.0
      %v588 = vmax.f32 %v556, 0.0
      %v589 = vmax.f32 %v557, 0.0
      %v590 = vmax.f32 %v558, 0.0
      %591 = vst [vmem:[%s235] sm:$0xff] %v559
      %592 = vst [vmem:[%s235 + $0x8] sm:$0xff] %v560
      %593 = vst [vmem:[%s235 + $0x10] sm:$0xff] %v561
      %594 = vst [vmem:[%s235 + $0x18] sm:$0xff] %v562
      %595 = vst [vmem:[%s235 + $0x20] sm:$0xff] %v563
      %596 = vst [vmem:[%s235 + $0x28] sm:$0xff] %v564
      %597 = vst [vmem:[%s235 + $0x30] sm:$0xff] %v565
      %598 = vst [vmem:[%s235 + $0x38] sm:$0xff] %v566
      %599 = vst [vmem:[%s235 + $0x40] sm:$0xff] %v567
      %600 = vst [vmem:[%s235 + $0x48] sm:$0xff] %v568
      %601 = vst [vmem:[%s235 + $0x50] sm:$0xff] %v569
      %602 = vst [vmem:[%s235 + $0x58] sm:$0xff] %v570
      %603 = vst [vmem:[%s235 + $0x60] sm:$0xff] %v571
      %604 = vst [vmem:[%s235 + $0x68] sm:$0xff] %v572
      %605 = vst [vmem:[%s235 + $0x70] sm:$0xff] %v573
      %606 = vst [vmem:[%s235 + $0x78] sm:$0xff] %v574
      %607 = vst [vmem:[%s235 + $0x80] sm:$0xff] %v575
      %608 = vst [vmem:[%s235 + $0x88] sm:$0xff] %v576
      %609 = vst [vmem:[%s235 + $0x90] sm:$0xff] %v577
      %610 = vst [vmem:[%s235 + $0x98] sm:$0xff] %v578
      %611 = vst [vmem:[%s235 + $0xa0] sm:$0xff] %v579
      %612 = vst [vmem:[%s235 + $0xa8] sm:$0xff] %v580
      %613 = vst [vmem:[%s235 + $0xb0] sm:$0xff] %v581
      %614 = vst [vmem:[%s235 + $0xb8] sm:$0xff] %v582
      %615 = vst [vmem:[%s235 + $0xc0] sm:$0xff] %v583
      %616 = vst [vmem:[%s235 + $0xc8] sm:$0xff] %v584
      %617 = vst [vmem:[%s235 + $0xd0] sm:$0xff] %v585
      %618 = vst [vmem:[%s235 + $0xd8] sm:$0xff] %v586
      %619 = vst [vmem:[%s235 + $0xe0] sm:$0xff] %v587
      %620 = vst [vmem:[%s235 + $0xe8] sm:$0xff] %v588
      %621 = vst [vmem:[%s235 + $0xf0] sm:$0xff] %v589
      %622 = vst [vmem:[%s235 + $0xf8] sm:$0xff] %v590
      %s623 = smul.u32 32, %s20
      %p624 = scmp.lt.s32.totalorder %s19, 1
      %s625 = scalar_select %p624, %s19, 1
      %p626 = scmp.lt.s32.totalorder %s623, 31
      %s627 = scalar_select %p626, %s623, 31
      %s628 = smul.addr %s625, 32
      %s629 = sadd.s32 %s627, %s628
      %s630 = smul.addr %s629, 8
      %s631 = scalar_lea.vmem %s4, %s630
      // Predicated region
      $region37: #{_lambda_.6} parent=35 // pred_check
        %p632 = pneg %p138
      $region38: #{_lambda_.6} parent=35 // pred_check_branch
        %634 = sbr.rel (%p632) target = $region40
      $region39: #{_lambda_.6} parent=35 // pred_region
        %s635 = smul.u32 32, %s20
      $region40: #{_lambda_.6} parent=35 // pred_fallthru
        _
    $region36: #{_lambda_.6} parent=5 // pred_fallthru
      _
    %p636 = scmp.le.s32.totalorder 2, %s10
    // Predicated region
    $region41: #{_lambda_.6} parent=5 // pred_check
      %p637 = pneg %p636
    $region42: #{_lambda_.6} parent=5 // pred_check_branch
      %639 = sbr.rel (%p637) target = $region44
    $region43: #{_lambda_.6} parent=5 // pred_region
      %s640 = ssub.s32 %s10, 2
      // Predicated region
      $region45: #{_lambda_.6} parent=43 // pred_check
        %p641 = pneg %p144
      $region46: #{_lambda_.6} parent=43 // pred_check_branch
        %643 = sbr.rel (%p641) target = $region48
      $region47: #{_lambda_.6} parent=43 // pred_region
        %s644 = smul.u32 32, %s22
        %p645 = scmp.lt.s32.totalorder %s21, 1
        %s646 = scalar_select %p645, %s21, 1
        %p647 = scmp.lt.s32.totalorder %s644, 31
        %s648 = scalar_select %p647, %s644, 31
        %s649 = smul.addr %s646, 32
        %s650 = sadd.s32 %s648, %s649
        %s651 = smul.addr %s650, 8
        %s652 = scalar_lea.vmem %s4, %s651
      $region48: #{_lambda_.6} parent=43 // pred_fallthru
        _
    $region44: #{_lambda_.6} parent=5 // pred_fallthru
      _
  $region6: #{_lambda_.6} parent=0 // loop_footer
    %s14 = sadd.s32 1, %s10
  $region7: #{_lambda_.6} parent=0 // loop_footer_branch
    %9 = sbr.rel target = $region3
  $region8: #{_lambda_.6} parent=0 // loop_exit
    _

// kernel: _lambda_.7
$region0: #{_lambda_.7}
  #allocation0 [shape = 'u32[]', space=smem, size = 0x4, offset = 0x4, fixed_abs, tag = 'smem constant byte address 0x4 - core index']
  #allocation1 [shape = 'u32[72,128]{1,0:T(1,128)}', space=vmem, size = 0x9000, scoped, tag = 'internal scratch']
  %s0 = inlined_call_operand.vmem [shape: f32[2,9,64,128], index: 0, kind: input, shape index: {}]
  %s1 = inlined_call_operand.vmem [shape: f32[2,64,128], index: 1, kind: output, shape index: {}]
  %s2 = sld [smem:[#allocation0]]
  $region37: #{_lambda_.7} parent=0
    _
  %s4 = ssub.s32 1, %s2
  %s5 = scalar_select 0, %s4, %s2
  loop: start=0, step=1, limit=4
  $region2: #{_lambda_.7} parent=0 // loop_pre_header
    _
  $region3: #{_lambda_.7} parent=0 // loop_header
    %s7 = sphi 0, %s11
    %p8 = scmp.ge.s32.totalorder %s7, 4
    %s17 = sphi 0, %s19
    %s20 = sphi 0, %s17
    %s21 = sphi 0, %s20
    %s37 = sphi 0, %s21
    %s43 = sphi 0, %s45
    %s46 = sphi 0, %s43
    %s47 = sphi 0, %s46
    %s63 = sphi 0, %s47
  $region4: #{_lambda_.7} parent=0 // loop_header_branch
    %10 = sbr.rel (%p8) target = $region8
  $region5: #{_lambda_.7} parent=0 // loop_body
    %s12 = ssub.s32 %s7, 1
    %s13 = ssub.s32 %s7, 2
    %s14 = sadd.s32 %s7, 1
    %s15 = ssub.s32 %s7, %s14
    %p16 = scmp.eq.s32.totalorder %s15, 0
    %s18 = sadd.s32 %s17, 1
    %s19 = scalar_select %p16, %s17, %s18
    %p22 = pneg %p16
    %p23 = scmp.eq.s32.totalorder %s7, 1
    %p24 = por %p22, %p23
    %p25 = scmp.ne.s32.totalorder %s17, %s20
    %p26 = scmp.eq.s32.totalorder %s7, 0
    %p27 = por %p25, %p26
    %p28 = scmp.ne.s32.totalorder %s17, %s20
    %p29 = scmp.eq.s32.totalorder %s12, 1
    %p30 = por %p28, %p29
    %p31 = scmp.ne.s32.totalorder %s20, %s21
    %p32 = scmp.eq.s32.totalorder %s12, 0
    %p33 = por %p31, %p32
    %p34 = scmp.ne.s32.totalorder %s20, %s21
    %p35 = scmp.eq.s32.totalorder %s13, 1
    %p36 = por %p34, %p35
    %p38 = scmp.ne.s32.totalorder %s21, %s37
    %p39 = scmp.eq.s32.totalorder %s13, 0
    %p40 = por %p38, %p39
    %s41 = ssub.s32 %s7, %s14
    %p42 = scmp.eq.s32.totalorder %s41, 0
    %s44 = sadd.s32 %s43, 1
    %s45 = scalar_select %p42, %s43, %s44
    %p48 = pneg %p42
    %p49 = scmp.eq.s32.totalorder %s7, 1
    %p50 = por %p48, %p49
    %p51 = scmp.ne.s32.totalorder %s43, %s46
    %p52 = scmp.eq.s32.totalorder %s7, 0
    %p53 = por %p51, %p52
    %p54 = scmp.ne.s32.totalorder %s43, %s46
    %p55 = scmp.eq.s32.totalorder %s12, 1
    %p56 = por %p54, %p55
    %p57 = scmp.ne.s32.totalorder %s46, %s47
    %p58 = scmp.eq.s32.totalorder %s12, 0
    %p59 = por %p57, %p58
    %p60 = scmp.ne.s32.totalorder %s46, %s47
    %p61 = scmp.eq.s32.totalorder %s13, 1
    %p62 = por %p60, %p61
    %p64 = scmp.ne.s32.totalorder %s47, %s63
    %p65 = scmp.eq.s32.totalorder %s13, 0
    %p66 = por %p64, %p65
    %p67 = scmp.le.s32.totalorder 1, %s7
    %p68 = scmp.lt.s32.totalorder %s7, 3
    %p69 = pnand %p67, %p68
    %p70 = pneg %p69
    // Predicated region
    $region9: #{_lambda_.7} parent=5 // pred_check
      _
    $region10: #{_lambda_.7} parent=5 // pred_check_branch
      %72 = sbr.rel (%p69) target = $region12
    $region11: #{_lambda_.7} parent=5 // pred_region
      %s73 = ssub.s32 %s7, 1
    $region12: #{_lambda_.7} parent=5 // pred_fallthru
      _
    %p74 = scmp.lt.s32.totalorder %s7, 2
    // Predicated region
    $region13: #{_lambda_.7} parent=5 // pred_check
      %p75 = pneg %p74
    $region14: #{_lambda_.7} parent=5 // pred_check_branch
      %77 = sbr.rel (%p75) target = $region16
    $region15: #{_lambda_.7} parent=5 // pred_region
      // Predicated region
      $region17: #{_lambda_.7} parent=15 // pred_check
        %p78 = pneg %p27
      $region18: #{_lambda_.7} parent=15 // pred_check_branch
        %80 = sbr.rel (%p78) target = $region20
      $region19: #{_lambda_.7} parent=15 // pred_region
        %p81 = scmp.lt.s32.totalorder %s7, 1
        %s82 = scalar_select %p81, %s7, 1
        %s83 = smul.addr %s82, 72
        %s84 = smul.addr %s83, 8
        %s85 = scalar_lea.vmem %s0, %s84
      $region20: #{_lambda_.7} parent=15 // pred_fallthru
        _
    $region16: #{_lambda_.7} parent=5 // pred_fallthru
      _
    %p86 = scmp.le.s32.totalorder 1, %s7
    %p87 = scmp.lt.s32.totalorder %s7, 3
    %p88 = pnand %p86, %p87
    %p89 = pneg %p88
    // Predicated region
    $region21: #{_lambda_.7} parent=5 // pred_check
      _
    $region22: #{_lambda_.7} parent=5 // pred_check_branch
      %91 = sbr.rel (%p88) target = $region24
    $region23: #{_lambda_.7} parent=5 // pred_region
      %s92 = ssub.s32 %s7, 1
      %p93 = scmp.lt.s32.totalorder %s12, 1
      %s94 = scalar_select %p93, %s12, 1
      %s95 = smul.addr %s94, 72
      %s96 = smul.addr %s95, 8
      %s97 = scalar_lea.vmem %s0, %s96
      %p98 = pneg %p33
      %p99 = pneg %p30
      %p100 = pneg %p59
      %p101 = pneg %p56
      %p102 = scmp.lt.s32.totalorder %s12, 1
      %s103 = scalar_select %p102, %s12, 1
      %s104 = smul.addr %s103, 8
      %s105 = smul.addr %s104, 8
      %s106 = scalar_lea.vmem %s1, %s105
      %p107 = scmp.lt.s32.totalorder %s12, 1
      %s108 = scalar_select %p107, %s12, 1
      %s109 = smul.addr %s108, 72
      %s110 = smul.addr %s109, 8
      %s111 = scalar_lea.vmem %s0, %s110
      %p112 = scmp.lt.s32.totalorder %s12, 1
      %s113 = scalar_select %p112, %s12, 1
      %s114 = smul.addr %s113, 8
      %s115 = smul.addr %s114, 8
      %s116 = scalar_lea.vmem %s1, %s115
      %v117 = vld [vmem:[%s111] sm:$0xff]
      %v118 = vld [vmem:[%s111 + $0x8] sm:$0xff]
      %v119 = vld [vmem:[%s111 + $0x10] sm:$0xff]
      %v120 = vld [vmem:[%s111 + $0x18] sm:$0xff]
      %v121 = vld [vmem:[%s111 + $0x20] sm:$0xff]
      %v122 = vld [vmem:[%s111 + $0x28] sm:$0xff]
      %v123 = vld [vmem:[%s111 + $0x30] sm:$0xff]
      %v124 = vld [vmem:[%s111 + $0x38] sm:$0xff]
      %v125 = vld [vmem:[%s111 + $0x40] sm:$0xff]
      %v126 = vld [vmem:[%s111 + $0x48] sm:$0xff]
      %v127 = vld [vmem:[%s111 + $0x50] sm:$0xff]
      %v128 = vld [vmem:[%s111 + $0x58] sm:$0xff]
      %v129 = vld [vmem:[%s111 + $0x60] sm:$0xff]
      %v130 = vld [vmem:[%s111 + $0x68] sm:$0xff]
      %v131 = vld [vmem:[%s111 + $0x70] sm:$0xff]
      %v132 = vld [vmem:[%s111 + $0x78] sm:$0xff]
      %v133 = vld [vmem:[%s111 + $0x80] sm:$0xff]
      %v134 = vld [vmem:[%s111 + $0x88] sm:$0xff]
      %v135 = vld [vmem:[%s111 + $0x90] sm:$0xff]
      %v136 = vld [vmem:[%s111 + $0x98] sm:$0xff]
      %v137 = vld [vmem:[%s111 + $0xa0] sm:$0xff]
      %v138 = vld [vmem:[%s111 + $0xa8] sm:$0xff]
      %v139 = vld [vmem:[%s111 + $0xb0] sm:$0xff]
      %v140 = vld [vmem:[%s111 + $0xb8] sm:$0xff]
      %v141 = vld [vmem:[%s111 + $0xc0] sm:$0xff]
      %v142 = vld [vmem:[%s111 + $0xc8] sm:$0xff]
      %v143 = vld [vmem:[%s111 + $0xd0] sm:$0xff]
      %v144 = vld [vmem:[%s111 + $0xd8] sm:$0xff]
      %v145 = vld [vmem:[%s111 + $0xe0] sm:$0xff]
      %v146 = vld [vmem:[%s111 + $0xe8] sm:$0xff]
      %v147 = vld [vmem:[%s111 + $0xf0] sm:$0xff]
      %v148 = vld [vmem:[%s111 + $0xf8] sm:$0xff]
      %v149 = vld [vmem:[%s111 + $0x100] sm:$0xff]
      %v150 = vld [vmem:[%s111 + $0x108] sm:$0xff]
      %v151 = vld [vmem:[%s111 + $0x110] sm:$0xff]
      %v152 = vld [vmem:[%s111 + $0x118] sm:$0xff]
      %v153 = vld [vmem:[%s111 + $0x120] sm:$0xff]
      %v154 = vld [vmem:[%s111 + $0x128] sm:$0xff]
      %v155 = vld [vmem:[%s111 + $0x130] sm:$0xff]
      %v156 = vld [vmem:[%s111 + $0x138] sm:$0xff]
      %v157 = vld [vmem:[%s111 + $0x140] sm:$0xff]
      %v158 = vld [vmem:[%s111 + $0x148] sm:$0xff]
      %v159 = vld [vmem:[%s111 + $0x150] sm:$0xff]
      %v160 = vld [vmem:[%s111 + $0x158] sm:$0xff]
      %v161 = vld [vmem:[%s111 + $0x160] sm:$0xff]
      %v162 = vld [vmem:[%s111 + $0x168] sm:$0xff]
      %v163 = vld [vmem:[%s111 + $0x170] sm:$0xff]
      %v164 = vld [vmem:[%s111 + $0x178] sm:$0xff]
      %v165 = vld [vmem:[%s111 + $0x180] sm:$0xff]
      %v166 = vld [vmem:[%s111 + $0x188] sm:$0xff]
      %v167 = vld [vmem:[%s111 + $0x190] sm:$0xff]
      %v168 = vld [vmem:[%s111 + $0x198] sm:$0xff]
      %v169 = vld [vmem:[%s111 + $0x1a0] sm:$0xff]
      %v170 = vld [vmem:[%s111 + $0x1a8] sm:$0xff]
      %v171 = vld [vmem:[%s111 + $0x1b0] sm:$0xff]
      %v172 = vld [vmem:[%s111 + $0x1b8] sm:$0xff]
      %v173 = vld [vmem:[%s111 + $0x1c0] sm:$0xff]
      %v174 = vld [vmem:[%s111 + $0x1c8] sm:$0xff]
      %v175 = vld [vmem:[%s111 + $0x1d0] sm:$0xff]
      %v176 = vld [vmem:[%s111 + $0x1d8] sm:$0xff]
      %v177 = vld [vmem:[%s111 + $0x1e0] sm:$0xff]
      %v178 = vld [vmem:[%s111 + $0x1e8] sm:$0xff]
      %v179 = vld [vmem:[%s111 + $0x1f0] sm:$0xff]
      %v180 = vld [vmem:[%s111 + $0x1f8] sm:$0xff]
      %v181 = vld [vmem:[%s111 + $0x200] sm:$0xff]
      %v182 = vld [vmem:[%s111 + $0x208] sm:$0xff]
      %v183 = vld [vmem:[%s111 + $0x210] sm:$0xff]
      %v184 = vld [vmem:[%s111 + $0x218] sm:$0xff]
      %v185 = vld [vmem:[%s111 + $0x220] sm:$0xff]
      %v186 = vld [vmem:[%s111 + $0x228] sm:$0xff]
      %v187 = vld [vmem:[%s111 + $0x230] sm:$0xff]
      %v188 = vld [vmem:[%s111 + $0x238] sm:$0xff]
      %v189 = vmax.f32 %v117, %v125
      %v190 = vmax.f32 %v189, %v133
      %v191 = vmax.f32 %v190, %v141
      %v192 = vmax.f32 %v191, %v149
      %v193 = vmax.f32 %v192, %v157
      %v194 = vmax.f32 %v193, %v165
      %v195 = vmax.f32 %v194, %v173
      %v196 = vmax.f32 %v195, %v181
      %v197 = vmax.f32 %v118, %v126
      %v198 = vmax.f32 %v197, %v134
      %v199 = vmax.f32 %v198, %v142
      %v200 = vmax.f32 %v199, %v150
      %v201 = vmax.f32 %v200, %v158
      %v202 = vmax.f32 %v201, %v166
      %v203 = vmax.f32 %v202, %v174
      %v204 = vmax.f32 %v203, %v182
      %v205 = vmax.f32 %v119, %v127
      %v206 = vmax.f32 %v205, %v135
      %v207 = vmax.f32 %v206, %v143
      %v208 = vmax.f32 %v207, %v151
      %v209 = vmax.f32 %v208, %v159
      %v210 = vmax.f32 %v209, %v167
      %v211 = vmax.f32 %v210, %v175
      %v212 = vmax.f32 %v211, %v183
      %v213 = vmax.f32 %v120, %v128
      %v214 = vmax.f32 %v213, %v136
      %v215 = vmax.f32 %v214, %v144
      %v216 = vmax.f32 %v215, %v152
      %v217 = vmax.f32 %v216, %v160
      %v218 = vmax.f32 %v217, %v168
      %v219 = vmax.f32 %v218, %v176
      %v220 = vmax.f32 %v219, %v184
      %v221 = vmax.f32 %v121, %v129
      %v222 = vmax.f32 %v221, %v137
      %v223 = vmax.f32 %v222, %v145
      %v224 = vmax.f32 %v223, %v153
      %v225 = vmax.f32 %v224, %v161
      %v226 = vmax.f32 %v225, %v169
      %v227 = vmax.f32 %v226, %v177
      %v228 = vmax.f32 %v227, %v185
      %v229 = vmax.f32 %v122, %v130
      %v230 = vmax.f32 %v229, %v138
      %v231 = vmax.f32 %v230, %v146
      %v232 = vmax.f32 %v231, %v154
      %v233 = vmax.f32 %v232, %v162
      %v234 = vmax.f32 %v233, %v170
      %v235 = vmax.f32 %v234, %v178
      %v236 = vmax.f32 %v235, %v186
      %v237 = vmax.f32 %v123, %v131
      %v238 = vmax.f32 %v237, %v139
      %v239 = vmax.f32 %v238, %v147
      %v240 = vmax.f32 %v239, %v155
      %v241 = vmax.f32 %v240, %v163
      %v242 = vmax.f32 %v241, %v171
      %v243 = vmax.f32 %v242, %v179
      %v244 = vmax.f32 %v243, %v187
      %v245 = vmax.f32 %v124, %v132
      %v246 = vmax.f32 %v245, %v140
      %v247 = vmax.f32 %v246, %v148
      %v248 = vmax.f32 %v247, %v156
      %v249 = vmax.f32 %v248, %v164
      %v250 = vmax.f32 %v249, %v172
      %v251 = vmax.f32 %v250, %v180
      %v252 = vmax.f32 %v251, %v188
      %253 = vst [vmem:[%s116] sm:$0xff] %v196
      %254 = vst [vmem:[%s116 + $0x8] sm:$0xff] %v204
      %255 = vst [vmem:[%s116 + $0x10] sm:$0xff] %v212
      %256 = vst [vmem:[%s116 + $0x18] sm:$0xff] %v220
      %257 = vst [vmem:[%s116 + $0x20] sm:$0xff] %v228
      %258 = vst [vmem:[%s116 + $0x28] sm:$0xff] %v236
      %259 = vst [vmem:[%s116 + $0x30] sm:$0xff] %v244
      %260 = vst [vmem:[%s116 + $0x38] sm:$0xff] %v252
      %p261 = scmp.lt.s32.totalorder %s12, 1
      %s262 = scalar_select %p261, %s12, 1
      %s263 = smul.addr %s262, 8
      %s264 = smul.addr %s263, 8
      %s265 = scalar_lea.vmem %s1, %s264
      // Predicated region
      $region25: #{_lambda_.7} parent=23 // pred_check
        %p266 = pneg %p56
      $region26: #{_lambda_.7} parent=23 // pred_check_branch
        %268 = sbr.rel (%p266) target = $region28
      $region27: #{_lambda_.7} parent=23 // pred_region
        _
      $region28: #{_lambda_.7} parent=23 // pred_fallthru
        _
    $region24: #{_lambda_.7} parent=5 // pred_fallthru
      _
    %p269 = scmp.le.s32.totalorder 2, %s7
    // Predicated region
    $region29: #{_lambda_.7} parent=5 // pred_check
      %p270 = pneg %p269
    $region30: #{_lambda_.7} parent=5 // pred_check_branch
      %272 = sbr.rel (%p270) target = $region32
    $region31: #{_lambda_.7} parent=5 // pred_region
      %s273 = ssub.s32 %s7, 2
      // Predicated region
      $region33: #{_lambda_.7} parent=31 // pred_check
        %p274 = pneg %p62
      $region34: #{_lambda_.7} parent=31 // pred_check_branch
        %276 = sbr.rel (%p274) target = $region36
      $region35: #{_lambda_.7} parent=31 // pred_region
        %p277 = scmp.lt.s32.totalorder %s13, 1
        %s278 = scalar_select %p277, %s13, 1
        %s279 = smul.addr %s278, 8
        %s280 = smul.addr %s279, 8
        %s281 = scalar_lea.vmem %s1, %s280
      $region36: #{_lambda_.7} parent=31 // pred_fallthru
        _
    $region32: #{_lambda_.7} parent=5 // pred_fallthru
      _
  $region6: #{_lambda_.7} parent=0 // loop_footer
    %s11 = sadd.s32 1, %s7
  $region7: #{_lambda_.7} parent=0 // loop_footer_branch
    %6 = sbr.rel target = $region3
  $region8: #{_lambda_.7} parent=0 // loop_exit
    _

// kernel: _lambda_.8
$region0: #{_lambda_.8}
  #allocation0 [shape = 'u32[]', space=smem, size = 0x4, offset = 0x4, fixed_abs, tag = 'smem constant byte address 0x4 - core index']
  #allocation1 [shape = 'u32[72,128]{1,0:T(1,128)}', space=vmem, size = 0x9000, scoped, tag = 'internal scratch']
  %s0 = inlined_call_operand.vmem [shape: f32[2,64,1152], index: 0, kind: input, shape index: {}]
  %s1 = inlined_call_operand.vmem [shape: f32[1152,128], index: 1, kind: input, shape index: {}]
  %s2 = inlined_call_operand.vmem [shape: f32[1,128], index: 2, kind: input, shape index: {}]
  %s3 = inlined_call_operand.vmem [shape: f32[1,128], index: 3, kind: input, shape index: {}]
  %s4 = inlined_call_operand.vmem [shape: f32[2,64,128], index: 4, kind: output, shape index: {}]
  %s5 = sld [smem:[#allocation0]]
  $region49: #{_lambda_.8} parent=0
    _
  %s7 = ssub.s32 1, %s5
  %s8 = scalar_select 0, %s7, %s5
  loop: start=0, step=1, limit=4
  $region2: #{_lambda_.8} parent=0 // loop_pre_header
    _
  $region3: #{_lambda_.8} parent=0 // loop_header
    %s10 = sphi 0, %s14
    %p11 = scmp.ge.s32.totalorder %s10, 4
    %s17 = sphi 0, %s29
    %s18 = sphi 0, %s25
    %s19 = sphi 0, %s17
    %s20 = sphi 0, %s18
    %s21 = sphi 0, %s19
    %s22 = sphi 0, %s20
    %s34 = sphi 0, %s36
    %s37 = sphi 0, %s34
    %s38 = sphi 0, %s37
    %s54 = sphi 0, %s38
    %s58 = sphi 0, %s58
    %s60 = sphi 0, %s58
    %s61 = sphi 0, %s60
    %s75 = sphi 0, %s61
    %s79 = sphi 0, %s79
    %s81 = sphi 0, %s79
    %s82 = sphi 0, %s81
    %s96 = sphi 0, %s82
    %s100 = sphi 0, %s100
    %s102 = sphi 0, %s100
    %s103 = sphi 0, %s102
    %s117 = sphi 0, %s103
    %s125 = sphi 0, %s127
    %s128 = sphi 0, %s125
    %s129 = sphi 0, %s128
    %s145 = sphi 0, %s129
  $region4: #{_lambda_.8} parent=0 // loop_header_branch
    %13 = sbr.rel (%p11) target = $region8
  $region5: #{_lambda_.8} parent=0 // loop_body
    %s15 = ssub.s32 %s10, 1
    %s16 = ssub.s32 %s10, 2
    %s23 = sadd.s32 1, %s18
    %p24 = scmp.ge.s32.totalorder %s23, 1
    %s25 = scalar_select %p24, 0, %s23
    %s26 = sadd.s32 1, %s17
    %s27 = scalar_select %p24, %s26, %s17
    %p28 = scmp.ge.s32.totalorder %s27, 2
    %s29 = scalar_select %p28, 0, %s27
    %s30 = ssub.s32 %s17, %s29
    %s31 = ssub.s32 %s18, %s25
    %s32 = sor.u32 %s30, %s31
    %p33 = scmp.eq.s32.totalorder %s32, 0
    %s35 = sadd.s32 %s34, 1
    %s36 = scalar_select %p33, %s34, %s35
    %p39 = pneg %p33
    %p40 = scmp.eq.s32.totalorder %s10, 1
    %p41 = por %p39, %p40
    %p42 = scmp.ne.s32.totalorder %s34, %s37
    %p43 = scmp.eq.s32.totalorder %s10, 0
    %p44 = por %p42, %p43
    %p45 = scmp.ne.s32.totalorder %s34, %s37
    %p46 = scmp.eq.s32.totalorder %s15, 1
    %p47 = por %p45, %p46
    %p48 = scmp.ne.s32.totalorder %s37, %s38
    %p49 = scmp.eq.s32.totalorder %s15, 0
    %p50 = por %p48, %p49
    %p51 = scmp.ne.s32.totalorder %s37, %s38
    %p52 = scmp.eq.s32.totalorder %s16, 1
    %p53 = por %p51, %p52
    %p55 = scmp.ne.s32.totalorder %s38, %s54
    %p56 = scmp.eq.s32.totalorder %s16, 0
    %p57 = por %p55, %p56
    %s59 = sadd.s32 %s58, 1
    %p62 = scmp.eq.s32.totalorder %s10, 1
    %p63 = scmp.ne.s32.totalorder %s58, %s60
    %p64 = scmp.eq.s32.totalorder %s10, 0
    %p65 = por %p63, %p64
    %p66 = scmp.ne.s32.totalorder %s58, %s60
    %p67 = scmp.eq.s32.totalorder %s15, 1
    %p68 = por %p66, %p67
    %p69 = scmp.ne.s32.totalorder %s60, %s61
    %p70 = scmp.eq.s32.totalorder %s15, 0
    %p71 = por %p69, %p70
    %p72 = scmp.ne.s32.totalorder %s60, %s61
    %p73 = scmp.eq.s32.totalorder %s16, 1
    %p74 = por %p72, %p73
    %p76 = scmp.ne.s32.totalorder %s61, %s75
    %p77 = scmp.eq.s32.totalorder %s16, 0
    %p78 = por %p76, %p77
    %s80 = sadd.s32 %s79, 1
    %p83 = scmp.eq.s32.totalorder %s10, 1
    %p84 = scmp.ne.s32.totalorder %s79, %s81
    %p85 = scmp.eq.s32.totalorder %s10, 0
    %p86 = por %p84, %p85
    %p87 = scmp.ne.s32.totalorder %s79, %s81
    %p88 = scmp.eq.s32.totalorder %s15, 1
    %p89 = por %p87, %p88
    %p90 = scmp.ne.s32.totalorder %s81, %s82
    %p91 = scmp.eq.s32.totalorder %s15, 0
    %p92 = por %p90, %p91
    %p93 = scmp.ne.s32.totalorder %s81, %s82
    %p94 = scmp.eq.s32.totalorder %s16, 1
    %p95 = por %p93, %p94
    %p97 = scmp.ne.s32.totalorder %s82, %s96
    %p98 = scmp.eq.s32.totalorder %s16, 0
    %p99 = por %p97, %p98
    %s101 = sadd.s32 %s100, 1
    %p104 = scmp.eq.s32.totalorder %s10, 1
    %p105 = scmp.ne.s32.totalorder %s100, %s102
    %p106 = scmp.eq.s32.totalorder %s10, 0
    %p107 = por %p105, %p106
    %p108 = scmp.ne.s32.totalorder %s100, %s102
    %p109 = scmp.eq.s32.totalorder %s15, 1
    %p110 = por %p108, %p109
    %p111 = scmp.ne.s32.totalorder %s102, %s103
    %p112 = scmp.eq.s32.totalorder %s15, 0
    %p113 = por %p111, %p112
    %p114 = scmp.ne.s32.totalorder %s102, %s103
    %p115 = scmp.eq.s32.totalorder %s16, 1
    %p116 = por %p114, %p115
    %p118 = scmp.ne.s32.totalorder %s103, %s117
    %p119 = scmp.eq.s32.totalorder %s16, 0
    %p120 = por %p118, %p119
    %s121 = ssub.s32 %s17, %s29
    %s122 = ssub.s32 %s18, %s25
    %s123 = sor.u32 %s121, %s122
    %p124 = scmp.eq.s32.totalorder %s123, 0
    %s126 = sadd.s32 %s125, 1
    %s127 = scalar_select %p124, %s125, %s126
    %p130 = pneg %p124
    %p131 = scmp.eq.s32.totalorder %s10, 1
    %p132 = por %p130, %p131
    %p133 = scmp.ne.s32.totalorder %s125, %s128
    %p134 = scmp.eq.s32.totalorder %s10, 0
    %p135 = por %p133, %p134
    %p136 = scmp.ne.s32.totalorder %s125, %s128
    %p137 = scmp.eq.s32.totalorder %s15, 1
    %p138 = por %p136, %p137
    %p139 = scmp.ne.s32.totalorder %s128, %s129
    %p140 = scmp.eq.s32.totalorder %s15, 0
    %p141 = por %p139, %p140
    %p142 = scmp.ne.s32.totalorder %s128, %s129
    %p143 = scmp.eq.s32.totalorder %s16, 1
    %p144 = por %p142, %p143
    %p146 = scmp.ne.s32.totalorder %s129, %s145
    %p147 = scmp.eq.s32.totalorder %s16, 0
    %p148 = por %p146, %p147
    %p149 = scmp.le.s32.totalorder 1, %s10
    %p150 = scmp.lt.s32.totalorder %s10, 3
    %p151 = pnand %p149, %p150
    %p152 = pneg %p151
    // Predicated region
    $region9: #{_lambda_.8} parent=5 // pred_check
      _
    $region10: #{_lambda_.8} parent=5 // pred_check_branch
      %154 = sbr.rel (%p151) target = $region12
    $region11: #{_lambda_.8} parent=5 // pred_region
      %s155 = ssub.s32 %s10, 1
      // Predicated region
      $region13: #{_lambda_.8} parent=11 // pred_check
        %p156 = pneg %p71
      $region14: #{_lambda_.8} parent=11 // pred_check_branch
        %158 = sbr.rel (%p156) target = $region16
      $region15: #{_lambda_.8} parent=11 // pred_region
        _
      $region16: #{_lambda_.8} parent=11 // pred_fallthru
        _
      // Predicated region
      $region17: #{_lambda_.8} parent=11 // pred_check
        %p159 = pneg %p92
      $region18: #{_lambda_.8} parent=11 // pred_check_branch
        %161 = sbr.rel (%p159) target = $region20
      $region19: #{_lambda_.8} parent=11 // pred_region
        _
      $region20: #{_lambda_.8} parent=11 // pred_fallthru
        _
      // Predicated region
      $region21: #{_lambda_.8} parent=11 // pred_check
        %p162 = pneg %p113
      $region22: #{_lambda_.8} parent=11 // pred_check_branch
        %164 = sbr.rel (%p162) target = $region24
      $region23: #{_lambda_.8} parent=11 // pred_region
        _
      $region24: #{_lambda_.8} parent=11 // pred_fallthru
        _
    $region12: #{_lambda_.8} parent=5 // pred_fallthru
      _
    %p165 = scmp.lt.s32.totalorder %s10, 2
    // Predicated region
    $region25: #{_lambda_.8} parent=5 // pred_check
      %p166 = pneg %p165
    $region26: #{_lambda_.8} parent=5 // pred_check_branch
      %168 = sbr.rel (%p166) target = $region28
    $region27: #{_lambda_.8} parent=5 // pred_region
      // Predicated region
      $region29: #{_lambda_.8} parent=27 // pred_check
        %p169 = pneg %p44
      $region30: #{_lambda_.8} parent=27 // pred_check_branch
        %171 = sbr.rel (%p169) target = $region32
      $region31: #{_lambda_.8} parent=27 // pred_region
        %s172 = smul.u32 8, %s18
        %p173 = scmp.lt.s32.totalorder %s17, 1
        %s174 = scalar_select %p173, %s17, 1
        %p175 = scmp.lt.s32.totalorder %s172, 7
        %s176 = scalar_select %p175, %s172, 7
        %s177 = smul.addr %s176, 9
        %s178 = smul.addr %s174, 72
        %s179 = sadd.s32 %s177, %s178
        %s180 = smul.addr %s179, 8
        %s181 = scalar_lea.vmem %s0, %s180
        %s182 = smul.u32 8, %s18
      $region32: #{_lambda_.8} parent=27 // pred_fallthru
        _
    $region28: #{_lambda_.8} parent=5 // pred_fallthru
      _
    %p183 = scmp.le.s32.totalorder 1, %s10
    %p184 = scmp.lt.s32.totalorder %s10, 3
    %p185 = pnand %p183, %p184
    %p186 = pneg %p185
    // Predicated region
    $region33: #{_lambda_.8} parent=5 // pred_check
      _
    $region34: #{_lambda_.8} parent=5 // pred_check_branch
      %188 = sbr.rel (%p185) target = $region36
    $region35: #{_lambda_.8} parent=5 // pred_region
      %s189 = ssub.s32 %s10, 1
      %s190 = smul.u32 8, %s20
      %p191 = scmp.lt.s32.totalorder %s19, 1
      %s192 = scalar_select %p191, %s19, 1
      %p193 = scmp.lt.s32.totalorder %s190, 7
      %s194 = scalar_select %p193, %s190, 7
      %s195 = smul.addr %s194, 9
      %s196 = smul.addr %s192, 72
      %s197 = sadd.s32 %s195, %s196
      %s198 = smul.addr %s197, 8
      %s199 = scalar_lea.vmem %s0, %s198
      %p200 = pneg %p50
      %p201 = pneg %p47
      %p202 = pneg %p71
      %p203 = pneg %p68
      %p204 = pneg %p92
      %p205 = pneg %p89
      %p206 = pneg %p113
      %p207 = pneg %p110
      %p208 = pneg %p141
      %p209 = pneg %p138
      %s210 = smul.u32 8, %s20
      %p211 = scmp.lt.s32.totalorder %s19, 1
      %s212 = scalar_select %p211, %s19, 1
      %p213 = scmp.lt.s32.totalorder %s210, 7
      %s214 = scalar_select %p213, %s210, 7
      %s215 = smul.addr %s212, 8
      %s216 = sadd.s32 %s214, %s215
      %s217 = smul.addr %s216, 8
      %s218 = scalar_lea.vmem %s4, %s217
      %s219 = smul.u32 8, %s20
      %p220 = scmp.lt.s32.totalorder %s19, 1
      %s221 = scalar_select %p220, %s19, 1
      %p222 = scmp.lt.s32.totalorder %s219, 7
      %s223 = scalar_select %p222, %s219, 7
      %s224 = smul.addr %s223, 9
      %s225 = smul.addr %s221, 72
      %s226 = sadd.s32 %s224, %s225
      %s227 = smul.addr %s226, 8
      %s228 = scalar_lea.vmem %s0, %s227
      %s229 = smul.u32 8, %s20
      %s230 = smul.u32 8, %s20
      %p231 = scmp.lt.s32.totalorder %s19, 1
      %s232 = scalar_select %p231, %s19, 1
      %p233 = scmp.lt.s32.totalorder %s230, 7
      %s234 = scalar_select %p233, %s230, 7
      %s235 = smul.addr %s232, 8
      %s236 = sadd.s32 %s234, %s235
      %s237 = smul.addr %s236, 8
      %s238 = scalar_lea.vmem %s4, %s237
      %s239 = smul.u32 8, %s20
      %v240 = vld [vmem:[%s228] sm:$0xff]
      %v241 = vld [vmem:[%s228 + $0x8] sm:$0xff]
      %v242 = vld [vmem:[%s228 + $0x10] sm:$0xff]
      %v243 = vld [vmem:[%s228 + $0x18] sm:$0xff]
      %v244 = vld [vmem:[%s228 + $0x20] sm:$0xff]
      %v245 = vld [vmem:[%s228 + $0x28] sm:$0xff]
      %v246 = vld [vmem:[%s228 + $0x30] sm:$0xff]
      %v247 = vld [vmem:[%s228 + $0x38] sm:$0xff]
      %v248 = vld [vmem:[%s228 + $0x40] sm:$0xff]
      %v249 = vld [vmem:[%s228 + $0x48] sm:$0xff]
      %v250 = vld [vmem:[%s228 + $0x50] sm:$0xff]
      %v251 = vld [vmem:[%s228 + $0x58] sm:$0xff]
      %v252 = vld [vmem:[%s228 + $0x60] sm:$0xff]
      %v253 = vld [vmem:[%s228 + $0x68] sm:$0xff]
      %v254 = vld [vmem:[%s228 + $0x70] sm:$0xff]
      %v255 = vld [vmem:[%s228 + $0x78] sm:$0xff]
      %v256 = vld [vmem:[%s228 + $0x80] sm:$0xff]
      %v257 = vld [vmem:[%s228 + $0x88] sm:$0xff]
      %v258 = vld [vmem:[%s228 + $0x90] sm:$0xff]
      %v259 = vld [vmem:[%s228 + $0x98] sm:$0xff]
      %v260 = vld [vmem:[%s228 + $0xa0] sm:$0xff]
      %v261 = vld [vmem:[%s228 + $0xa8] sm:$0xff]
      %v262 = vld [vmem:[%s228 + $0xb0] sm:$0xff]
      %v263 = vld [vmem:[%s228 + $0xb8] sm:$0xff]
      %v264 = vld [vmem:[%s228 + $0xc0] sm:$0xff]
      %v265 = vld [vmem:[%s228 + $0xc8] sm:$0xff]
      %v266 = vld [vmem:[%s228 + $0xd0] sm:$0xff]
      %v267 = vld [vmem:[%s228 + $0xd8] sm:$0xff]
      %v268 = vld [vmem:[%s228 + $0xe0] sm:$0xff]
      %v269 = vld [vmem:[%s228 + $0xe8] sm:$0xff]
      %v270 = vld [vmem:[%s228 + $0xf0] sm:$0xff]
      %v271 = vld [vmem:[%s228 + $0xf8] sm:$0xff]
      %v272 = vld [vmem:[%s228 + $0x100] sm:$0xff]
      %v273 = vld [vmem:[%s228 + $0x108] sm:$0xff]
      %v274 = vld [vmem:[%s228 + $0x110] sm:$0xff]
      %v275 = vld [vmem:[%s228 + $0x118] sm:$0xff]
      %v276 = vld [vmem:[%s228 + $0x120] sm:$0xff]
      %v277 = vld [vmem:[%s228 + $0x128] sm:$0xff]
      %v278 = vld [vmem:[%s228 + $0x130] sm:$0xff]
      %v279 = vld [vmem:[%s228 + $0x138] sm:$0xff]
      %v280 = vld [vmem:[%s228 + $0x140] sm:$0xff]
      %v281 = vld [vmem:[%s228 + $0x148] sm:$0xff]
      %v282 = vld [vmem:[%s228 + $0x150] sm:$0xff]
      %v283 = vld [vmem:[%s228 + $0x158] sm:$0xff]
      %v284 = vld [vmem:[%s228 + $0x160] sm:$0xff]
      %v285 = vld [vmem:[%s228 + $0x168] sm:$0xff]
      %v286 = vld [vmem:[%s228 + $0x170] sm:$0xff]
      %v287 = vld [vmem:[%s228 + $0x178] sm:$0xff]
      %v288 = vld [vmem:[%s228 + $0x180] sm:$0xff]
      %v289 = vld [vmem:[%s228 + $0x188] sm:$0xff]
      %v290 = vld [vmem:[%s228 + $0x190] sm:$0xff]
      %v291 = vld [vmem:[%s228 + $0x198] sm:$0xff]
      %v292 = vld [vmem:[%s228 + $0x1a0] sm:$0xff]
      %v293 = vld [vmem:[%s228 + $0x1a8] sm:$0xff]
      %v294 = vld [vmem:[%s228 + $0x1b0] sm:$0xff]
      %v295 = vld [vmem:[%s228 + $0x1b8] sm:$0xff]
      %v296 = vld [vmem:[%s228 + $0x1c0] sm:$0xff]
      %v297 = vld [vmem:[%s228 + $0x1c8] sm:$0xff]
      %v298 = vld [vmem:[%s228 + $0x1d0] sm:$0xff]
      %v299 = vld [vmem:[%s228 + $0x1d8] sm:$0xff]
      %v300 = vld [vmem:[%s228 + $0x1e0] sm:$0xff]
      %v301 = vld [vmem:[%s228 + $0x1e8] sm:$0xff]
      %v302 = vld [vmem:[%s228 + $0x1f0] sm:$0xff]
      %v303 = vld [vmem:[%s228 + $0x1f8] sm:$0xff]
      %v304 = vld [vmem:[%s228 + $0x200] sm:$0xff]
      %v305 = vld [vmem:[%s228 + $0x208] sm:$0xff]
      %v306 = vld [vmem:[%s228 + $0x210] sm:$0xff]
      %v307 = vld [vmem:[%s228 + $0x218] sm:$0xff]
      %v308 = vld [vmem:[%s228 + $0x220] sm:$0xff]
      %v309 = vld [vmem:[%s228 + $0x228] sm:$0xff]
      %v310 = vld [vmem:[%s228 + $0x230] sm:$0xff]
      %v311 = vld [vmem:[%s228 + $0x238] sm:$0xff]
      %v312 = vld [vmem:[%s1] sm:$0xff]
      %v313 = vld [vmem:[%s1 + $0x8] sm:$0xff]
      %v314 = vld [vmem:[%s1 + $0x10] sm:$0xff]
      %v315 = vld [vmem:[%s1 + $0x18] sm:$0xff]
      %v316 = vld [vmem:[%s1 + $0x20] sm:$0xff]
      %v317 = vld [vmem:[%s1 + $0x28] sm:$0xff]
      %v318 = vld [vmem:[%s1 + $0x30] sm:$0xff]
      %v319 = vld [vmem:[%s1 + $0x38] sm:$0xff]
      %v320 = vld [vmem:[%s1 + $0x40] sm:$0xff]
      %v321 = vld [vmem:[%s1 + $0x48] sm:$0xff]
      %v322 = vld [vmem:[%s1 + $0x50] sm:$0xff]
      %v323 = vld [vmem:[%s1 + $0x58] sm:$0xff]
      %v324 = vld [vmem:[%s1 + $0x60] sm:$0xff]
      %v325 = vld [vmem:[%s1 + $0x68] sm:$0xff]
      %v326 = vld [vmem:[%s1 + $0x70] sm:$0xff]
      %v327 = vld [vmem:[%s1 + $0x78] sm:$0xff]
      %v328 = vld [vmem:[%s1 + $0x80] sm:$0xff]
      %v329 = vld [vmem:[%s1 + $0x88] sm:$0xff]
      %v330 = vld [vmem:[%s1 + $0x90] sm:$0xff]
      %v331 = vld [vmem:[%s1 + $0x98] sm:$0xff]
      %v332 = vld [vmem:[%s1 + $0xa0] sm:$0xff]
      %v333 = vld [vmem:[%s1 + $0xa8] sm:$0xff]
      %v334 = vld [vmem:[%s1 + $0xb0] sm:$0xff]
      %v335 = vld [vmem:[%s1 + $0xb8] sm:$0xff]
      %v336 = vld [vmem:[%s1 + $0xc0] sm:$0xff]
      %v337 = vld [vmem:[%s1 + $0xc8] sm:$0xff]
      %v338 = vld [vmem:[%s1 + $0xd0] sm:$0xff]
      %v339 = vld [vmem:[%s1 + $0xd8] sm:$0xff]
      %v340 = vld [vmem:[%s1 + $0xe0] sm:$0xff]
      %v341 = vld [vmem:[%s1 + $0xe8] sm:$0xff]
      %v342 = vld [vmem:[%s1 + $0xf0] sm:$0xff]
      %v343 = vld [vmem:[%s1 + $0xf8] sm:$0xff]
      %v344 = vld [vmem:[%s1 + $0x100] sm:$0xff]
      %v345 = vld [vmem:[%s1 + $0x108] sm:$0xff]
      %v346 = vld [vmem:[%s1 + $0x110] sm:$0xff]
      %v347 = vld [vmem:[%s1 + $0x118] sm:$0xff]
      %v348 = vld [vmem:[%s1 + $0x120] sm:$0xff]
      %v349 = vld [vmem:[%s1 + $0x128] sm:$0xff]
      %v350 = vld [vmem:[%s1 + $0x130] sm:$0xff]
      %v351 = vld [vmem:[%s1 + $0x138] sm:$0xff]
      %v352 = vld [vmem:[%s1 + $0x140] sm:$0xff]
      %v353 = vld [vmem:[%s1 + $0x148] sm:$0xff]
      %v354 = vld [vmem:[%s1 + $0x150] sm:$0xff]
      %v355 = vld [vmem:[%s1 + $0x158] sm:$0xff]
      %v356 = vld [vmem:[%s1 + $0x160] sm:$0xff]
      %v357 = vld [vmem:[%s1 + $0x168] sm:$0xff]
      %v358 = vld [vmem:[%s1 + $0x170] sm:$0xff]
      %v359 = vld [vmem:[%s1 + $0x178] sm:$0xff]
      %v360 = vld [vmem:[%s1 + $0x180] sm:$0xff]
      %v361 = vld [vmem:[%s1 + $0x188] sm:$0xff]
      %v362 = vld [vmem:[%s1 + $0x190] sm:$0xff]
      %v363 = vld [vmem:[%s1 + $0x198] sm:$0xff]
      %v364 = vld [vmem:[%s1 + $0x1a0] sm:$0xff]
      %v365 = vld [vmem:[%s1 + $0x1a8] sm:$0xff]
      %v366 = vld [vmem:[%s1 + $0x1b0] sm:$0xff]
      %v367 = vld [vmem:[%s1 + $0x1b8] sm:$0xff]
      %v368 = vld [vmem:[%s1 + $0x1c0] sm:$0xff]
      %v369 = vld [vmem:[%s1 + $0x1c8] sm:$0xff]
      %v370 = vld [vmem:[%s1 + $0x1d0] sm:$0xff]
      %v371 = vld [vmem:[%s1 + $0x1d8] sm:$0xff]
      %v372 = vld [vmem:[%s1 + $0x1e0] sm:$0xff]
      %v373 = vld [vmem:[%s1 + $0x1e8] sm:$0xff]
      %v374 = vld [vmem:[%s1 + $0x1f0] sm:$0xff]
      %v375 = vld [vmem:[%s1 + $0x1f8] sm:$0xff]
      %v376 = vld [vmem:[%s1 + $0x200] sm:$0xff]
      %v377 = vld [vmem:[%s1 + $0x208] sm:$0xff]
      %v378 = vld [vmem:[%s1 + $0x210] sm:$0xff]
      %v379 = vld [vmem:[%s1 + $0x218] sm:$0xff]
      %v380 = vld [vmem:[%s1 + $0x220] sm:$0xff]
      %v381 = vld [vmem:[%s1 + $0x228] sm:$0xff]
      %v382 = vld [vmem:[%s1 + $0x230] sm:$0xff]
      %v383 = vld [vmem:[%s1 + $0x238] sm:$0xff]
      %v384 = vld [vmem:[%s1 + $0x240] sm:$0xff]
      %v385 = vld [vmem:[%s1 + $0x248] sm:$0xff]
      %v386 = vld [vmem:[%s1 + $0x250] sm:$0xff]
      %v387 = vld [vmem:[%s1 + $0x258] sm:$0xff]
      %v388 = vld [vmem:[%s1 + $0x260] sm:$0xff]
      %v389 = vld [vmem:[%s1 + $0x268] sm:$0xff]
      %v390 = vld [vmem:[%s1 + $0x270] sm:$0xff]
      %v391 = vld [vmem:[%s1 + $0x278] sm:$0xff]
      %v392 = vld [vmem:[%s1 + $0x280] sm:$0xff]
      %v393 = vld [vmem:[%s1 + $0x288] sm:$0xff]
      %v394 = vld [vmem:[%s1 + $0x290] sm:$0xff]
      %v395 = vld [vmem:[%s1 + $0x298] sm:$0xff]
      %v396 = vld [vmem:[%s1 + $0x2a0] sm:$0xff]
      %v397 = vld [vmem:[%s1 + $0x2a8] sm:$0xff]
      %v398 = vld [vmem:[%s1 + $0x2b0] sm:$0xff]
      %v399 = vld [vmem:[%s1 + $0x2b8] sm:$0xff]
      %v400 = vld [vmem:[%s1 + $0x2c0] sm:$0xff]
      %v401 = vld [vmem:[%s1 + $0x2c8] sm:$0xff]
      %v402 = vld [vmem:[%s1 + $0x2d0] sm:$0xff]
      %v403 = vld [vmem:[%s1 + $0x2d8] sm:$0xff]
      %v404 = vld [vmem:[%s1 + $0x2e0] sm:$0xff]
      %v405 = vld [vmem:[%s1 + $0x2e8] sm:$0xff]
      %v406 = vld [vmem:[%s1 + $0x2f0] sm:$0xff]
      %v407 = vld [vmem:[%s1 + $0x2f8] sm:$0xff]
      %v408 = vld [vmem:[%s1 + $0x300] sm:$0xff]
      %v409 = vld [vmem:[%s1 + $0x308] sm:$0xff]
      %v410 = vld [vmem:[%s1 + $0x310] sm:$0xff]
      %v411 = vld [vmem:[%s1 + $0x318] sm:$0xff]
      %v412 = vld [vmem:[%s1 + $0x320] sm:$0xff]
      %v413 = vld [vmem:[%s1 + $0x328] sm:$0xff]
      %v414 = vld [vmem:[%s1 + $0x330] sm:$0xff]
      %v415 = vld [vmem:[%s1 + $0x338] sm:$0xff]
      %v416 = vld [vmem:[%s1 + $0x340] sm:$0xff]
      %v417 = vld [vmem:[%s1 + $0x348] sm:$0xff]
      %v418 = vld [vmem:[%s1 + $0x350] sm:$0xff]
      %v419 = vld [vmem:[%s1 + $0x358] sm:$0xff]
      %v420 = vld [vmem:[%s1 + $0x360] sm:$0xff]
      %v421 = vld [vmem:[%s1 + $0x368] sm:$0xff]
      %v422 = vld [vmem:[%s1 + $0x370] sm:$0xff]
      %v423 = vld [vmem:[%s1 + $0x378] sm:$0xff]
      %v424 = vld [vmem:[%s1 + $0x380] sm:$0xff]
      %v425 = vld [vmem:[%s1 + $0x388] sm:$0xff]
      %v426 = vld [vmem:[%s1 + $0x390] sm:$0xff]
      %v427 = vld [vmem:[%s1 + $0x398] sm:$0xff]
      %v428 = vld [vmem:[%s1 + $0x3a0] sm:$0xff]
      %v429 = vld [vmem:[%s1 + $0x3a8] sm:$0xff]
      %v430 = vld [vmem:[%s1 + $0x3b0] sm:$0xff]
      %v431 = vld [vmem:[%s1 + $0x3b8] sm:$0xff]
      %v432 = vld [vmem:[%s1 + $0x3c0] sm:$0xff]
      %v433 = vld [vmem:[%s1 + $0x3c8] sm:$0xff]
      %v434 = vld [vmem:[%s1 + $0x3d0] sm:$0xff]
      %v435 = vld [vmem:[%s1 + $0x3d8] sm:$0xff]
      %v436 = vld [vmem:[%s1 + $0x3e0] sm:$0xff]
      %v437 = vld [vmem:[%s1 + $0x3e8] sm:$0xff]
      %v438 = vld [vmem:[%s1 + $0x3f0] sm:$0xff]
      %v439 = vld [vmem:[%s1 + $0x3f8] sm:$0xff]
      %v440 = vld [vmem:[%s1 + $0x400] sm:$0xff]
      %v441 = vld [vmem:[%s1 + $0x408] sm:$0xff]
      %v442 = vld [vmem:[%s1 + $0x410] sm:$0xff]
      %v443 = vld [vmem:[%s1 + $0x418] sm:$0xff]
      %v444 = vld [vmem:[%s1 + $0x420] sm:$0xff]
      %v445 = vld [vmem:[%s1 + $0x428] sm:$0xff]
      %v446 = vld [vmem:[%s1 + $0x430] sm:$0xff]
      %v447 = vld [vmem:[%s1 + $0x438] sm:$0xff]
      %v448 = vld [vmem:[%s1 + $0x440] sm:$0xff]
      %v449 = vld [vmem:[%s1 + $0x448] sm:$0xff]
      %v450 = vld [vmem:[%s1 + $0x450] sm:$0xff]
      %v451 = vld [vmem:[%s1 + $0x458] sm:$0xff]
      %v452 = vld [vmem:[%s1 + $0x460] sm:$0xff]
      %v453 = vld [vmem:[%s1 + $0x468] sm:$0xff]
      %v454 = vld [vmem:[%s1 + $0x470] sm:$0xff]
      %v455 = vld [vmem:[%s1 + $0x478] sm:$0xff]
      %456 = vmatpush.msra.mxu0 %v327
      %457 = vmatpush.msra.mxu0 %v326
      %458 = vmatpush.msra.mxu0 %v325
      %459 = vmatpush.msra.mxu0 %v324
      %460 = vmatpush.msra.mxu0 %v323
      %461 = vmatpush.msra.mxu0 %v322
      %462 = vmatpush.msra.mxu0 %v321
      %463 = vmatpush.msra.mxu0 %v320
      %464 = vmatpush.msra.mxu0 %v319
      %465 = vmatpush.msra.mxu0 %v318
      %466 = vmatpush.msra.mxu0 %v317
      %467 = vmatpush.msra.mxu0 %v316
      %468 = vmatpush.msra.mxu0 %v315
      %469 = vmatpush.msra.mxu0 %v314
      %470 = vmatpush.msra.mxu0 %v313
      %471 = vmatpush.msra.mxu0 %v312
      %472 = vmatmul.f32.gmra.mxu0 %v240
      %v473 = vpop.f32.mrf.mxu0
      %v474 = vadd.f32 0.0, %v473
      %475 = vmatmul.f32.gmra.mxu0 %v249
      %v476 = vpop.f32.mrf.mxu0
      %v477 = vadd.f32 0.0, %v476
      %478 = vmatmul.f32.gmra.mxu0 %v258
      %v479 = vpop.f32.mrf.mxu0
      %v480 = vadd.f32 0.0, %v479
      %481 = vmatmul.f32.gmra.mxu0 %v267
      %v482 = vpop.f32.mrf.mxu0
      %v483 = vadd.f32 0.0, %v482
      %484 = vmatmul.f32.gmra.mxu0 %v276
      %v485 = vpop.f32.mrf.mxu0
      %v486 = vadd.f32 0.0, %v485
      %487 = vmatmul.f32.gmra.mxu0 %v285
      %v488 = vpop.f32.mrf.mxu0
      %v489 = vadd.f32 0.0, %v488
      %490 = vmatmul.f32.gmra.mxu0 %v294
      %v491 = vpop.f32.mrf.mxu0
      %v492 = vadd.f32 0.0, %v491
      %493 = vmatmul.f32.gmra.mxu0 %v303
      %v494 = vpop.f32.mrf.mxu0
      %v495 = vadd.f32 0.0, %v494
      %496 = vdwg.mxu0
      %497 = vmatpush.msra.mxu0 %v343
      %498 = vmatpush.msra.mxu0 %v342
      %499 = vmatpush.msra.mxu0 %v341
      %500 = vmatpush.msra.mxu0 %v340
      %501 = vmatpush.msra.mxu0 %v339
      %502 = vmatpush.msra.mxu0 %v338
      %503 = vmatpush.msra.mxu0 %v337
      %504 = vmatpush.msra.mxu0 %v336
      %505 = vmatpush.msra.mxu0 %v335
      %506 = vmatpush.msra.mxu0 %v334
      %507 = vmatpush.msra.mxu0 %v333
      %508 = vmatpush.msra.mxu0 %v332
      %509 = vmatpush.msra.mxu0 %v331
      %510 = vmatpush.msra.mxu0 %v330
      %511 = vmatpush.msra.mxu0 %v329
      %512 = vmatpush.msra.mxu0 %v328
      %513 = vmatmul.f32.gmra.mxu0 %v241
      %v514 = vpop.f32.mrf.mxu0
      %v515 = vadd.f32 %v474, %v514
      %516 = vmatmul.f32.gmra.mxu0 %v250
      %v517 = vpop.f32.mrf.mxu0
      %v518 = vadd.f32 %v477, %v517
      %519 = vmatmul.f32.gmra.mxu0 %v259
      %v520 = vpop.f32.mrf.mxu0
      %v521 = vadd.f32 %v480, %v520
      %522 = vmatmul.f32.gmra.mxu0 %v268
      %v523 = vpop.f32.mrf.mxu0
      %v524 = vadd.f32 %v483, %v523
      %525 = vmatmul.f32.gmra.mxu0 %v277
      %v526 = vpop.f32.mrf.mxu0
      %v527 = vadd.f32 %v486, %v526
      %528 = vmatmul.f32.gmra.mxu0 %v286
      %v529 = vpop.f32.mrf.mxu0
      %v530 = vadd.f32 %v489, %v529
      %531 = vmatmul.f32.gmra.mxu0 %v295
      %v532 = vpop.f32.mrf.mxu0
      %v533 = vadd.f32 %v492, %v532
      %534 = vmatmul.f32.gmra.mxu0 %v304
      %v535 = vpop.f32.mrf.mxu0
      %v536 = vadd.f32 %v495, %v535
      %537 = vdwg.mxu0
      %538 = vmatpush.msra.mxu0 %v359
      %539 = vmatpush.msra.mxu0 %v358
      %540 = vmatpush.msra.mxu0 %v357
      %541 = vmatpush.msra.mxu0 %v356
      %542 = vmatpush.msra.mxu0 %v355
      %543 = vmatpush.msra.mxu0 %v354
      %544 = vmatpush.msra.mxu0 %v353
      %545 = vmatpush.msra.mxu0 %v352
      %546 = vmatpush.msra.mxu0 %v351
      %547 = vmatpush.msra.mxu0 %v350
      %548 = vmatpush.msra.mxu0 %v349
      %549 = vmatpush.msra.mxu0 %v348
      %550 = vmatpush.msra.mxu0 %v347
      %551 = vmatpush.msra.mxu0 %v346
      %552 = vmatpush.msra.mxu0 %v345
      %553 = vmatpush.msra.mxu0 %v344
      %554 = vmatmul.f32.gmra.mxu0 %v242
      %v555 = vpop.f32.mrf.mxu0
      %v556 = vadd.f32 %v515, %v555
      %557 = vmatmul.f32.gmra.mxu0 %v251
      %v558 = vpop.f32.mrf.mxu0
      %v559 = vadd.f32 %v518, %v558
      %560 = vmatmul.f32.gmra.mxu0 %v260
      %v561 = vpop.f32.mrf.mxu0
      %v562 = vadd.f32 %v521, %v561
      %563 = vmatmul.f32.gmra.mxu0 %v269
      %v564 = vpop.f32.mrf.mxu0
      %v565 = vadd.f32 %v524, %v564
      %566 = vmatmul.f32.gmra.mxu0 %v278
      %v567 = vpop.f32.mrf.mxu0
      %v568 = vadd.f32 %v527, %v567
      %569 = vmatmul.f32.gmra.mxu0 %v287
      %v570 = vpop.f32.mrf.mxu0
      %v571 = vadd.f32 %v530, %v570
      %572 = vmatmul.f32.gmra.mxu0 %v296
      %v573 = vpop.f32.mrf.mxu0
      %v574 = vadd.f32 %v533, %v573
      %575 = vmatmul.f32.gmra.mxu0 %v305
      %v576 = vpop.f32.mrf.mxu0
      %v577 = vadd.f32 %v536, %v576
      %578 = vdwg.mxu0
      %579 = vmatpush.msra.mxu0 %v375
      %580 = vmatpush.msra.mxu0 %v374
      %581 = vmatpush.msra.mxu0 %v373
      %582 = vmatpush.msra.mxu0 %v372
      %583 = vmatpush.msra.mxu0 %v371
      %584 = vmatpush.msra.mxu0 %v370
      %585 = vmatpush.msra.mxu0 %v369
      %586 = vmatpush.msra.mxu0 %v368
      %587 = vmatpush.msra.mxu0 %v367
      %588 = vmatpush.msra.mxu0 %v366
      %589 = vmatpush.msra.mxu0 %v365
      %590 = vmatpush.msra.mxu0 %v364
      %591 = vmatpush.msra.mxu0 %v363
      %592 = vmatpush.msra.mxu0 %v362
      %593 = vmatpush.msra.mxu0 %v361
      %594 = vmatpush.msra.mxu0 %v360
      %595 = vmatmul.f32.gmra.mxu0 %v243
      %v596 = vpop.f32.mrf.mxu0
      %v597 = vadd.f32 %v556, %v596
      %598 = vmatmul.f32.gmra.mxu0 %v252
      %v599 = vpop.f32.mrf.mxu0
      %v600 = vadd.f32 %v559, %v599
      %601 = vmatmul.f32.gmra.mxu0 %v261
      %v602 = vpop.f32.mrf.mxu0
      %v603 = vadd.f32 %v562, %v602
      %604 = vmatmul.f32.gmra.mxu0 %v270
      %v605 = vpop.f32.mrf.mxu0
      %v606 = vadd.f32 %v565, %v605
      %607 = vmatmul.f32.gmra.mxu0 %v279
      %v608 = vpop.f32.mrf.mxu0
      %v609 = vadd.f32 %v568, %v608
      %610 = vmatmul.f32.gmra.mxu0 %v288
      %v611 = vpop.f32.mrf.mxu0
      %v612 = vadd.f32 %v571, %v611
      %613 = vmatmul.f32.gmra.mxu0 %v297
      %v614 = vpop.f32.mrf.mxu0
      %v615 = vadd.f32 %v574, %v614
      %616 = vmatmul.f32.gmra.mxu0 %v306
      %v617 = vpop.f32.mrf.mxu0
      %v618 = vadd.f32 %v577, %v617
      %619 = vdwg.mxu0
      %620 = vmatpush.msra.mxu0 %v391
      %621 = vmatpush.msra.mxu0 %v390
      %622 = vmatpush.msra.mxu0 %v389
      %623 = vmatpush.msra.mxu0 %v388
      %624 = vmatpush.msra.mxu0 %v387
      %625 = vmatpush.msra.mxu0 %v386
      %626 = vmatpush.msra.mxu0 %v385
      %627 = vmatpush.msra.mxu0 %v384
      %628 = vmatpush.msra.mxu0 %v383
      %629 = vmatpush.msra.mxu0 %v382
      %630 = vmatpush.msra.mxu0 %v381
      %631 = vmatpush.msra.mxu0 %v380
      %632 = vmatpush.msra.mxu0 %v379
      %633 = vmatpush.msra.mxu0 %v378
      %634 = vmatpush.msra.mxu0 %v377
      %635 = vmatpush.msra.mxu0 %v376
      %636 = vmatmul.f32.gmra.mxu0 %v244
      %v637 = vpop.f32.mrf.mxu0
      %v638 = vadd.f32 %v597, %v637
      %639 = vmatmul.f32.gmra.mxu0 %v253
      %v640 = vpop.f32.mrf.mxu0
      %v641 = vadd.f32 %v600, %v640
      %642 = vmatmul.f32.gmra.mxu0 %v262
      %v643 = vpop.f32.mrf.mxu0
      %v644 = vadd.f32 %v603, %v643
      %645 = vmatmul.f32.gmra.mxu0 %v271
      %v646 = vpop.f32.mrf.mxu0
      %v647 = vadd.f32 %v606, %v646
      %648 = vmatmul.f32.gmra.mxu0 %v280
      %v649 = vpop.f32.mrf.mxu0
      %v650 = vadd.f32 %v609, %v649
      %651 = vmatmul.f32.gmra.mxu0 %v289
      %v652 = vpop.f32.mrf.mxu0
      %v653 = vadd.f32 %v612, %v652
      %654 = vmatmul.f32.gmra.mxu0 %v298
      %v655 = vpop.f32.mrf.mxu0
      %v656 = vadd.f32 %v615, %v655
      %657 = vmatmul.f32.gmra.mxu0 %v307
      %v658 = vpop.f32.mrf.mxu0
      %v659 = vadd.f32 %v618, %v658
      %660 = vdwg.mxu0
      %661 = vmatpush.msra.mxu0 %v407
      %662 = vmatpush.msra.mxu0 %v406
      %663 = vmatpush.msra.mxu0 %v405
      %664 = vmatpush.msra.mxu0 %v404
      %665 = vmatpush.msra.mxu0 %v403
      %666 = vmatpush.msra.mxu0 %v402
      %667 = vmatpush.msra.mxu0 %v401
      %668 = vmatpush.msra.mxu0 %v400
      %669 = vmatpush.msra.mxu0 %v399
      %670 = vmatpush.msra.mxu0 %v398
      %671 = vmatpush.msra.mxu0 %v397
      %672 = vmatpush.msra.mxu0 %v396
      %673 = vmatpush.msra.mxu0 %v395
      %674 = vmatpush.msra.mxu0 %v394
      %675 = vmatpush.msra.mxu0 %v393
      %676 = vmatpush.msra.mxu0 %v392
      %677 = vmatmul.f32.gmra.mxu0 %v245
      %v678 = vpop.f32.mrf.mxu0
      %v679 = vadd.f32 %v638, %v678
      %680 = vmatmul.f32.gmra.mxu0 %v254
      %v681 = vpop.f32.mrf.mxu0
      %v682 = vadd.f32 %v641, %v681
      %683 = vmatmul.f32.gmra.mxu0 %v263
      %v684 = vpop.f32.mrf.mxu0
      %v685 = vadd.f32 %v644, %v684
      %686 = vmatmul.f32.gmra.mxu0 %v272
      %v687 = vpop.f32.mrf.mxu0
      %v688 = vadd.f32 %v647, %v687
      %689 = vmatmul.f32.gmra.mxu0 %v281
      %v690 = vpop.f32.mrf.mxu0
      %v691 = vadd.f32 %v650, %v690
      %692 = vmatmul.f32.gmra.mxu0 %v290
      %v693 = vpop.f32.mrf.mxu0
      %v694 = vadd.f32 %v653, %v693
      %695 = vmatmul.f32.gmra.mxu0 %v299
      %v696 = vpop.f32.mrf.mxu0
      %v697 = vadd.f32 %v656, %v696
      %698 = vmatmul.f32.gmra.mxu0 %v308
      %v699 = vpop.f32.mrf.mxu0
      %v700 = vadd.f32 %v659, %v699
      %701 = vdwg.mxu0
      %702 = vmatpush.msra.mxu0 %v423
      %703 = vmatpush.msra.mxu0 %v422
      %704 = vmatpush.msra.mxu0 %v421
      %705 = vmatpush.msra.mxu0 %v420
      %706 = vmatpush.msra.mxu0 %v419
      %707 = vmatpush.msra.mxu0 %v418
      %708 = vmatpush.msra.mxu0 %v417
      %709 = vmatpush.msra.mxu0 %v416
      %710 = vmatpush.msra.mxu0 %v415
      %711 = vmatpush.msra.mxu0 %v414
      %712 = vmatpush.msra.mxu0 %v413
      %713 = vmatpush.msra.mxu0 %v412
      %714 = vmatpush.msra.mxu0 %v411
      %715 = vmatpush.msra.mxu0 %v410
      %716 = vmatpush.msra.mxu0 %v409
      %717 = vmatpush.msra.mxu0 %v408
      %718 = vmatmul.f32.gmra.mxu0 %v246
      %v719 = vpop.f32.mrf.mxu0
      %v720 = vadd.f32 %v679, %v719
      %721 = vmatmul.f32.gmra.mxu0 %v255
      %v722 = vpop.f32.mrf.mxu0
      %v723 = vadd.f32 %v682, %v722
      %724 = vmatmul.f32.gmra.mxu0 %v264
      %v725 = vpop.f32.mrf.mxu0
      %v726 = vadd.f32 %v685, %v725
      %727 = vmatmul.f32.gmra.mxu0 %v273
      %v728 = vpop.f32.mrf.mxu0
      %v729 = vadd.f32 %v688, %v728
      %730 = vmatmul.f32.gmra.mxu0 %v282
      %v731 = vpop.f32.mrf.mxu0
      %v732 = vadd.f32 %v691, %v731
      %733 = vmatmul.f32.gmra.mxu0 %v291
      %v734 = vpop.f32.mrf.mxu0
      %v735 = vadd.f32 %v694, %v734
      %736 = vmatmul.f32.gmra.mxu0 %v300
      %v737 = vpop.f32.mrf.mxu0
      %v738 = vadd.f32 %v697, %v737
      %739 = vmatmul.f32.gmra.mxu0 %v309
      %v740 = vpop.f32.mrf.mxu0
      %v741 = vadd.f32 %v700, %v740
      %742 = vdwg.mxu0
      %743 = vmatpush.msra.mxu0 %v439
      %744 = vmatpush.msra.mxu0 %v438
      %745 = vmatpush.msra.mxu0 %v437
      %746 = vmatpush.msra.mxu0 %v436
      %747 = vmatpush.msra.mxu0 %v435
      %748 = vmatpush.msra.mxu0 %v434
      %749 = vmatpush.msra.mxu0 %v433
      %750 = vmatpush.msra.mxu0 %v432
      %751 = vmatpush.msra.mxu0 %v431
      %752 = vmatpush.msra.mxu0 %v430
      %753 = vmatpush.msra.mxu0 %v429
      %754 = vmatpush.msra.mxu0 %v428
      %755 = vmatpush.msra.mxu0 %v427
      %756 = vmatpush.msra.mxu0 %v426
      %757 = vmatpush.msra.mxu0 %v425
      %758 = vmatpush.msra.mxu0 %v424
      %759 = vmatmul.f32.gmra.mxu0 %v247
      %v760 = vpop.f32.mrf.mxu0
      %v761 = vadd.f32 %v720, %v760
      %762 = vmatmul.f32.gmra.mxu0 %v256
      %v763 = vpop.f32.mrf.mxu0
      %v764 = vadd.f32 %v723, %v763
      %765 = vmatmul.f32.gmra.mxu0 %v265
      %v766 = vpop.f32.mrf.mxu0
      %v767 = vadd.f32 %v726, %v766
      %768 = vmatmul.f32.gmra.mxu0 %v274
      %v769 = vpop.f32.mrf.mxu0
      %v770 = vadd.f32 %v729, %v769
      %771 = vmatmul.f32.gmra.mxu0 %v283
      %v772 = vpop.f32.mrf.mxu0
      %v773 = vadd.f32 %v732, %v772
      %774 = vmatmul.f32.gmra.mxu0 %v292
      %v775 = vpop.f32.mrf.mxu0
      %v776 = vadd.f32 %v735, %v775
      %777 = vmatmul.f32.gmra.mxu0 %v301
      %v778 = vpop.f32.mrf.mxu0
      %v779 = vadd.f32 %v738, %v778
      %780 = vmatmul.f32.gmra.mxu0 %v310
      %v781 = vpop.f32.mrf.mxu0
      %v782 = vadd.f32 %v741, %v781
      %783 = vdwg.mxu0
      %784 = vmatpush.msra.mxu0 %v455
      %785 = vmatpush.msra.mxu0 %v454
      %786 = vmatpush.msra.mxu0 %v453
      %787 = vmatpush.msra.mxu0 %v452
      %788 = vmatpush.msra.mxu0 %v451
      %789 = vmatpush.msra.mxu0 %v450
      %790 = vmatpush.msra.mxu0 %v449
      %791 = vmatpush.msra.mxu0 %v448
      %792 = vmatpush.msra.mxu0 %v447
      %793 = vmatpush.msra.mxu0 %v446
      %794 = vmatpush.msra.mxu0 %v445
      %795 = vmatpush.msra.mxu0 %v444
      %796 = vmatpush.msra.mxu0 %v443
      %797 = vmatpush.msra.mxu0 %v442
      %798 = vmatpush.msra.mxu0 %v441
      %799 = vmatpush.msra.mxu0 %v440
      %800 = vmatmul.f32.gmra.mxu0 %v248
      %v801 = vpop.f32.mrf.mxu0
      %v802 = vadd.f32 %v761, %v801
      %803 = vmatmul.f32.gmra.mxu0 %v257
      %v804 = vpop.f32.mrf.mxu0
      %v805 = vadd.f32 %v764, %v804
      %806 = vmatmul.f32.gmra.mxu0 %v266
      %v807 = vpop.f32.mrf.mxu0
      %v808 = vadd.f32 %v767, %v807
      %809 = vmatmul.f32.gmra.mxu0 %v275
      %v810 = vpop.f32.mrf.mxu0
      %v811 = vadd.f32 %v770, %v810
      %812 = vmatmul.f32.gmra.mxu0 %v284
      %v813 = vpop.f32.mrf.mxu0
      %v814 = vadd.f32 %v773, %v813
      %815 = vmatmul.f32.gmra.mxu0 %v293
      %v816 = vpop.f32.mrf.mxu0
      %v817 = vadd.f32 %v776, %v816
      %818 = vmatmul.f32.gmra.mxu0 %v302
      %v819 = vpop.f32.mrf.mxu0
      %v820 = vadd.f32 %v779, %v819
      %821 = vmatmul.f32.gmra.mxu0 %v311
      %v822 = vpop.f32.mrf.mxu0
      %v823 = vadd.f32 %v782, %v822
      %824 = vdwg.mxu0
      %v825 = vld [vmem:[%s2] sm:$0x1]
      %v827 = vperm.slane %v825, 0
      %v829 = vmul.f32 %v802, %v827
      %v830 = vmul.f32 %v805, %v827
      %v831 = vmul.f32 %v808, %v827
      %v832 = vmul.f32 %v811, %v827
      %v833 = vmul.f32 %v814, %v827
      %v834 = vmul.f32 %v817, %v827
      %v835 = vmul.f32 %v820, %v827
      %v836 = vmul.f32 %v823, %v827
      %v837 = vld [vmem:[%s3] sm:$0x1]
      %v839 = vperm.slane %v837, 0
      %v841 = vadd.f32 %v829, %v839
      %v842 = vadd.f32 %v830, %v839
      %v843 = vadd.f32 %v831, %v839
      %v844 = vadd.f32 %v832, %v839
      %v845 = vadd.f32 %v833, %v839
      %v846 = vadd.f32 %v834, %v839
      %v847 = vadd.f32 %v835, %v839
      %v848 = vadd.f32 %v836, %v839
      %v849 = vmax.f32 %v841, 0.0
      %v850 = vmax.f32 %v842, 0.0
      %v851 = vmax.f32 %v843, 0.0
      %v852 = vmax.f32 %v844, 0.0
      %v853 = vmax.f32 %v845, 0.0
      %v854 = vmax.f32 %v846, 0.0
      %v855 = vmax.f32 %v847, 0.0
      %v856 = vmax.f32 %v848, 0.0
      %857 = vst [vmem:[%s238] sm:$0xff] %v849
      %858 = vst [vmem:[%s238 + $0x8] sm:$0xff] %v850
      %859 = vst [vmem:[%s238 + $0x10] sm:$0xff] %v851
      %860 = vst [vmem:[%s238 + $0x18] sm:$0xff] %v852
      %861 = vst [vmem:[%s238 + $0x20] sm:$0xff] %v853
      %862 = vst [vmem:[%s238 + $0x28] sm:$0xff] %v854
      %863 = vst [vmem:[%s238 + $0x30] sm:$0xff] %v855
      %864 = vst [vmem:[%s238 + $0x38] sm:$0xff] %v856
      %s865 = smul.u32 8, %s20
      %p866 = scmp.lt.s32.totalorder %s19, 1
      %s867 = scalar_select %p866, %s19, 1
      %p868 = scmp.lt.s32.totalorder %s865, 7
      %s869 = scalar_select %p868, %s865, 7
      %s870 = smul.addr %s867, 8
      %s871 = sadd.s32 %s869, %s870
      %s872 = smul.addr %s871, 8
      %s873 = scalar_lea.vmem %s4, %s872
      // Predicated region
      $region37: #{_lambda_.8} parent=35 // pred_check
        %p874 = pneg %p138
      $region38: #{_lambda_.8} parent=35 // pred_check_branch
        %876 = sbr.rel (%p874) target = $region40
      $region39: #{_lambda_.8} parent=35 // pred_region
        %s877 = smul.u32 8, %s20
      $region40: #{_lambda_.8} parent=35 // pred_fallthru
        _
    $region36: #{_lambda_.8} parent=5 // pred_fallthru
      _
    %p878 = scmp.le.s32.totalorder 2, %s10
    // Predicated region
    $region41: #{_lambda_.8} parent=5 // pred_check
      %p879 = pneg %p878
    $region42: #{_lambda_.8} parent=5 // pred_check_branch
      %881 = sbr.rel (%p879) target = $region44
    $region43: #{_lambda_.8} parent=5 // pred_region
      %s882 = ssub.s32 %s10, 2
      // Predicated region
      $region45: #{_lambda_.8} parent=43 // pred_check
        %p883 = pneg %p144
      $region46: #{_lambda_.8} parent=43 // pred_check_branch
        %885 = sbr.rel (%p883) target = $region48
      $region47: #{_lambda_.8} parent=43 // pred_region
        %s886 = smul.u32 8, %s22
        %p887 = scmp.lt.s32.totalorder %s21, 1
        %s888 = scalar_select %p887, %s21, 1
        %p889 = scmp.lt.s32.totalorder %s886, 7
        %s890 = scalar_select %p889, %s886, 7
        %s891 = smul.addr %s888, 8
        %s892 = sadd.s32 %s890, %s891
        %s893 = smul.addr %s892, 8
        %s894 = scalar_lea.vmem %s4, %s893
      $region48: #{_lambda_.8} parent=43 // pred_fallthru
        _
    $region44: #{_lambda_.8} parent=5 // pred_fallthru
      _
  $region6: #{_lambda_.8} parent=0 // loop_footer
    %s14 = sadd.s32 1, %s10
  $region7: #{_lambda_.8} parent=0 // loop_footer_branch
    %9 = sbr.rel target = $region3
  $region8: #{_lambda_.8} parent=0 // loop_exit
    _

// kernel: _lambda_.9
$region0: #{_lambda_.9}
  #allocation0 [shape = 'u32[]', space=smem, size = 0x4, offset = 0x4, fixed_abs, tag = 'smem constant byte address 0x4 - core index']
  #allocation1 [shape = 'u32[72,128]{1,0:T(1,128)}', space=vmem, size = 0x9000, scoped, tag = 'internal scratch']
  %s0 = inlined_call_operand.vmem [shape: f32[2,16,1152], index: 0, kind: input, shape index: {}]
  %s1 = inlined_call_operand.vmem [shape: f32[1152,128], index: 1, kind: input, shape index: {}]
  %s2 = inlined_call_operand.vmem [shape: f32[1,128], index: 2, kind: input, shape index: {}]
  %s3 = inlined_call_operand.vmem [shape: f32[1,128], index: 3, kind: input, shape index: {}]
  %s4 = inlined_call_operand.vmem [shape: f32[2,16,128], index: 4, kind: output, shape index: {}]
  %s5 = sld [smem:[#allocation0]]
  $region49: #{_lambda_.9} parent=0
    _
  %s7 = ssub.s32 1, %s5
  %s8 = scalar_select 0, %s7, %s5
  loop: start=0, step=1, limit=4
  $region2: #{_lambda_.9} parent=0 // loop_pre_header
    _
  $region3: #{_lambda_.9} parent=0 // loop_header
    %s10 = sphi 0, %s14
    %p11 = scmp.ge.s32.totalorder %s10, 4
    %s17 = sphi 0, %s29
    %s18 = sphi 0, %s25
    %s19 = sphi 0, %s17
    %s20 = sphi 0, %s18
    %s21 = sphi 0, %s19
    %s22 = sphi 0, %s20
    %s34 = sphi 0, %s36
    %s37 = sphi 0, %s34
    %s38 = sphi 0, %s37
    %s54 = sphi 0, %s38
    %s58 = sphi 0, %s58
    %s60 = sphi 0, %s58
    %s61 = sphi 0, %s60
    %s75 = sphi 0, %s61
    %s79 = sphi 0, %s79
    %s81 = sphi 0, %s79
    %s82 = sphi 0, %s81
    %s96 = sphi 0, %s82
    %s100 = sphi 0, %s100
    %s102 = sphi 0, %s100
    %s103 = sphi 0, %s102
    %s117 = sphi 0, %s103
    %s125 = sphi 0, %s127
    %s128 = sphi 0, %s125
    %s129 = sphi 0, %s128
    %s145 = sphi 0, %s129
  $region4: #{_lambda_.9} parent=0 // loop_header_branch
    %13 = sbr.rel (%p11) target = $region8
  $region5: #{_lambda_.9} parent=0 // loop_body
    %s15 = ssub.s32 %s10, 1
    %s16 = ssub.s32 %s10, 2
    %s23 = sadd.s32 1, %s18
    %p24 = scmp.ge.s32.totalorder %s23, 1
    %s25 = scalar_select %p24, 0, %s23
    %s26 = sadd.s32 1, %s17
    %s27 = scalar_select %p24, %s26, %s17
    %p28 = scmp.ge.s32.totalorder %s27, 2
    %s29 = scalar_select %p28, 0, %s27
    %s30 = ssub.s32 %s17, %s29
    %s31 = ssub.s32 %s18, %s25
    %s32 = sor.u32 %s30, %s31
    %p33 = scmp.eq.s32.totalorder %s32, 0
    %s35 = sadd.s32 %s34, 1
    %s36 = scalar_select %p33, %s34, %s35
    %p39 = pneg %p33
    %p40 = scmp.eq.s32.totalorder %s10, 1
    %p41 = por %p39, %p40
    %p42 = scmp.ne.s32.totalorder %s34, %s37
    %p43 = scmp.eq.s32.totalorder %s10, 0
    %p44 = por %p42, %p43
    %p45 = scmp.ne.s32.totalorder %s34, %s37
    %p46 = scmp.eq.s32.totalorder %s15, 1
    %p47 = por %p45, %p46
    %p48 = scmp.ne.s32.totalorder %s37, %s38
    %p49 = scmp.eq.s32.totalorder %s15, 0
    %p50 = por %p48, %p49
    %p51 = scmp.ne.s32.totalorder %s37, %s38
    %p52 = scmp.eq.s32.totalorder %s16, 1
    %p53 = por %p51, %p52
    %p55 = scmp.ne.s32.totalorder %s38, %s54
    %p56 = scmp.eq.s32.totalorder %s16, 0
    %p57 = por %p55, %p56
    %s59 = sadd.s32 %s58, 1
    %p62 = scmp.eq.s32.totalorder %s10, 1
    %p63 = scmp.ne.s32.totalorder %s58, %s60
    %p64 = scmp.eq.s32.totalorder %s10, 0
    %p65 = por %p63, %p64
    %p66 = scmp.ne.s32.totalorder %s58, %s60
    %p67 = scmp.eq.s32.totalorder %s15, 1
    %p68 = por %p66, %p67
    %p69 = scmp.ne.s32.totalorder %s60, %s61
    %p70 = scmp.eq.s32.totalorder %s15, 0
    %p71 = por %p69, %p70
    %p72 = scmp.ne.s32.totalorder %s60, %s61
    %p73 = scmp.eq.s32.totalorder %s16, 1
    %p74 = por %p72, %p73
    %p76 = scmp.ne.s32.totalorder %s61, %s75
    %p77 = scmp.eq.s32.totalorder %s16, 0
    %p78 = por %p76, %p77
    %s80 = sadd.s32 %s79, 1
    %p83 = scmp.eq.s32.totalorder %s10, 1
    %p84 = scmp.ne.s32.totalorder %s79, %s81
    %p85 = scmp.eq.s32.totalorder %s10, 0
    %p86 = por %p84, %p85
    %p87 = scmp.ne.s32.totalorder %s79, %s81
    %p88 = scmp.eq.s32.totalorder %s15, 1
    %p89 = por %p87, %p88
    %p90 = scmp.ne.s32.totalorder %s81, %s82
    %p91 = scmp.eq.s32.totalorder %s15, 0
    %p92 = por %p90, %p91
    %p93 = scmp.ne.s32.totalorder %s81, %s82
    %p94 = scmp.eq.s32.totalorder %s16, 1
    %p95 = por %p93, %p94
    %p97 = scmp.ne.s32.totalorder %s82, %s96
    %p98 = scmp.eq.s32.totalorder %s16, 0
    %p99 = por %p97, %p98
    %s101 = sadd.s32 %s100, 1
    %p104 = scmp.eq.s32.totalorder %s10, 1
    %p105 = scmp.ne.s32.totalorder %s100, %s102
    %p106 = scmp.eq.s32.totalorder %s10, 0
    %p107 = por %p105, %p106
    %p108 = scmp.ne.s32.totalorder %s100, %s102
    %p109 = scmp.eq.s32.totalorder %s15, 1
    %p110 = por %p108, %p109
    %p111 = scmp.ne.s32.totalorder %s102, %s103
    %p112 = scmp.eq.s32.totalorder %s15, 0
    %p113 = por %p111, %p112
    %p114 = scmp.ne.s32.totalorder %s102, %s103
    %p115 = scmp.eq.s32.totalorder %s16, 1
    %p116 = por %p114, %p115
    %p118 = scmp.ne.s32.totalorder %s103, %s117
    %p119 = scmp.eq.s32.totalorder %s16, 0
    %p120 = por %p118, %p119
    %s121 = ssub.s32 %s17, %s29
    %s122 = ssub.s32 %s18, %s25
    %s123 = sor.u32 %s121, %s122
    %p124 = scmp.eq.s32.totalorder %s123, 0
    %s126 = sadd.s32 %s125, 1
    %s127 = scalar_select %p124, %s125, %s126
    %p130 = pneg %p124
    %p131 = scmp.eq.s32.totalorder %s10, 1
    %p132 = por %p130, %p131
    %p133 = scmp.ne.s32.totalorder %s125, %s128
    %p134 = scmp.eq.s32.totalorder %s10, 0
    %p135 = por %p133, %p134
    %p136 = scmp.ne.s32.totalorder %s125, %s128
    %p137 = scmp.eq.s32.totalorder %s15, 1
    %p138 = por %p136, %p137
    %p139 = scmp.ne.s32.totalorder %s128, %s129
    %p140 = scmp.eq.s32.totalorder %s15, 0
    %p141 = por %p139, %p140
    %p142 = scmp.ne.s32.totalorder %s128, %s129
    %p143 = scmp.eq.s32.totalorder %s16, 1
    %p144 = por %p142, %p143
    %p146 = scmp.ne.s32.totalorder %s129, %s145
    %p147 = scmp.eq.s32.totalorder %s16, 0
    %p148 = por %p146, %p147
    %p149 = scmp.le.s32.totalorder 1, %s10
    %p150 = scmp.lt.s32.totalorder %s10, 3
    %p151 = pnand %p149, %p150
    %p152 = pneg %p151
    // Predicated region
    $region9: #{_lambda_.9} parent=5 // pred_check
      _
    $region10: #{_lambda_.9} parent=5 // pred_check_branch
      %154 = sbr.rel (%p151) target = $region12
    $region11: #{_lambda_.9} parent=5 // pred_region
      %s155 = ssub.s32 %s10, 1
      // Predicated region
      $region13: #{_lambda_.9} parent=11 // pred_check
        %p156 = pneg %p71
      $region14: #{_lambda_.9} parent=11 // pred_check_branch
        %158 = sbr.rel (%p156) target = $region16
      $region15: #{_lambda_.9} parent=11 // pred_region
        _
      $region16: #{_lambda_.9} parent=11 // pred_fallthru
        _
      // Predicated region
      $region17: #{_lambda_.9} parent=11 // pred_check
        %p159 = pneg %p92
      $region18: #{_lambda_.9} parent=11 // pred_check_branch
        %161 = sbr.rel (%p159) target = $region20
      $region19: #{_lambda_.9} parent=11 // pred_region
        _
      $region20: #{_lambda_.9} parent=11 // pred_fallthru
        _
      // Predicated region
      $region21: #{_lambda_.9} parent=11 // pred_check
        %p162 = pneg %p113
      $region22: #{_lambda_.9} parent=11 // pred_check_branch
        %164 = sbr.rel (%p162) target = $region24
      $region23: #{_lambda_.9} parent=11 // pred_region
        _
      $region24: #{_lambda_.9} parent=11 // pred_fallthru
        _
    $region12: #{_lambda_.9} parent=5 // pred_fallthru
      _
    %p165 = scmp.lt.s32.totalorder %s10, 2
    // Predicated region
    $region25: #{_lambda_.9} parent=5 // pred_check
      %p166 = pneg %p165
    $region26: #{_lambda_.9} parent=5 // pred_check_branch
      %168 = sbr.rel (%p166) target = $region28
    $region27: #{_lambda_.9} parent=5 // pred_region
      // Predicated region
      $region29: #{_lambda_.9} parent=27 // pred_check
        %p169 = pneg %p44
      $region30: #{_lambda_.9} parent=27 // pred_check_branch
        %171 = sbr.rel (%p169) target = $region32
      $region31: #{_lambda_.9} parent=27 // pred_region
        %s172 = smul.u32 2, %s18
        %p173 = scmp.lt.s32.totalorder %s17, 1
        %s174 = scalar_select %p173, %s17, 1
        %p175 = scmp.lt.s32.totalorder %s172, 1
        %s176 = scalar_select %p175, %s172, 1
        %s177 = smul.addr %s176, 9
        %s178 = smul.addr %s174, 18
        %s179 = sadd.s32 %s177, %s178
        %s180 = smul.addr %s179, 8
        %s181 = scalar_lea.vmem %s0, %s180
        %s182 = smul.u32 2, %s18
      $region32: #{_lambda_.9} parent=27 // pred_fallthru
        _
    $region28: #{_lambda_.9} parent=5 // pred_fallthru
      _
    %p183 = scmp.le.s32.totalorder 1, %s10
    %p184 = scmp.lt.s32.totalorder %s10, 3
    %p185 = pnand %p183, %p184
    %p186 = pneg %p185
    // Predicated region
    $region33: #{_lambda_.9} parent=5 // pred_check
      _
    $region34: #{_lambda_.9} parent=5 // pred_check_branch
      %188 = sbr.rel (%p185) target = $region36
    $region35: #{_lambda_.9} parent=5 // pred_region
      %s189 = ssub.s32 %s10, 1
      %s190 = smul.u32 2, %s20
      %p191 = scmp.lt.s32.totalorder %s19, 1
      %s192 = scalar_select %p191, %s19, 1
      %p193 = scmp.lt.s32.totalorder %s190, 1
      %s194 = scalar_select %p193, %s190, 1
      %s195 = smul.addr %s194, 9
      %s196 = smul.addr %s192, 18
      %s197 = sadd.s32 %s195, %s196
      %s198 = smul.addr %s197, 8
      %s199 = scalar_lea.vmem %s0, %s198
      %p200 = pneg %p50
      %p201 = pneg %p47
      %p202 = pneg %p71
      %p203 = pneg %p68
      %p204 = pneg %p92
      %p205 = pneg %p89
      %p206 = pneg %p113
      %p207 = pneg %p110
      %p208 = pneg %p141
      %p209 = pneg %p138
      %s210 = smul.u32 2, %s20
      %p211 = scmp.lt.s32.totalorder %s19, 1
      %s212 = scalar_select %p211, %s19, 1
      %p213 = scmp.lt.s32.totalorder %s210, 1
      %s214 = scalar_select %p213, %s210, 1
      %s215 = smul.addr %s212, 2
      %s216 = sadd.s32 %s214, %s215
      %s217 = smul.addr %s216, 8
      %s218 = scalar_lea.vmem %s4, %s217
      %s219 = smul.u32 2, %s20
      %p220 = scmp.lt.s32.totalorder %s19, 1
      %s221 = scalar_select %p220, %s19, 1
      %p222 = scmp.lt.s32.totalorder %s219, 1
      %s223 = scalar_select %p222, %s219, 1
      %s224 = smul.addr %s223, 9
      %s225 = smul.addr %s221, 18
      %s226 = sadd.s32 %s224, %s225
      %s227 = smul.addr %s226, 8
      %s228 = scalar_lea.vmem %s0, %s227
      %s229 = smul.u32 2, %s20
      %s230 = smul.u32 2, %s20
      %p231 = scmp.lt.s32.totalorder %s19, 1
      %s232 = scalar_select %p231, %s19, 1
      %p233 = scmp.lt.s32.totalorder %s230, 1
      %s234 = scalar_select %p233, %s230, 1
      %s235 = smul.addr %s232, 2
      %s236 = sadd.s32 %s234, %s235
      %s237 = smul.addr %s236, 8
      %s238 = scalar_lea.vmem %s4, %s237
      %s239 = smul.u32 2, %s20
      %v240 = vld [vmem:[%s228] sm:$0xff]
      %v241 = vld [vmem:[%s228 + $0x8] sm:$0xff]
      %v242 = vld [vmem:[%s228 + $0x10] sm:$0xff]
      %v243 = vld [vmem:[%s228 + $0x18] sm:$0xff]
      %v244 = vld [vmem:[%s228 + $0x20] sm:$0xff]
      %v245 = vld [vmem:[%s228 + $0x28] sm:$0xff]
      %v246 = vld [vmem:[%s228 + $0x30] sm:$0xff]
      %v247 = vld [vmem:[%s228 + $0x38] sm:$0xff]
      %v248 = vld [vmem:[%s228 + $0x40] sm:$0xff]
      %v249 = vld [vmem:[%s228 + $0x48] sm:$0xff]
      %v250 = vld [vmem:[%s228 + $0x50] sm:$0xff]
      %v251 = vld [vmem:[%s228 + $0x58] sm:$0xff]
      %v252 = vld [vmem:[%s228 + $0x60] sm:$0xff]
      %v253 = vld [vmem:[%s228 + $0x68] sm:$0xff]
      %v254 = vld [vmem:[%s228 + $0x70] sm:$0xff]
      %v255 = vld [vmem:[%s228 + $0x78] sm:$0xff]
      %v256 = vld [vmem:[%s228 + $0x80] sm:$0xff]
      %v257 = vld [vmem:[%s228 + $0x88] sm:$0xff]
      %v258 = vld [vmem:[%s1] sm:$0xff]
      %v259 = vld [vmem:[%s1 + $0x8] sm:$0xff]
      %v260 = vld [vmem:[%s1 + $0x10] sm:$0xff]
      %v261 = vld [vmem:[%s1 + $0x18] sm:$0xff]
      %v262 = vld [vmem:[%s1 + $0x20] sm:$0xff]
      %v263 = vld [vmem:[%s1 + $0x28] sm:$0xff]
      %v264 = vld [vmem:[%s1 + $0x30] sm:$0xff]
      %v265 = vld [vmem:[%s1 + $0x38] sm:$0xff]
      %v266 = vld [vmem:[%s1 + $0x40] sm:$0xff]
      %v267 = vld [vmem:[%s1 + $0x48] sm:$0xff]
      %v268 = vld [vmem:[%s1 + $0x50] sm:$0xff]
      %v269 = vld [vmem:[%s1 + $0x58] sm:$0xff]
      %v270 = vld [vmem:[%s1 + $0x60] sm:$0xff]
      %v271 = vld [vmem:[%s1 + $0x68] sm:$0xff]
      %v272 = vld [vmem:[%s1 + $0x70] sm:$0xff]
      %v273 = vld [vmem:[%s1 + $0x78] sm:$0xff]
      %v274 = vld [vmem:[%s1 + $0x80] sm:$0xff]
      %v275 = vld [vmem:[%s1 + $0x88] sm:$0xff]
      %v276 = vld [vmem:[%s1 + $0x90] sm:$0xff]
      %v277 = vld [vmem:[%s1 + $0x98] sm:$0xff]
      %v278 = vld [vmem:[%s1 + $0xa0] sm:$0xff]
      %v279 = vld [vmem:[%s1 + $0xa8] sm:$0xff]
      %v280 = vld [vmem:[%s1 + $0xb0] sm:$0xff]
      %v281 = vld [vmem:[%s1 + $0xb8] sm:$0xff]
      %v282 = vld [vmem:[%s1 + $0xc0] sm:$0xff]
      %v283 = vld [vmem:[%s1 + $0xc8] sm:$0xff]
      %v284 = vld [vmem:[%s1 + $0xd0] sm:$0xff]
      %v285 = vld [vmem:[%s1 + $0xd8] sm:$0xff]
      %v286 = vld [vmem:[%s1 + $0xe0] sm:$0xff]
      %v287 = vld [vmem:[%s1 + $0xe8] sm:$0xff]
      %v288 = vld [vmem:[%s1 + $0xf0] sm:$0xff]
      %v289 = vld [vmem:[%s1 + $0xf8] sm:$0xff]
      %v290 = vld [vmem:[%s1 + $0x100] sm:$0xff]
      %v291 = vld [vmem:[%s1 + $0x108] sm:$0xff]
      %v292 = vld [vmem:[%s1 + $0x110] sm:$0xff]
      %v293 = vld [vmem:[%s1 + $0x118] sm:$0xff]
      %v294 = vld [vmem:[%s1 + $0x120] sm:$0xff]
      %v295 = vld [vmem:[%s1 + $0x128] sm:$0xff]
      %v296 = vld [vmem:[%s1 + $0x130] sm:$0xff]
      %v297 = vld [vmem:[%s1 + $0x138] sm:$0xff]
      %v298 = vld [vmem:[%s1 + $0x140] sm:$0xff]
      %v299 = vld [vmem:[%s1 + $0x148] sm:$0xff]
      %v300 = vld [vmem:[%s1 + $0x150] sm:$0xff]
      %v301 = vld [vmem:[%s1 + $0x158] sm:$0xff]
      %v302 = vld [vmem:[%s1 + $0x160] sm:$0xff]
      %v303 = vld [vmem:[%s1 + $0x168] sm:$0xff]
      %v304 = vld [vmem:[%s1 + $0x170] sm:$0xff]
      %v305 = vld [vmem:[%s1 + $0x178] sm:$0xff]
      %v306 = vld [vmem:[%s1 + $0x180] sm:$0xff]
      %v307 = vld [vmem:[%s1 + $0x188] sm:$0xff]
      %v308 = vld [vmem:[%s1 + $0x190] sm:$0xff]
      %v309 = vld [vmem:[%s1 + $0x198] sm:$0xff]
      %v310 = vld [vmem:[%s1 + $0x1a0] sm:$0xff]
      %v311 = vld [vmem:[%s1 + $0x1a8] sm:$0xff]
      %v312 = vld [vmem:[%s1 + $0x1b0] sm:$0xff]
      %v313 = vld [vmem:[%s1 + $0x1b8] sm:$0xff]
      %v314 = vld [vmem:[%s1 + $0x1c0] sm:$0xff]
      %v315 = vld [vmem:[%s1 + $0x1c8] sm:$0xff]
      %v316 = vld [vmem:[%s1 + $0x1d0] sm:$0xff]
      %v317 = vld [vmem:[%s1 + $0x1d8] sm:$0xff]
      %v318 = vld [vmem:[%s1 + $0x1e0] sm:$0xff]
      %v319 = vld [vmem:[%s1 + $0x1e8] sm:$0xff]
      %v320 = vld [vmem:[%s1 + $0x1f0] sm:$0xff]
      %v321 = vld [vmem:[%s1 + $0x1f8] sm:$0xff]
      %v322 = vld [vmem:[%s1 + $0x200] sm:$0xff]
      %v323 = vld [vmem:[%s1 + $0x208] sm:$0xff]
      %v324 = vld [vmem:[%s1 + $0x210] sm:$0xff]
      %v325 = vld [vmem:[%s1 + $0x218] sm:$0xff]
      %v326 = vld [vmem:[%s1 + $0x220] sm:$0xff]
      %v327 = vld [vmem:[%s1 + $0x228] sm:$0xff]
      %v328 = vld [vmem:[%s1 + $0x230] sm:$0xff]
      %v329 = vld [vmem:[%s1 + $0x238] sm:$0xff]
      %v330 = vld [vmem:[%s1 + $0x240] sm:$0xff]
      %v331 = vld [vmem:[%s1 + $0x248] sm:$0xff]
      %v332 = vld [vmem:[%s1 + $0x250] sm:$0xff]
      %v333 = vld [vmem:[%s1 + $0x258] sm:$0xff]
      %v334 = vld [vmem:[%s1 + $0x260] sm:$0xff]
      %v335 = vld [vmem:[%s1 + $0x268] sm:$0xff]
      %v336 = vld [vmem:[%s1 + $0x270] sm:$0xff]
      %v337 = vld [vmem:[%s1 + $0x278] sm:$0xff]
      %v338 = vld [vmem:[%s1 + $0x280] sm:$0xff]
      %v339 = vld [vmem:[%s1 + $0x288] sm:$0xff]
      %v340 = vld [vmem:[%s1 + $0x290] sm:$0xff]
      %v341 = vld [vmem:[%s1 + $0x298] sm:$0xff]
      %v342 = vld [vmem:[%s1 + $0x2a0] sm:$0xff]
      %v343 = vld [vmem:[%s1 + $0x2a8] sm:$0xff]
      %v344 = vld [vmem:[%s1 + $0x2b0] sm:$0xff]
      %v345 = vld [vmem:[%s1 + $0x2b8] sm:$0xff]
      %v346 = vld [vmem:[%s1 + $0x2c0] sm:$0xff]
      %v347 = vld [vmem:[%s1 + $0x2c8] sm:$0xff]
      %v348 = vld [vmem:[%s1 + $0x2d0] sm:$0xff]
      %v349 = vld [vmem:[%s1 + $0x2d8] sm:$0xff]
      %v350 = vld [vmem:[%s1 + $0x2e0] sm:$0xff]
      %v351 = vld [vmem:[%s1 + $0x2e8] sm:$0xff]
      %v352 = vld [vmem:[%s1 + $0x2f0] sm:$0xff]
      %v353 = vld [vmem:[%s1 + $0x2f8] sm:$0xff]
      %v354 = vld [vmem:[%s1 + $0x300] sm:$0xff]
      %v355 = vld [vmem:[%s1 + $0x308] sm:$0xff]
      %v356 = vld [vmem:[%s1 + $0x310] sm:$0xff]
      %v357 = vld [vmem:[%s1 + $0x318] sm:$0xff]
      %v358 = vld [vmem:[%s1 + $0x320] sm:$0xff]
      %v359 = vld [vmem:[%s1 + $0x328] sm:$0xff]
      %v360 = vld [vmem:[%s1 + $0x330] sm:$0xff]
      %v361 = vld [vmem:[%s1 + $0x338] sm:$0xff]
      %v362 = vld [vmem:[%s1 + $0x340] sm:$0xff]
      %v363 = vld [vmem:[%s1 + $0x348] sm:$0xff]
      %v364 = vld [vmem:[%s1 + $0x350] sm:$0xff]
      %v365 = vld [vmem:[%s1 + $0x358] sm:$0xff]
      %v366 = vld [vmem:[%s1 + $0x360] sm:$0xff]
      %v367 = vld [vmem:[%s1 + $0x368] sm:$0xff]
      %v368 = vld [vmem:[%s1 + $0x370] sm:$0xff]
      %v369 = vld [vmem:[%s1 + $0x378] sm:$0xff]
      %v370 = vld [vmem:[%s1 + $0x380] sm:$0xff]
      %v371 = vld [vmem:[%s1 + $0x388] sm:$0xff]
      %v372 = vld [vmem:[%s1 + $0x390] sm:$0xff]
      %v373 = vld [vmem:[%s1 + $0x398] sm:$0xff]
      %v374 = vld [vmem:[%s1 + $0x3a0] sm:$0xff]
      %v375 = vld [vmem:[%s1 + $0x3a8] sm:$0xff]
      %v376 = vld [vmem:[%s1 + $0x3b0] sm:$0xff]
      %v377 = vld [vmem:[%s1 + $0x3b8] sm:$0xff]
      %v378 = vld [vmem:[%s1 + $0x3c0] sm:$0xff]
      %v379 = vld [vmem:[%s1 + $0x3c8] sm:$0xff]
      %v380 = vld [vmem:[%s1 + $0x3d0] sm:$0xff]
      %v381 = vld [vmem:[%s1 + $0x3d8] sm:$0xff]
      %v382 = vld [vmem:[%s1 + $0x3e0] sm:$0xff]
      %v383 = vld [vmem:[%s1 + $0x3e8] sm:$0xff]
      %v384 = vld [vmem:[%s1 + $0x3f0] sm:$0xff]
      %v385 = vld [vmem:[%s1 + $0x3f8] sm:$0xff]
      %v386 = vld [vmem:[%s1 + $0x400] sm:$0xff]
      %v387 = vld [vmem:[%s1 + $0x408] sm:$0xff]
      %v388 = vld [vmem:[%s1 + $0x410] sm:$0xff]
      %v389 = vld [vmem:[%s1 + $0x418] sm:$0xff]
      %v390 = vld [vmem:[%s1 + $0x420] sm:$0xff]
      %v391 = vld [vmem:[%s1 + $0x428] sm:$0xff]
      %v392 = vld [vmem:[%s1 + $0x430] sm:$0xff]
      %v393 = vld [vmem:[%s1 + $0x438] sm:$0xff]
      %v394 = vld [vmem:[%s1 + $0x440] sm:$0xff]
      %v395 = vld [vmem:[%s1 + $0x448] sm:$0xff]
      %v396 = vld [vmem:[%s1 + $0x450] sm:$0xff]
      %v397 = vld [vmem:[%s1 + $0x458] sm:$0xff]
      %v398 = vld [vmem:[%s1 + $0x460] sm:$0xff]
      %v399 = vld [vmem:[%s1 + $0x468] sm:$0xff]
      %v400 = vld [vmem:[%s1 + $0x470] sm:$0xff]
      %v401 = vld [vmem:[%s1 + $0x478] sm:$0xff]
      %402 = vmatpush.msra.mxu0 %v273
      %403 = vmatpush.msra.mxu0 %v272
      %404 = vmatpush.msra.mxu0 %v271
      %405 = vmatpush.msra.mxu0 %v270
      %406 = vmatpush.msra.mxu0 %v269
      %407 = vmatpush.msra.mxu0 %v268
      %408 = vmatpush.msra.mxu0 %v267
      %409 = vmatpush.msra.mxu0 %v266
      %410 = vmatpush.msra.mxu0 %v265
      %411 = vmatpush.msra.mxu0 %v264
      %412 = vmatpush.msra.mxu0 %v263
      %413 = vmatpush.msra.mxu0 %v262
      %414 = vmatpush.msra.mxu0 %v261
      %415 = vmatpush.msra.mxu0 %v260
      %416 = vmatpush.msra.mxu0 %v259
      %417 = vmatpush.msra.mxu0 %v258
      %418 = vmatmul.f32.gmra.mxu0 %v240
      %v419 = vpop.f32.mrf.mxu0
      %v420 = vadd.f32 0.0, %v419
      %421 = vmatmul.f32.gmra.mxu0 %v249
      %v422 = vpop.f32.mrf.mxu0
      %v423 = vadd.f32 0.0, %v422
      %424 = vdwg.mxu0
      %425 = vmatpush.msra.mxu0 %v289
      %426 = vmatpush.msra.mxu0 %v288
      %427 = vmatpush.msra.mxu0 %v287
      %428 = vmatpush.msra.mxu0 %v286
      %429 = vmatpush.msra.mxu0 %v285
      %430 = vmatpush.msra.mxu0 %v284
      %431 = vmatpush.msra.mxu0 %v283
      %432 = vmatpush.msra.mxu0 %v282
      %433 = vmatpush.msra.mxu0 %v281
      %434 = vmatpush.msra.mxu0 %v280
      %435 = vmatpush.msra.mxu0 %v279
      %436 = vmatpush.msra.mxu0 %v278
      %437 = vmatpush.msra.mxu0 %v277
      %438 = vmatpush.msra.mxu0 %v276
      %439 = vmatpush.msra.mxu0 %v275
      %440 = vmatpush.msra.mxu0 %v274
      %441 = vmatmul.f32.gmra.mxu0 %v241
      %v442 = vpop.f32.mrf.mxu0
      %v443 = vadd.f32 %v420, %v442
      %444 = vmatmul.f32.gmra.mxu0 %v250
      %v445 = vpop.f32.mrf.mxu0
      %v446 = vadd.f32 %v423, %v445
      %447 = vdwg.mxu0
      %448 = vmatpush.msra.mxu0 %v305
      %449 = vmatpush.msra.mxu0 %v304
      %450 = vmatpush.msra.mxu0 %v303
      %451 = vmatpush.msra.mxu0 %v302
      %452 = vmatpush.msra.mxu0 %v301
      %453 = vmatpush.msra.mxu0 %v300
      %454 = vmatpush.msra.mxu0 %v299
      %455 = vmatpush.msra.mxu0 %v298
      %456 = vmatpush.msra.mxu0 %v297
      %457 = vmatpush.msra.mxu0 %v296
      %458 = vmatpush.msra.mxu0 %v295
      %459 = vmatpush.msra.mxu0 %v294
      %460 = vmatpush.msra.mxu0 %v293
      %461 = vmatpush.msra.mxu0 %v292
      %462 = vmatpush.msra.mxu0 %v291
      %463 = vmatpush.msra.mxu0 %v290
      %464 = vmatmul.f32.gmra.mxu0 %v242
      %v465 = vpop.f32.mrf.mxu0
      %v466 = vadd.f32 %v443, %v465
      %467 = vmatmul.f32.gmra.mxu0 %v251
      %v468 = vpop.f32.mrf.mxu0
      %v469 = vadd.f32 %v446, %v468
      %470 = vdwg.mxu0
      %471 = vmatpush.msra.mxu0 %v321
      %472 = vmatpush.msra.mxu0 %v320
      %473 = vmatpush.msra.mxu0 %v319
      %474 = vmatpush.msra.mxu0 %v318
      %475 = vmatpush.msra.mxu0 %v317
      %476 = vmatpush.msra.mxu0 %v316
      %477 = vmatpush.msra.mxu0 %v315
      %478 = vmatpush.msra.mxu0 %v314
      %479 = vmatpush.msra.mxu0 %v313
      %480 = vmatpush.msra.mxu0 %v312
      %481 = vmatpush.msra.mxu0 %v311
      %482 = vmatpush.msra.mxu0 %v310
      %483 = vmatpush.msra.mxu0 %v309
      %484 = vmatpush.msra.mxu0 %v308
      %485 = vmatpush.msra.mxu0 %v307
      %486 = vmatpush.msra.mxu0 %v306
      %487 = vmatmul.f32.gmra.mxu0 %v243
      %v488 = vpop.f32.mrf.mxu0
      %v489 = vadd.f32 %v466, %v488
      %490 = vmatmul.f32.gmra.mxu0 %v252
      %v491 = vpop.f32.mrf.mxu0
      %v492 = vadd.f32 %v469, %v491
      %493 = vdwg.mxu0
      %494 = vmatpush.msra.mxu0 %v337
      %495 = vmatpush.msra.mxu0 %v336
      %496 = vmatpush.msra.mxu0 %v335
      %497 = vmatpush.msra.mxu0 %v334
      %498 = vmatpush.msra.mxu0 %v333
      %499 = vmatpush.msra.mxu0 %v332
      %500 = vmatpush.msra.mxu0 %v331
      %501 = vmatpush.msra.mxu0 %v330
      %502 = vmatpush.msra.mxu0 %v329
      %503 = vmatpush.msra.mxu0 %v328
      %504 = vmatpush.msra.mxu0 %v327
      %505 = vmatpush.msra.mxu0 %v326
      %506 = vmatpush.msra.mxu0 %v325
      %507 = vmatpush.msra.mxu0 %v324
      %508 = vmatpush.msra.mxu0 %v323
      %509 = vmatpush.msra.mxu0 %v322
      %510 = vmatmul.f32.gmra.mxu0 %v244
      %v511 = vpop.f32.mrf.mxu0
      %v512 = vadd.f32 %v489, %v511
      %513 = vmatmul.f32.gmra.mxu0 %v253
      %v514 = vpop.f32.mrf.mxu0
      %v515 = vadd.f32 %v492, %v514
      %516 = vdwg.mxu0
      %517 = vmatpush.msra.mxu0 %v353
      %518 = vmatpush.msra.mxu0 %v352
      %519 = vmatpush.msra.mxu0 %v351
      %520 = vmatpush.msra.mxu0 %v350
      %521 = vmatpush.msra.mxu0 %v349
      %522 = vmatpush.msra.mxu0 %v348
      %523 = vmatpush.msra.mxu0 %v347
      %524 = vmatpush.msra.mxu0 %v346
      %525 = vmatpush.msra.mxu0 %v345
      %526 = vmatpush.msra.mxu0 %v344
      %527 = vmatpush.msra.mxu0 %v343
      %528 = vmatpush.msra.mxu0 %v342
      %529 = vmatpush.msra.mxu0 %v341
      %530 = vmatpush.msra.mxu0 %v340
      %531 = vmatpush.msra.mxu0 %v339
      %532 = vmatpush.msra.mxu0 %v338
      %533 = vmatmul.f32.gmra.mxu0 %v245
      %v534 = vpop.f32.mrf.mxu0
      %v535 = vadd.f32 %v512, %v534
      %536 = vmatmul.f32.gmra.mxu0 %v254
      %v537 = vpop.f32.mrf.mxu0
      %v538 = vadd.f32 %v515, %v537
      %539 = vdwg.mxu0
      %540 = vmatpush.msra.mxu0 %v369
      %541 = vmatpush.msra.mxu0 %v368
      %542 = vmatpush.msra.mxu0 %v367
      %543 = vmatpush.msra.mxu0 %v366
      %544 = vmatpush.msra.mxu0 %v365
      %545 = vmatpush.msra.mxu0 %v364
      %546 = vmatpush.msra.mxu0 %v363
      %547 = vmatpush.msra.mxu0 %v362
      %548 = vmatpush.msra.mxu0 %v361
      %549 = vmatpush.msra.mxu0 %v360
      %550 = vmatpush.msra.mxu0 %v359
      %551 = vmatpush.msra.mxu0 %v358
      %552 = vmatpush.msra.mxu0 %v357
      %553 = vmatpush.msra.mxu0 %v356
      %554 = vmatpush.msra.mxu0 %v355
      %555 = vmatpush.msra.mxu0 %v354
      %556 = vmatmul.f32.gmra.mxu0 %v246
      %v557 = vpop.f32.mrf.mxu0
      %v558 = vadd.f32 %v535, %v557
      %559 = vmatmul.f32.gmra.mxu0 %v255
      %v560 = vpop.f32.mrf.mxu0
      %v561 = vadd.f32 %v538, %v560
      %562 = vdwg.mxu0
      %563 = vmatpush.msra.mxu0 %v385
      %564 = vmatpush.msra.mxu0 %v384
      %565 = vmatpush.msra.mxu0 %v383
      %566 = vmatpush.msra.mxu0 %v382
      %567 = vmatpush.msra.mxu0 %v381
      %568 = vmatpush.msra.mxu0 %v380
      %569 = vmatpush.msra.mxu0 %v379
      %570 = vmatpush.msra.mxu0 %v378
      %571 = vmatpush.msra.mxu0 %v377
      %572 = vmatpush.msra.mxu0 %v376
      %573 = vmatpush.msra.mxu0 %v375
      %574 = vmatpush.msra.mxu0 %v374
      %575 = vmatpush.msra.mxu0 %v373
      %576 = vmatpush.msra.mxu0 %v372
      %577 = vmatpush.msra.mxu0 %v371
      %578 = vmatpush.msra.mxu0 %v370
      %579 = vmatmul.f32.gmra.mxu0 %v247
      %v580 = vpop.f32.mrf.mxu0
      %v581 = vadd.f32 %v558, %v580
      %582 = vmatmul.f32.gmra.mxu0 %v256
      %v583 = vpop.f32.mrf.mxu0
      %v584 = vadd.f32 %v561, %v583
      %585 = vdwg.mxu0
      %586 = vmatpush.msra.mxu0 %v401
      %587 = vmatpush.msra.mxu0 %v400
      %588 = vmatpush.msra.mxu0 %v399
      %589 = vmatpush.msra.mxu0 %v398
      %590 = vmatpush.msra.mxu0 %v397
      %591 = vmatpush.msra.mxu0 %v396
      %592 = vmatpush.msra.mxu0 %v395
      %593 = vmatpush.msra.mxu0 %v394
      %594 = vmatpush.msra.mxu0 %v393
      %595 = vmatpush.msra.mxu0 %v392
      %596 = vmatpush.msra.mxu0 %v391
      %597 = vmatpush.msra.mxu0 %v390
      %598 = vmatpush.msra.mxu0 %v389
      %599 = vmatpush.msra.mxu0 %v388
      %600 = vmatpush.msra.mxu0 %v387
      %601 = vmatpush.msra.mxu0 %v386
      %602 = vmatmul.f32.gmra.mxu0 %v248
      %v603 = vpop.f32.mrf.mxu0
      %v604 = vadd.f32 %v581, %v603
      %605 = vmatmul.f32.gmra.mxu0 %v257
      %v606 = vpop.f32.mrf.mxu0
      %v607 = vadd.f32 %v584, %v606
      %608 = vdwg.mxu0
      %v609 = vld [vmem:[%s2] sm:$0x1]
      %v611 = vperm.slane %v609, 0
      %v613 = vmul.f32 %v604, %v611
      %v614 = vmul.f32 %v607, %v611
      %v615 = vld [vmem:[%s3] sm:$0x1]
      %v617 = vperm.slane %v615, 0
      %v619 = vadd.f32 %v613, %v617
      %v620 = vadd.f32 %v614, %v617
      %v621 = vmax.f32 %v619, 0.0
      %v622 = vmax.f32 %v620, 0.0
      %623 = vst [vmem:[%s238] sm:$0xff] %v621
      %624 = vst [vmem:[%s238 + $0x8] sm:$0xff] %v622
      %s625 = smul.u32 2, %s20
      %p626 = scmp.lt.s32.totalorder %s19, 1
      %s627 = scalar_select %p626, %s19, 1
      %p628 = scmp.lt.s32.totalorder %s625, 1
      %s629 = scalar_select %p628, %s625, 1
      %s630 = smul.addr %s627, 2
      %s631 = sadd.s32 %s629, %s630
      %s632 = smul.addr %s631, 8
      %s633 = scalar_lea.vmem %s4, %s632
      // Predicated region
      $region37: #{_lambda_.9} parent=35 // pred_check
        %p634 = pneg %p138
      $region38: #{_lambda_.9} parent=35 // pred_check_branch
        %636 = sbr.rel (%p634) target = $region40
      $region39: #{_lambda_.9} parent=35 // pred_region
        %s637 = smul.u32 2, %s20
      $region40: #{_lambda_.9} parent=35 // pred_fallthru
        _
    $region36: #{_lambda_.9} parent=5 // pred_fallthru
      _
    %p638 = scmp.le.s32.totalorder 2, %s10
    // Predicated region
    $region41: #{_lambda_.9} parent=5 // pred_check
      %p639 = pneg %p638
    $region42: #{_lambda_.9} parent=5 // pred_check_branch
      %641 = sbr.rel (%p639) target = $region44
    $region43: #{_lambda_.9} parent=5 // pred_region
      %s642 = ssub.s32 %s10, 2
      // Predicated region
      $region45: #{_lambda_.9} parent=43 // pred_check
        %p643 = pneg %p144
      $region46: #{_lambda_.9} parent=43 // pred_check_branch
        %645 = sbr.rel (%p643) target = $region48
      $region47: #{_lambda_.9} parent=43 // pred_region
        %s646 = smul.u32 2, %s22
        %p647 = scmp.lt.s32.totalorder %s21, 1
        %s648 = scalar_select %p647, %s21, 1
        %p649 = scmp.lt.s32.totalorder %s646, 1
        %s650 = scalar_select %p649, %s646, 1
        %s651 = smul.addr %s648, 2
        %s652 = sadd.s32 %s650, %s651
        %s653 = smul.addr %s652, 8
        %s654 = scalar_lea.vmem %s4, %s653
      $region48: #{_lambda_.9} parent=43 // pred_fallthru
        _
    $region44: #{_lambda_.9} parent=5 // pred_fallthru
      _
  $region6: #{_lambda_.9} parent=0 // loop_footer
    %s14 = sadd.s32 1, %s10
  $region7: #{_lambda_.9} parent=0 // loop_footer_branch
    %9 = sbr.rel target = $region3
  $region8: #{_lambda_.9} parent=0 // loop_exit
    _

// kernel: _lambda_.10
$region0: #{_lambda_.10}
  #allocation0 [shape = 'u32[]', space=smem, size = 0x4, offset = 0x4, fixed_abs, tag = 'smem constant byte address 0x4 - core index']
  #allocation1 [shape = 'u32[72,128]{1,0:T(1,128)}', space=vmem, size = 0x9000, scoped, tag = 'internal scratch']
  %s0 = inlined_call_operand.vmem [shape: f32[2,64,128], index: 0, kind: input, shape index: {}]
  %s1 = inlined_call_operand.vmem [shape: f32[2,16,128], index: 1, kind: input, shape index: {}]
  %s2 = inlined_call_operand.vmem [shape: f32[128,128], index: 2, kind: input, shape index: {}]
  %s3 = inlined_call_operand.vmem [shape: f32[1,128], index: 3, kind: input, shape index: {}, may-alias: {3,5}]
  %s4 = inlined_call_operand.vmem [shape: f32[128,128], index: 4, kind: input, shape index: {}]
  %s5 = inlined_call_operand.vmem [shape: f32[1,128], index: 5, kind: input, shape index: {}, may-alias: {3,5}]
  %s6 = inlined_call_operand.vmem [shape: f32[64,16], index: 6, kind: input, shape index: {}]
  %s7 = inlined_call_operand.vmem [shape: f32[2,64,128], index: 7, kind: output, shape index: {}]
  %s8 = sld [smem:[#allocation0]]
  $region61: #{_lambda_.10} parent=0
    _
  %s10 = ssub.s32 1, %s8
  %s11 = scalar_select 0, %s10, %s8
  loop: start=0, step=1, limit=4
  $region2: #{_lambda_.10} parent=0 // loop_pre_header
    _
  $region3: #{_lambda_.10} parent=0 // loop_header
    %s13 = sphi 0, %s17
    %p14 = scmp.ge.s32.totalorder %s13, 4
    %s23 = sphi 0, %s25
    %s26 = sphi 0, %s23
    %s27 = sphi 0, %s26
    %s43 = sphi 0, %s27
    %s49 = sphi 0, %s51
    %s52 = sphi 0, %s49
    %s53 = sphi 0, %s52
    %s69 = sphi 0, %s53
    %s73 = sphi 0, %s73
    %s75 = sphi 0, %s73
    %s76 = sphi 0, %s75
    %s90 = sphi 0, %s76
    %s94 = sphi 0, %s94
    %s96 = sphi 0, %s94
    %s97 = sphi 0, %s96
    %s111 = sphi 0, %s97
    %s115 = sphi 0, %s115
    %s117 = sphi 0, %s115
    %s118 = sphi 0, %s117
    %s132 = sphi 0, %s118
    %s136 = sphi 0, %s136
    %s138 = sphi 0, %s136
    %s139 = sphi 0, %s138
    %s153 = sphi 0, %s139
    %s157 = sphi 0, %s157
    %s159 = sphi 0, %s157
    %s160 = sphi 0, %s159
    %s174 = sphi 0, %s160
    %s180 = sphi 0, %s182
    %s183 = sphi 0, %s180
    %s184 = sphi 0, %s183
    %s200 = sphi 0, %s184
  $region4: #{_lambda_.10} parent=0 // loop_header_branch
    %16 = sbr.rel (%p14) target = $region8
  $region5: #{_lambda_.10} parent=0 // loop_body
    %s18 = ssub.s32 %s13, 1
    %s19 = ssub.s32 %s13, 2
    %s20 = sadd.s32 %s13, 1
    %s21 = ssub.s32 %s13, %s20
    %p22 = scmp.eq.s32.totalorder %s21, 0
    %s24 = sadd.s32 %s23, 1
    %s25 = scalar_select %p22, %s23, %s24
    %p28 = pneg %p22
    %p29 = scmp.eq.s32.totalorder %s13, 1
    %p30 = por %p28, %p29
    %p31 = scmp.ne.s32.totalorder %s23, %s26
    %p32 = scmp.eq.s32.totalorder %s13, 0
    %p33 = por %p31, %p32
    %p34 = scmp.ne.s32.totalorder %s23, %s26
    %p35 = scmp.eq.s32.totalorder %s18, 1
    %p36 = por %p34, %p35
    %p37 = scmp.ne.s32.totalorder %s26, %s27
    %p38 = scmp.eq.s32.totalorder %s18, 0
    %p39 = por %p37, %p38
    %p40 = scmp.ne.s32.totalorder %s26, %s27
    %p41 = scmp.eq.s32.totalorder %s19, 1
    %p42 = por %p40, %p41
    %p44 = scmp.ne.s32.totalorder %s27, %s43
    %p45 = scmp.eq.s32.totalorder %s19, 0
    %p46 = por %p44, %p45
    %s47 = ssub.s32 %s13, %s20
    %p48 = scmp.eq.s32.totalorder %s47, 0
    %s50 = sadd.s32 %s49, 1
    %s51 = scalar_select %p48, %s49, %s50
    %p54 = pneg %p48
    %p55 = scmp.eq.s32.totalorder %s13, 1
    %p56 = por %p54, %p55
    %p57 = scmp.ne.s32.totalorder %s49, %s52
    %p58 = scmp.eq.s32.totalorder %s13, 0
    %p59 = por %p57, %p58
    %p60 = scmp.ne.s32.totalorder %s49, %s52
    %p61 = scmp.eq.s32.totalorder %s18, 1
    %p62 = por %p60, %p61
    %p63 = scmp.ne.s32.totalorder %s52, %s53
    %p64 = scmp.eq.s32.totalorder %s18, 0
    %p65 = por %p63, %p64
    %p66 = scmp.ne.s32.totalorder %s52, %s53
    %p67 = scmp.eq.s32.totalorder %s19, 1
    %p68 = por %p66, %p67
    %p70 = scmp.ne.s32.totalorder %s53, %s69
    %p71 = scmp.eq.s32.totalorder %s19, 0
    %p72 = por %p70, %p71
    %s74 = sadd.s32 %s73, 1
    %p77 = scmp.eq.s32.totalorder %s13, 1
    %p78 = scmp.ne.s32.totalorder %s73, %s75
    %p79 = scmp.eq.s32.totalorder %s13, 0
    %p80 = por %p78, %p79
    %p81 = scmp.ne.s32.totalorder %s73, %s75
    %p82 = scmp.eq.s32.totalorder %s18, 1
    %p83 = por %p81, %p82
    %p84 = scmp.ne.s32.totalorder %s75, %s76
    %p85 = scmp.eq.s32.totalorder %s18, 0
    %p86 = por %p84, %p85
    %p87 = scmp.ne.s32.totalorder %s75, %s76
    %p88 = scmp.eq.s32.totalorder %s19, 1
    %p89 = por %p87, %p88
    %p91 = scmp.ne.s32.totalorder %s76, %s90
    %p92 = scmp.eq.s32.totalorder %s19, 0
    %p93 = por %p91, %p92
    %s95 = sadd.s32 %s94, 1
    %p98 = scmp.eq.s32.totalorder %s13, 1
    %p99 = scmp.ne.s32.totalorder %s94, %s96
    %p100 = scmp.eq.s32.totalorder %s13, 0
    %p101 = por %p99, %p100
    %p102 = scmp.ne.s32.totalorder %s94, %s96
    %p103 = scmp.eq.s32.totalorder %s18, 1
    %p104 = por %p102, %p103
    %p105 = scmp.ne.s32.totalorder %s96, %s97
    %p106 = scmp.eq.s32.totalorder %s18, 0
    %p107 = por %p105, %p106
    %p108 = scmp.ne.s32.totalorder %s96, %s97
    %p109 = scmp.eq.s32.totalorder %s19, 1
    %p110 = por %p108, %p109
    %p112 = scmp.ne.s32.totalorder %s97, %s111
    %p113 = scmp.eq.s32.totalorder %s19, 0
    %p114 = por %p112, %p113
    %s116 = sadd.s32 %s115, 1
    %p119 = scmp.eq.s32.totalorder %s13, 1
    %p120 = scmp.ne.s32.totalorder %s115, %s117
    %p121 = scmp.eq.s32.totalorder %s13, 0
    %p122 = por %p120, %p121
    %p123 = scmp.ne.s32.totalorder %s115, %s117
    %p124 = scmp.eq.s32.totalorder %s18, 1
    %p125 = por %p123, %p124
    %p126 = scmp.ne.s32.totalorder %s117, %s118
    %p127 = scmp.eq.s32.totalorder %s18, 0
    %p128 = por %p126, %p127
    %p129 = scmp.ne.s32.totalorder %s117, %s118
    %p130 = scmp.eq.s32.totalorder %s19, 1
    %p131 = por %p129, %p130
    %p133 = scmp.ne.s32.totalorder %s118, %s132
    %p134 = scmp.eq.s32.totalorder %s19, 0
    %p135 = por %p133, %p134
    %s137 = sadd.s32 %s136, 1
    %p140 = scmp.eq.s32.totalorder %s13, 1
    %p141 = scmp.ne.s32.totalorder %s136, %s138
    %p142 = scmp.eq.s32.totalorder %s13, 0
    %p143 = por %p141, %p142
    %p144 = scmp.ne.s32.totalorder %s136, %s138
    %p145 = scmp.eq.s32.totalorder %s18, 1
    %p146 = por %p144, %p145
    %p147 = scmp.ne.s32.totalorder %s138, %s139
    %p148 = scmp.eq.s32.totalorder %s18, 0
    %p149 = por %p147, %p148
    %p150 = scmp.ne.s32.totalorder %s138, %s139
    %p151 = scmp.eq.s32.totalorder %s19, 1
    %p152 = por %p150, %p151
    %p154 = scmp.ne.s32.totalorder %s139, %s153
    %p155 = scmp.eq.s32.totalorder %s19, 0
    %p156 = por %p154, %p155
    %s158 = sadd.s32 %s157, 1
    %p161 = scmp.eq.s32.totalorder %s13, 1
    %p162 = scmp.ne.s32.totalorder %s157, %s159
    %p163 = scmp.eq.s32.totalorder %s13, 0
    %p164 = por %p162, %p163
    %p165 = scmp.ne.s32.totalorder %s157, %s159
    %p166 = scmp.eq.s32.totalorder %s18, 1
    %p167 = por %p165, %p166
    %p168 = scmp.ne.s32.totalorder %s159, %s160
    %p169 = scmp.eq.s32.totalorder %s18, 0
    %p170 = por %p168, %p169
    %p171 = scmp.ne.s32.totalorder %s159, %s160
    %p172 = scmp.eq.s32.totalorder %s19, 1
    %p173 = por %p171, %p172
    %p175 = scmp.ne.s32.totalorder %s160, %s174
    %p176 = scmp.eq.s32.totalorder %s19, 0
    %p177 = por %p175, %p176
    %s178 = ssub.s32 %s13, %s20
    %p179 = scmp.eq.s32.totalorder %s178, 0
    %s181 = sadd.s32 %s180, 1
    %s182 = scalar_select %p179, %s180, %s181
    %p185 = pneg %p179
    %p186 = scmp.eq.s32.totalorder %s13, 1
    %p187 = por %p185, %p186
    %p188 = scmp.ne.s32.totalorder %s180, %s183
    %p189 = scmp.eq.s32.totalorder %s13, 0
    %p190 = por %p188, %p189
    %p191 = scmp.ne.s32.totalorder %s180, %s183
    %p192 = scmp.eq.s32.totalorder %s18, 1
    %p193 = por %p191, %p192
    %p194 = scmp.ne.s32.totalorder %s183, %s184
    %p195 = scmp.eq.s32.totalorder %s18, 0
    %p196 = por %p194, %p195
    %p197 = scmp.ne.s32.totalorder %s183, %s184
    %p198 = scmp.eq.s32.totalorder %s19, 1
    %p199 = por %p197, %p198
    %p201 = scmp.ne.s32.totalorder %s184, %s200
    %p202 = scmp.eq.s32.totalorder %s19, 0
    %p203 = por %p201, %p202
    %p204 = scmp.le.s32.totalorder 1, %s13
    %p205 = scmp.lt.s32.totalorder %s13, 3
    %p206 = pnand %p204, %p205
    %p207 = pneg %p206
    // Predicated region
    $region9: #{_lambda_.10} parent=5 // pred_check
      _
    $region10: #{_lambda_.10} parent=5 // pred_check_branch
      %209 = sbr.rel (%p206) target = $region12
    $region11: #{_lambda_.10} parent=5 // pred_region
      %s210 = ssub.s32 %s13, 1
      // Predicated region
      $region13: #{_lambda_.10} parent=11 // pred_check
        %p211 = pneg %p86
      $region14: #{_lambda_.10} parent=11 // pred_check_branch
        %213 = sbr.rel (%p211) target = $region16
      $region15: #{_lambda_.10} parent=11 // pred_region
        _
      $region16: #{_lambda_.10} parent=11 // pred_fallthru
        _
      // Predicated region
      $region17: #{_lambda_.10} parent=11 // pred_check
        %p214 = pneg %p107
      $region18: #{_lambda_.10} parent=11 // pred_check_branch
        %216 = sbr.rel (%p214) target = $region20
      $region19: #{_lambda_.10} parent=11 // pred_region
        _
      $region20: #{_lambda_.10} parent=11 // pred_fallthru
        _
      // Predicated region
      $region21: #{_lambda_.10} parent=11 // pred_check
        %p217 = pneg %p128
      $region22: #{_lambda_.10} parent=11 // pred_check_branch
        %219 = sbr.rel (%p217) target = $region24
      $region23: #{_lambda_.10} parent=11 // pred_region
        _
      $region24: #{_lambda_.10} parent=11 // pred_fallthru
        _
      // Predicated region
      $region25: #{_lambda_.10} parent=11 // pred_check
        %p220 = pneg %p149
      $region26: #{_lambda_.10} parent=11 // pred_check_branch
        %222 = sbr.rel (%p220) target = $region28
      $region27: #{_lambda_.10} parent=11 // pred_region
        _
      $region28: #{_lambda_.10} parent=11 // pred_fallthru
        _
      // Predicated region
      $region29: #{_lambda_.10} parent=11 // pred_check
        %p223 = pneg %p170
      $region30: #{_lambda_.10} parent=11 // pred_check_branch
        %225 = sbr.rel (%p223) target = $region32
      $region31: #{_lambda_.10} parent=11 // pred_region
        _
      $region32: #{_lambda_.10} parent=11 // pred_fallthru
        _
    $region12: #{_lambda_.10} parent=5 // pred_fallthru
      _
    %p226 = scmp.lt.s32.totalorder %s13, 2
    // Predicated region
    $region33: #{_lambda_.10} parent=5 // pred_check
      %p227 = pneg %p226
    $region34: #{_lambda_.10} parent=5 // pred_check_branch
      %229 = sbr.rel (%p227) target = $region36
    $region35: #{_lambda_.10} parent=5 // pred_region
      // Predicated region
      $region37: #{_lambda_.10} parent=35 // pred_check
        %p230 = pneg %p33
      $region38: #{_lambda_.10} parent=35 // pred_check_branch
        %232 = sbr.rel (%p230) target = $region40
      $region39: #{_lambda_.10} parent=35 // pred_region
        %p233 = scmp.lt.s32.totalorder %s13, 1
        %s234 = scalar_select %p233, %s13, 1
        %s235 = smul.addr %s234, 8
        %s236 = smul.addr %s235, 8
        %s237 = scalar_lea.vmem %s0, %s236
      $region40: #{_lambda_.10} parent=35 // pred_fallthru
        _
      // Predicated region
      $region41: #{_lambda_.10} parent=35 // pred_check
        %p238 = pneg %p59
      $region42: #{_lambda_.10} parent=35 // pred_check_branch
        %240 = sbr.rel (%p238) target = $region44
      $region43: #{_lambda_.10} parent=35 // pred_region
        %p241 = scmp.lt.s32.totalorder %s13, 1
        %s242 = scalar_select %p241, %s13, 1
        %s243 = smul.addr %s242, 2
        %s244 = smul.addr %s243, 8
        %s245 = scalar_lea.vmem %s1, %s244
      $region44: #{_lambda_.10} parent=35 // pred_fallthru
        _
    $region36: #{_lambda_.10} parent=5 // pred_fallthru
      _
    %p246 = scmp.le.s32.totalorder 1, %s13
    %p247 = scmp.lt.s32.totalorder %s13, 3
    %p248 = pnand %p246, %p247
    %p249 = pneg %p248
    // Predicated region
    $region45: #{_lambda_.10} parent=5 // pred_check
      _
    $region46: #{_lambda_.10} parent=5 // pred_check_branch
      %251 = sbr.rel (%p248) target = $region48
    $region47: #{_lambda_.10} parent=5 // pred_region
      %s252 = ssub.s32 %s13, 1
      %p253 = scmp.lt.s32.totalorder %s18, 1
      %s254 = scalar_select %p253, %s18, 1
      %s255 = smul.addr %s254, 8
      %s256 = smul.addr %s255, 8
      %s257 = scalar_lea.vmem %s0, %s256
      %p258 = pneg %p39
      %p259 = pneg %p36
      %p260 = scmp.lt.s32.totalorder %s18, 1
      %s261 = scalar_select %p260, %s18, 1
      %s262 = smul.addr %s261, 2
      %s263 = smul.addr %s262, 8
      %s264 = scalar_lea.vmem %s1, %s263
      %p265 = pneg %p65
      %p266 = pneg %p62
      %p267 = pneg %p86
      %p268 = pneg %p83
      %p269 = pneg %p107
      %p270 = pneg %p104
      %p271 = pneg %p128
      %p272 = pneg %p125
      %p273 = pneg %p149
      %p274 = pneg %p146
      %p275 = pneg %p170
      %p276 = pneg %p167
      %p277 = pneg %p196
      %p278 = pneg %p193
      %p279 = scmp.lt.s32.totalorder %s18, 1
      %s280 = scalar_select %p279, %s18, 1
      %s281 = smul.addr %s280, 8
      %s282 = smul.addr %s281, 8
      %s283 = scalar_lea.vmem %s7, %s282
      %p284 = scmp.lt.s32.totalorder %s18, 1
      %s285 = scalar_select %p284, %s18, 1
      %s286 = smul.addr %s285, 8
      %s287 = smul.addr %s286, 8
      %s288 = scalar_lea.vmem %s0, %s287
      %p289 = scmp.lt.s32.totalorder %s18, 1
      %s290 = scalar_select %p289, %s18, 1
      %s291 = smul.addr %s290, 2
      %s292 = smul.addr %s291, 8
      %s293 = scalar_lea.vmem %s1, %s292
      %p294 = scmp.lt.s32.totalorder %s18, 1
      %s295 = scalar_select %p294, %s18, 1
      %s296 = smul.addr %s295, 8
      %s297 = smul.addr %s296, 8
      %s298 = scalar_lea.vmem %s7, %s297
      %v299 = vld [vmem:[%s293] sm:$0xff]
      %v300 = vld [vmem:[%s293 + $0x8] sm:$0xff]
      %v301 = vld [vmem:[%s4] sm:$0xff]
      %v302 = vld [vmem:[%s4 + $0x8] sm:$0xff]
      %v303 = vld [vmem:[%s4 + $0x10] sm:$0xff]
      %v304 = vld [vmem:[%s4 + $0x18] sm:$0xff]
      %v305 = vld [vmem:[%s4 + $0x20] sm:$0xff]
      %v306 = vld [vmem:[%s4 + $0x28] sm:$0xff]
      %v307 = vld [vmem:[%s4 + $0x30] sm:$0xff]
      %v308 = vld [vmem:[%s4 + $0x38] sm:$0xff]
      %v309 = vld [vmem:[%s4 + $0x40] sm:$0xff]
      %v310 = vld [vmem:[%s4 + $0x48] sm:$0xff]
      %v311 = vld [vmem:[%s4 + $0x50] sm:$0xff]
      %v312 = vld [vmem:[%s4 + $0x58] sm:$0xff]
      %v313 = vld [vmem:[%s4 + $0x60] sm:$0xff]
      %v314 = vld [vmem:[%s4 + $0x68] sm:$0xff]
      %v315 = vld [vmem:[%s4 + $0x70] sm:$0xff]
      %v316 = vld [vmem:[%s4 + $0x78] sm:$0xff]
      %v317 = vld [vmem:[%s5] sm:$0x1]
      %v319 = vperm.slane %v317, 0
      %321 = vmatpush.msra.mxu0 %v316
      %322 = vmatpush.msra.mxu0 %v315
      %323 = vmatpush.msra.mxu0 %v314
      %324 = vmatpush.msra.mxu0 %v313
      %325 = vmatpush.msra.mxu0 %v312
      %326 = vmatpush.msra.mxu0 %v311
      %327 = vmatpush.msra.mxu0 %v310
      %328 = vmatpush.msra.mxu0 %v309
      %329 = vmatpush.msra.mxu0 %v308
      %330 = vmatpush.msra.mxu0 %v307
      %331 = vmatpush.msra.mxu0 %v306
      %332 = vmatpush.msra.mxu0 %v305
      %333 = vmatpush.msra.mxu0 %v304
      %334 = vmatpush.msra.mxu0 %v303
      %335 = vmatpush.msra.mxu0 %v302
      %336 = vmatpush.msra.mxu0 %v301
      %337 = vmatmul.f32.gmra.mxu0 %v299
      %v338 = vpop.f32.mrf.mxu0
      %v339 = vadd.f32 %v319, %v338
      %340 = vmatmul.f32.gmra.mxu0 %v300
      %v341 = vpop.f32.mrf.mxu0
      %v342 = vadd.f32 %v319, %v341
      %343 = vdwg.mxu0
      %v344 = vld [vmem:[%s6] sm:$0xff]
      %v345 = vld [vmem:[%s6 + $0x8] sm:$0xff]
      %v346 = vld [vmem:[%s6 + $0x10] sm:$0xff]
      %v347 = vld [vmem:[%s6 + $0x18] sm:$0xff]
      %v348 = vld [vmem:[%s6 + $0x20] sm:$0xff]
      %v349 = vld [vmem:[%s6 + $0x28] sm:$0xff]
      %v350 = vld [vmem:[%s6 + $0x30] sm:$0xff]
      %v351 = vld [vmem:[%s6 + $0x38] sm:$0xff]
      %vm352 = vcmask 130048
      %v354 = vsel %vm352, %v344, 0
      %v357 = vsel %vm352, %v345, 0
      %v360 = vsel %vm352, %v346, 0
      %v363 = vsel %vm352, %v347, 0
      %v366 = vsel %vm352, %v348, 0
      %v369 = vsel %vm352, %v349, 0
      %v372 = vsel %vm352, %v350, 0
      %v375 = vsel %vm352, %v351, 0
      %377 = vmatpush.msra.mxu0 0.0
      %378 = vmatpush.msra.mxu0 0.0
      %379 = vmatpush.msra.mxu0 0.0
      %380 = vmatpush.msra.mxu0 0.0
      %381 = vmatpush.msra.mxu0 0.0
      %382 = vmatpush.msra.mxu0 0.0
      %383 = vmatpush.msra.mxu0 0.0
      %384 = vmatpush.msra.mxu0 0.0
      %385 = vmatpush.msra.mxu0 0.0
      %386 = vmatpush.msra.mxu0 0.0
      %387 = vmatpush.msra.mxu0 0.0
      %388 = vmatpush.msra.mxu0 0.0
      %389 = vmatpush.msra.mxu0 0.0
      %390 = vmatpush.msra.mxu0 0.0
      %391 = vmatpush.msra.mxu0 %v342
      %392 = vmatpush.msra.mxu0 %v339
      %393 = vmatmul.f32.gmra.mxu0 %v354
      %v394 = vpop.f32.mrf.mxu0
      %v395 = vadd.f32 0.0, %v394
      %396 = vmatmul.f32.gmra.mxu0 %v357
      %v397 = vpop.f32.mrf.mxu0
      %v398 = vadd.f32 0.0, %v397
      %399 = vmatmul.f32.gmra.mxu0 %v360
      %v400 = vpop.f32.mrf.mxu0
      %v401 = vadd.f32 0.0, %v400
      %402 = vmatmul.f32.gmra.mxu0 %v363
      %v403 = vpop.f32.mrf.mxu0
      %v404 = vadd.f32 0.0, %v403
      %405 = vmatmul.f32.gmra.mxu0 %v366
      %v406 = vpop.f32.mrf.mxu0
      %v407 = vadd.f32 0.0, %v406
      %408 = vmatmul.f32.gmra.mxu0 %v369
      %v409 = vpop.f32.mrf.mxu0
      %v410 = vadd.f32 0.0, %v409
      %411 = vmatmul.f32.gmra.mxu0 %v372
      %v412 = vpop.f32.mrf.mxu0
      %v413 = vadd.f32 0.0, %v412
      %414 = vmatmul.f32.gmra.mxu0 %v375
      %v415 = vpop.f32.mrf.mxu0
      %v416 = vadd.f32 0.0, %v415
      %417 = vdwg.mxu0
      %v418 = vld [vmem:[%s288] sm:$0xff]
      %v419 = vld [vmem:[%s288 + $0x8] sm:$0xff]
      %v420 = vld [vmem:[%s288 + $0x10] sm:$0xff]
      %v421 = vld [vmem:[%s288 + $0x18] sm:$0xff]
      %v422 = vld [vmem:[%s288 + $0x20] sm:$0xff]
      %v423 = vld [vmem:[%s288 + $0x28] sm:$0xff]
      %v424 = vld [vmem:[%s288 + $0x30] sm:$0xff]
      %v425 = vld [vmem:[%s288 + $0x38] sm:$0xff]
      %v426 = vld [vmem:[%s2] sm:$0xff]
      %v427 = vld [vmem:[%s2 + $0x8] sm:$0xff]
      %v428 = vld [vmem:[%s2 + $0x10] sm:$0xff]
      %v429 = vld [vmem:[%s2 + $0x18] sm:$0xff]
      %v430 = vld [vmem:[%s2 + $0x20] sm:$0xff]
      %v431 = vld [vmem:[%s2 + $0x28] sm:$0xff]
      %v432 = vld [vmem:[%s2 + $0x30] sm:$0xff]
      %v433 = vld [vmem:[%s2 + $0x38] sm:$0xff]
      %v434 = vld [vmem:[%s2 + $0x40] sm:$0xff]
      %v435 = vld [vmem:[%s2 + $0x48] sm:$0xff]
      %v436 = vld [vmem:[%s2 + $0x50] sm:$0xff]
      %v437 = vld [vmem:[%s2 + $0x58] sm:$0xff]
      %v438 = vld [vmem:[%s2 + $0x60] sm:$0xff]
      %v439 = vld [vmem:[%s2 + $0x68] sm:$0xff]
      %v440 = vld [vmem:[%s2 + $0x70] sm:$0xff]
      %v441 = vld [vmem:[%s2 + $0x78] sm:$0xff]
      %v442 = vld [vmem:[%s3] sm:$0x1]
      %v444 = vperm.slane %v442, 0
      %446 = vmatpush.msra.mxu0 %v441
      %447 = vmatpush.msra.mxu0 %v440
      %448 = vmatpush.msra.mxu0 %v439
      %449 = vmatpush.msra.mxu0 %v438
      %450 = vmatpush.msra.mxu0 %v437
      %451 = vmatpush.msra.mxu0 %v436
      %452 = vmatpush.msra.mxu0 %v435
      %453 = vmatpush.msra.mxu0 %v434
      %454 = vmatpush.msra.mxu0 %v433
      %455 = vmatpush.msra.mxu0 %v432
      %456 = vmatpush.msra.mxu0 %v431
      %457 = vmatpush.msra.mxu0 %v430
      %458 = vmatpush.msra.mxu0 %v429
      %459 = vmatpush.msra.mxu0 %v428
      %460 = vmatpush.msra.mxu0 %v427
      %461 = vmatpush.msra.mxu0 %v426
      %462 = vmatmul.f32.gmra.mxu0 %v418
      %v463 = vpop.f32.mrf.mxu0
      %v464 = vadd.f32 %v444, %v463
      %465 = vmatmul.f32.gmra.mxu0 %v419
      %v466 = vpop.f32.mrf.mxu0
      %v467 = vadd.f32 %v444, %v466
      %468 = vmatmul.f32.gmra.mxu0 %v420
      %v469 = vpop.f32.mrf.mxu0
      %v470 = vadd.f32 %v444, %v469
      %471 = vmatmul.f32.gmra.mxu0 %v421
      %v472 = vpop.f32.mrf.mxu0
      %v473 = vadd.f32 %v444, %v472
      %474 = vmatmul.f32.gmra.mxu0 %v422
      %v475 = vpop.f32.mrf.mxu0
      %v476 = vadd.f32 %v444, %v475
      %477 = vmatmul.f32.gmra.mxu0 %v423
      %v478 = vpop.f32.mrf.mxu0
      %v479 = vadd.f32 %v444, %v478
      %480 = vmatmul.f32.gmra.mxu0 %v424
      %v481 = vpop.f32.mrf.mxu0
      %v482 = vadd.f32 %v444, %v481
      %483 = vmatmul.f32.gmra.mxu0 %v425
      %v484 = vpop.f32.mrf.mxu0
      %v485 = vadd.f32 %v444, %v484
      %486 = vdwg.mxu0
      %v487 = vadd.f32 %v464, %v395
      %v488 = vadd.f32 %v467, %v398
      %v489 = vadd.f32 %v470, %v401
      %v490 = vadd.f32 %v473, %v404
      %v491 = vadd.f32 %v476, %v407
      %v492 = vadd.f32 %v479, %v410
      %v493 = vadd.f32 %v482, %v413
      %v494 = vadd.f32 %v485, %v416
      %495 = vst [vmem:[%s298] sm:$0xff] %v487
      %496 = vst [vmem:[%s298 + $0x8] sm:$0xff] %v488
      %497 = vst [vmem:[%s298 + $0x10] sm:$0xff] %v489
      %498 = vst [vmem:[%s298 + $0x18] sm:$0xff] %v490
      %499 = vst [vmem:[%s298 + $0x20] sm:$0xff] %v491
      %500 = vst [vmem:[%s298 + $0x28] sm:$0xff] %v492
      %501 = vst [vmem:[%s298 + $0x30] sm:$0xff] %v493
      %502 = vst [vmem:[%s298 + $0x38] sm:$0xff] %v494
      %p503 = scmp.lt.s32.totalorder %s18, 1
      %s504 = scalar_select %p503, %s18, 1
      %s505 = smul.addr %s504, 8
      %s506 = smul.addr %s505, 8
      %s507 = scalar_lea.vmem %s7, %s506
      // Predicated region
      $region49: #{_lambda_.10} parent=47 // pred_check
        %p508 = pneg %p193
      $region50: #{_lambda_.10} parent=47 // pred_check_branch
        %510 = sbr.rel (%p508) target = $region52
      $region51: #{_lambda_.10} parent=47 // pred_region
        _
      $region52: #{_lambda_.10} parent=47 // pred_fallthru
        _
    $region48: #{_lambda_.10} parent=5 // pred_fallthru
      _
    %p511 = scmp.le.s32.totalorder 2, %s13
    // Predicated region
    $region53: #{_lambda_.10} parent=5 // pred_check
      %p512 = pneg %p511
    $region54: #{_lambda_.10} parent=5 // pred_check_branch
      %514 = sbr.rel (%p512) target = $region56
    $region55: #{_lambda_.10} parent=5 // pred_region
      %s515 = ssub.s32 %s13, 2
      // Predicated region
      $region57: #{_lambda_.10} parent=55 // pred_check
        %p516 = pneg %p199
      $region58: #{_lambda_.10} parent=55 // pred_check_branch
        %518 = sbr.rel (%p516) target = $region60
      $region59: #{_lambda_.10} parent=55 // pred_region
        %p519 = scmp.lt.s32.totalorder %s19, 1
        %s520 = scalar_select %p519, %s19, 1
        %s521 = smul.addr %s520, 8
        %s522 = smul.addr %s521, 8
        %s523 = scalar_lea.vmem %s7, %s522
      $region60: #{_lambda_.10} parent=55 // pred_fallthru
        _
    $region56: #{_lambda_.10} parent=5 // pred_fallthru
      _
  $region6: #{_lambda_.10} parent=0 // loop_footer
    %s17 = sadd.s32 1, %s13
  $region7: #{_lambda_.10} parent=0 // loop_footer_branch
    %12 = sbr.rel target = $region3
  $region8: #{_lambda_.10} parent=0 // loop_exit
    _

// kernel: _lambda_.11
$region0: #{_lambda_.11}
  #allocation0 [shape = 'u32[]', space=smem, size = 0x4, offset = 0x4, fixed_abs, tag = 'smem constant byte address 0x4 - core index']
  #allocation1 [shape = 'u32[72,128]{1,0:T(1,128)}', space=vmem, size = 0x9000, scoped, tag = 'internal scratch']
  %s0 = inlined_call_operand.vmem [shape: f32[2,64,1152], index: 0, kind: input, shape index: {}]
  %s1 = inlined_call_operand.vmem [shape: f32[1152,128], index: 1, kind: input, shape index: {}]
  %s2 = inlined_call_operand.vmem [shape: f32[1,128], index: 2, kind: input, shape index: {}]
  %s3 = inlined_call_operand.vmem [shape: f32[1,128], index: 3, kind: input, shape index: {}]
  %s4 = inlined_call_operand.vmem [shape: f32[16,64], index: 4, kind: input, shape index: {}]
  %s5 = inlined_call_operand.hbm [shape: f32[2,16,128], index: 5, kind: output, shape index: {}]
  %s6 = sld [smem:[#allocation0]]
  $region53: #{_lambda_.11} parent=0
    _
  %s8 = ssub.s32 1, %s6
  %s9 = scalar_select 0, %s8, %s6
  $region1: #{_lambda_.11} parent=0
    #allocation2 [shape = 'u8[16384]{0}', space=vmem, size = 0x4000, scoped, tag = 'output window, operand 0']
    #allocation3 [shape = 's32[2]{0}', space=sflag, size = 0x8, scoped, tag = 'scoped memory for _lambda_.11']
    %10 = vsyncpa [#allocation3], 0
    %s11 = scalar_lea.sflag [#allocation3], 1
    %12 = vsyncpa %s11, 0
    loop: start=0, step=1, limit=4
    $region2: #{_lambda_.11} parent=1 // loop_pre_header
      _
    $region3: #{_lambda_.11} parent=1 // loop_header
      %s14 = sphi 0, %s18
      %p15 = scmp.ge.s32.totalorder %s14, 4
      %s24 = sphi 0, %s26
      %s27 = sphi 0, %s24
      %s28 = sphi 0, %s27
      %s44 = sphi 0, %s28
      %s48 = sphi 0, %s48
      %s50 = sphi 0, %s48
      %s51 = sphi 0, %s50
      %s65 = sphi 0, %s51
      %s69 = sphi 0, %s69
      %s71 = sphi 0, %s69
      %s72 = sphi 0, %s71
      %s86 = sphi 0, %s72
      %s90 = sphi 0, %s90
      %s92 = sphi 0, %s90
      %s93 = sphi 0, %s92
      %s107 = sphi 0, %s93
      %s111 = sphi 0, %s111
      %s113 = sphi 0, %s111
      %s114 = sphi 0, %s113
      %s128 = sphi 0, %s114
      %s134 = sphi 0, %s136
      %s137 = sphi 0, %s134
      %s138 = sphi 0, %s137
      %s154 = sphi 0, %s138
    $region4: #{_lambda_.11} parent=1 // loop_header_branch
      %17 = sbr.rel (%p15) target = $region8
    $region5: #{_lambda_.11} parent=1 // loop_body
      %s19 = ssub.s32 %s14, 1
      %s20 = ssub.s32 %s14, 2
      %s21 = sadd.s32 %s14, 1
      %s22 = ssub.s32 %s14, %s21
      %p23 = scmp.eq.s32.totalorder %s22, 0
      %s25 = sadd.s32 %s24, 1
      %s26 = scalar_select %p23, %s24, %s25
      %p29 = pneg %p23
      %p30 = scmp.eq.s32.totalorder %s14, 1
      %p31 = por %p29, %p30
      %p32 = scmp.ne.s32.totalorder %s24, %s27
      %p33 = scmp.eq.s32.totalorder %s14, 0
      %p34 = por %p32, %p33
      %p35 = scmp.ne.s32.totalorder %s24, %s27
      %p36 = scmp.eq.s32.totalorder %s19, 1
      %p37 = por %p35, %p36
      %p38 = scmp.ne.s32.totalorder %s27, %s28
      %p39 = scmp.eq.s32.totalorder %s19, 0
      %p40 = por %p38, %p39
      %p41 = scmp.ne.s32.totalorder %s27, %s28
      %p42 = scmp.eq.s32.totalorder %s20, 1
      %p43 = por %p41, %p42
      %p45 = scmp.ne.s32.totalorder %s28, %s44
      %p46 = scmp.eq.s32.totalorder %s20, 0
      %p47 = por %p45, %p46
      %s49 = sadd.s32 %s48, 1
      %p52 = scmp.eq.s32.totalorder %s14, 1
      %p53 = scmp.ne.s32.totalorder %s48, %s50
      %p54 = scmp.eq.s32.totalorder %s14, 0
      %p55 = por %p53, %p54
      %p56 = scmp.ne.s32.totalorder %s48, %s50
      %p57 = scmp.eq.s32.totalorder %s19, 1
      %p58 = por %p56, %p57
      %p59 = scmp.ne.s32.totalorder %s50, %s51
      %p60 = scmp.eq.s32.totalorder %s19, 0
      %p61 = por %p59, %p60
      %p62 = scmp.ne.s32.totalorder %s50, %s51
      %p63 = scmp.eq.s32.totalorder %s20, 1
      %p64 = por %p62, %p63
      %p66 = scmp.ne.s32.totalorder %s51, %s65
      %p67 = scmp.eq.s32.totalorder %s20, 0
      %p68 = por %p66, %p67
      %s70 = sadd.s32 %s69, 1
      %p73 = scmp.eq.s32.totalorder %s14, 1
      %p74 = scmp.ne.s32.totalorder %s69, %s71
      %p75 = scmp.eq.s32.totalorder %s14, 0
      %p76 = por %p74, %p75
      %p77 = scmp.ne.s32.totalorder %s69, %s71
      %p78 = scmp.eq.s32.totalorder %s19, 1
      %p79 = por %p77, %p78
      %p80 = scmp.ne.s32.totalorder %s71, %s72
      %p81 = scmp.eq.s32.totalorder %s19, 0
      %p82 = por %p80, %p81
      %p83 = scmp.ne.s32.totalorder %s71, %s72
      %p84 = scmp.eq.s32.totalorder %s20, 1
      %p85 = por %p83, %p84
      %p87 = scmp.ne.s32.totalorder %s72, %s86
      %p88 = scmp.eq.s32.totalorder %s20, 0
      %p89 = por %p87, %p88
      %s91 = sadd.s32 %s90, 1
      %p94 = scmp.eq.s32.totalorder %s14, 1
      %p95 = scmp.ne.s32.totalorder %s90, %s92
      %p96 = scmp.eq.s32.totalorder %s14, 0
      %p97 = por %p95, %p96
      %p98 = scmp.ne.s32.totalorder %s90, %s92
      %p99 = scmp.eq.s32.totalorder %s19, 1
      %p100 = por %p98, %p99
      %p101 = scmp.ne.s32.totalorder %s92, %s93
      %p102 = scmp.eq.s32.totalorder %s19, 0
      %p103 = por %p101, %p102
      %p104 = scmp.ne.s32.totalorder %s92, %s93
      %p105 = scmp.eq.s32.totalorder %s20, 1
      %p106 = por %p104, %p105
      %p108 = scmp.ne.s32.totalorder %s93, %s107
      %p109 = scmp.eq.s32.totalorder %s20, 0
      %p110 = por %p108, %p109
      %s112 = sadd.s32 %s111, 1
      %p115 = scmp.eq.s32.totalorder %s14, 1
      %p116 = scmp.ne.s32.totalorder %s111, %s113
      %p117 = scmp.eq.s32.totalorder %s14, 0
      %p118 = por %p116, %p117
      %p119 = scmp.ne.s32.totalorder %s111, %s113
      %p120 = scmp.eq.s32.totalorder %s19, 1
      %p121 = por %p119, %p120
      %p122 = scmp.ne.s32.totalorder %s113, %s114
      %p123 = scmp.eq.s32.totalorder %s19, 0
      %p124 = por %p122, %p123
      %p125 = scmp.ne.s32.totalorder %s113, %s114
      %p126 = scmp.eq.s32.totalorder %s20, 1
      %p127 = por %p125, %p126
      %p129 = scmp.ne.s32.totalorder %s114, %s128
      %p130 = scmp.eq.s32.totalorder %s20, 0
      %p131 = por %p129, %p130
      %s132 = ssub.s32 %s14, %s21
      %p133 = scmp.eq.s32.totalorder %s132, 0
      %s135 = sadd.s32 %s134, 1
      %s136 = scalar_select %p133, %s134, %s135
      %p139 = pneg %p133
      %p140 = scmp.eq.s32.totalorder %s14, 1
      %p141 = por %p139, %p140
      %p142 = scmp.ne.s32.totalorder %s134, %s137
      %p143 = scmp.eq.s32.totalorder %s14, 0
      %p144 = por %p142, %p143
      %p145 = scmp.ne.s32.totalorder %s134, %s137
      %p146 = scmp.eq.s32.totalorder %s19, 1
      %p147 = por %p145, %p146
      %p148 = scmp.ne.s32.totalorder %s137, %s138
      %p149 = scmp.eq.s32.totalorder %s19, 0
      %p150 = por %p148, %p149
      %p151 = scmp.ne.s32.totalorder %s137, %s138
      %p152 = scmp.eq.s32.totalorder %s20, 1
      %p153 = por %p151, %p152
      %p155 = scmp.ne.s32.totalorder %s138, %s154
      %p156 = scmp.eq.s32.totalorder %s20, 0
      %p157 = por %p155, %p156
      %p158 = scmp.le.s32.totalorder 1, %s14
      %p159 = scmp.lt.s32.totalorder %s14, 3
      %p160 = pnand %p158, %p159
      %p161 = pneg %p160
      // Predicated region
      $region9: #{_lambda_.11} parent=5 // pred_check
        _
      $region10: #{_lambda_.11} parent=5 // pred_check_branch
        %163 = sbr.rel (%p160) target = $region12
      $region11: #{_lambda_.11} parent=5 // pred_region
        %s164 = ssub.s32 %s14, 1
        // Predicated region
        $region13: #{_lambda_.11} parent=11 // pred_check
          %p165 = pneg %p61
        $region14: #{_lambda_.11} parent=11 // pred_check_branch
          %167 = sbr.rel (%p165) target = $region16
        $region15: #{_lambda_.11} parent=11 // pred_region
          _
        $region16: #{_lambda_.11} parent=11 // pred_fallthru
          _
        // Predicated region
        $region17: #{_lambda_.11} parent=11 // pred_check
          %p168 = pneg %p82
        $region18: #{_lambda_.11} parent=11 // pred_check_branch
          %170 = sbr.rel (%p168) target = $region20
        $region19: #{_lambda_.11} parent=11 // pred_region
          _
        $region20: #{_lambda_.11} parent=11 // pred_fallthru
          _
        // Predicated region
        $region21: #{_lambda_.11} parent=11 // pred_check
          %p171 = pneg %p103
        $region22: #{_lambda_.11} parent=11 // pred_check_branch
          %173 = sbr.rel (%p171) target = $region24
        $region23: #{_lambda_.11} parent=11 // pred_region
          _
        $region24: #{_lambda_.11} parent=11 // pred_fallthru
          _
        // Predicated region
        $region25: #{_lambda_.11} parent=11 // pred_check
          %p174 = pneg %p124
        $region26: #{_lambda_.11} parent=11 // pred_check_branch
          %176 = sbr.rel (%p174) target = $region28
        $region27: #{_lambda_.11} parent=11 // pred_region
          _
        $region28: #{_lambda_.11} parent=11 // pred_fallthru
          _
      $region12: #{_lambda_.11} parent=5 // pred_fallthru
        _
      %p177 = scmp.lt.s32.totalorder %s14, 2
      // Predicated region
      $region29: #{_lambda_.11} parent=5 // pred_check
        %p178 = pneg %p177
      $region30: #{_lambda_.11} parent=5 // pred_check_branch
        %180 = sbr.rel (%p178) target = $region32
      $region31: #{_lambda_.11} parent=5 // pred_region
        // Predicated region
        $region33: #{_lambda_.11} parent=31 // pred_check
          %p181 = pneg %p34
        $region34: #{_lambda_.11} parent=31 // pred_check_branch
          %183 = sbr.rel (%p181) target = $region36
        $region35: #{_lambda_.11} parent=31 // pred_region
          %p184 = scmp.lt.s32.totalorder %s14, 1
          %s185 = scalar_select %p184, %s14, 1
          %s186 = smul.addr %s185, 72
          %s187 = smul.addr %s186, 8
          %s188 = scalar_lea.vmem %s0, %s187
        $region36: #{_lambda_.11} parent=31 // pred_fallthru
          _
      $region32: #{_lambda_.11} parent=5 // pred_fallthru
        _
      %p189 = scmp.le.s32.totalorder 1, %s14
      %p190 = scmp.lt.s32.totalorder %s14, 3
      %p191 = pnand %p189, %p190
      %p192 = pneg %p191
      // Predicated region
      $region37: #{_lambda_.11} parent=5 // pred_check
        _
      $region38: #{_lambda_.11} parent=5 // pred_check_branch
        %194 = sbr.rel (%p191) target = $region40
      $region39: #{_lambda_.11} parent=5 // pred_region
        %s195 = ssub.s32 %s14, 1
        %p196 = scmp.lt.s32.totalorder %s19, 1
        %s197 = scalar_select %p196, %s19, 1
        %s198 = smul.addr %s197, 72
        %s199 = smul.addr %s198, 8
        %s200 = scalar_lea.vmem %s0, %s199
        %p201 = pneg %p40
        %p202 = pneg %p37
        %p203 = pneg %p61
        %p204 = pneg %p58
        %p205 = pneg %p82
        %p206 = pneg %p79
        %p207 = pneg %p103
        %p208 = pneg %p100
        %p209 = pneg %p124
        %p210 = pneg %p121
        %p211 = pneg %p150
        %p212 = pneg %p147
        %s213 = sand.u32 %s137, 1
        %s214 = scalar_lea.sflag [#allocation3], %s213
        %s215 = sand.u32 %s137, 1
        %s216 = smul.addr %s215, 16
        %s217 = scalar_lea.vmem [#allocation2], %s216
        %p218 = scmp.lt.s32.totalorder %s19, 1
        %s219 = scalar_select %p218, %s19, 1
        %s220 = smul.addr %s219, 72
        %s221 = smul.addr %s220, 8
        %s222 = scalar_lea.vmem %s0, %s221
        %v223 = vld [vmem:[%s222] sm:$0xff]
        %v224 = vld [vmem:[%s222 + $0x8] sm:$0xff]
        %v225 = vld [vmem:[%s222 + $0x10] sm:$0xff]
        %v226 = vld [vmem:[%s222 + $0x18] sm:$0xff]
        %v227 = vld [vmem:[%s222 + $0x20] sm:$0xff]
        %v228 = vld [vmem:[%s222 + $0x28] sm:$0xff]
        %v229 = vld [vmem:[%s222 + $0x30] sm:$0xff]
        %v230 = vld [vmem:[%s222 + $0x38] sm:$0xff]
        %v231 = vld [vmem:[%s222 + $0x40] sm:$0xff]
        %v232 = vld [vmem:[%s222 + $0x48] sm:$0xff]
        %v233 = vld [vmem:[%s222 + $0x50] sm:$0xff]
        %v234 = vld [vmem:[%s222 + $0x58] sm:$0xff]
        %v235 = vld [vmem:[%s222 + $0x60] sm:$0xff]
        %v236 = vld [vmem:[%s222 + $0x68] sm:$0xff]
        %v237 = vld [vmem:[%s222 + $0x70] sm:$0xff]
        %v238 = vld [vmem:[%s222 + $0x78] sm:$0xff]
        %v239 = vld [vmem:[%s222 + $0x80] sm:$0xff]
        %v240 = vld [vmem:[%s222 + $0x88] sm:$0xff]
        %v241 = vld [vmem:[%s222 + $0x90] sm:$0xff]
        %v242 = vld [vmem:[%s222 + $0x98] sm:$0xff]
        %v243 = vld [vmem:[%s222 + $0xa0] sm:$0xff]
        %v244 = vld [vmem:[%s222 + $0xa8] sm:$0xff]
        %v245 = vld [vmem:[%s222 + $0xb0] sm:$0xff]
        %v246 = vld [vmem:[%s222 + $0xb8] sm:$0xff]
        %v247 = vld [vmem:[%s222 + $0xc0] sm:$0xff]
        %v248 = vld [vmem:[%s222 + $0xc8] sm:$0xff]
        %v249 = vld [vmem:[%s222 + $0xd0] sm:$0xff]
        %v250 = vld [vmem:[%s222 + $0xd8] sm:$0xff]
        %v251 = vld [vmem:[%s222 + $0xe0] sm:$0xff]
        %v252 = vld [vmem:[%s222 + $0xe8] sm:$0xff]
        %v253 = vld [vmem:[%s222 + $0xf0] sm:$0xff]
        %v254 = vld [vmem:[%s222 + $0xf8] sm:$0xff]
        %v255 = vld [vmem:[%s222 + $0x100] sm:$0xff]
        %v256 = vld [vmem:[%s222 + $0x108] sm:$0xff]
        %v257 = vld [vmem:[%s222 + $0x110] sm:$0xff]
        %v258 = vld [vmem:[%s222 + $0x118] sm:$0xff]
        %v259 = vld [vmem:[%s222 + $0x120] sm:$0xff]
        %v260 = vld [vmem:[%s222 + $0x128] sm:$0xff]
        %v261 = vld [vmem:[%s222 + $0x130] sm:$0xff]
        %v262 = vld [vmem:[%s222 + $0x138] sm:$0xff]
        %v263 = vld [vmem:[%s222 + $0x140] sm:$0xff]
        %v264 = vld [vmem:[%s222 + $0x148] sm:$0xff]
        %v265 = vld [vmem:[%s222 + $0x150] sm:$0xff]
        %v266 = vld [vmem:[%s222 + $0x158] sm:$0xff]
        %v267 = vld [vmem:[%s222 + $0x160] sm:$0xff]
        %v268 = vld [vmem:[%s222 + $0x168] sm:$0xff]
        %v269 = vld [vmem:[%s222 + $0x170] sm:$0xff]
        %v270 = vld [vmem:[%s222 + $0x178] sm:$0xff]
        %v271 = vld [vmem:[%s222 + $0x180] sm:$0xff]
        %v272 = vld [vmem:[%s222 + $0x188] sm:$0xff]
        %v273 = vld [vmem:[%s222 + $0x190] sm:$0xff]
        %v274 = vld [vmem:[%s222 + $0x198] sm:$0xff]
        %v275 = vld [vmem:[%s222 + $0x1a0] sm:$0xff]
        %v276 = vld [vmem:[%s222 + $0x1a8] sm:$0xff]
        %v277 = vld [vmem:[%s222 + $0x1b0] sm:$0xff]
        %v278 = vld [vmem:[%s222 + $0x1b8] sm:$0xff]
        %v279 = vld [vmem:[%s222 + $0x1c0] sm:$0xff]
        %v280 = vld [vmem:[%s222 + $0x1c8] sm:$0xff]
        %v281 = vld [vmem:[%s222 + $0x1d0] sm:$0xff]
        %v282 = vld [vmem:[%s222 + $0x1d8] sm:$0xff]
        %v283 = vld [vmem:[%s222 + $0x1e0] sm:$0xff]
        %v284 = vld [vmem:[%s222 + $0x1e8] sm:$0xff]
        %v285 = vld [vmem:[%s222 + $0x1f0] sm:$0xff]
        %v286 = vld [vmem:[%s222 + $0x1f8] sm:$0xff]
        %v287 = vld [vmem:[%s222 + $0x200] sm:$0xff]
        %v288 = vld [vmem:[%s222 + $0x208] sm:$0xff]
        %v289 = vld [vmem:[%s222 + $0x210] sm:$0xff]
        %v290 = vld [vmem:[%s222 + $0x218] sm:$0xff]
        %v291 = vld [vmem:[%s222 + $0x220] sm:$0xff]
        %v292 = vld [vmem:[%s222 + $0x228] sm:$0xff]
        %v293 = vld [vmem:[%s222 + $0x230] sm:$0xff]
        %v294 = vld [vmem:[%s222 + $0x238] sm:$0xff]
        %v295 = vld [vmem:[%s1] sm:$0xff]
        %v296 = vld [vmem:[%s1 + $0x8] sm:$0xff]
        %v297 = vld [vmem:[%s1 + $0x10] sm:$0xff]
        %v298 = vld [vmem:[%s1 + $0x18] sm:$0xff]
        %v299 = vld [vmem:[%s1 + $0x20] sm:$0xff]
        %v300 = vld [vmem:[%s1 + $0x28] sm:$0xff]
        %v301 = vld [vmem:[%s1 + $0x30] sm:$0xff]
        %v302 = vld [vmem:[%s1 + $0x38] sm:$0xff]
        %v303 = vld [vmem:[%s1 + $0x40] sm:$0xff]
        %v304 = vld [vmem:[%s1 + $0x48] sm:$0xff]
        %v305 = vld [vmem:[%s1 + $0x50] sm:$0xff]
        %v306 = vld [vmem:[%s1 + $0x58] sm:$0xff]
        %v307 = vld [vmem:[%s1 + $0x60] sm:$0xff]
        %v308 = vld [vmem:[%s1 + $0x68] sm:$0xff]
        %v309 = vld [vmem:[%s1 + $0x70] sm:$0xff]
        %v310 = vld [vmem:[%s1 + $0x78] sm:$0xff]
        %v311 = vld [vmem:[%s1 + $0x80] sm:$0xff]
        %v312 = vld [vmem:[%s1 + $0x88] sm:$0xff]
        %v313 = vld [vmem:[%s1 + $0x90] sm:$0xff]
        %v314 = vld [vmem:[%s1 + $0x98] sm:$0xff]
        %v315 = vld [vmem:[%s1 + $0xa0] sm:$0xff]
        %v316 = vld [vmem:[%s1 + $0xa8] sm:$0xff]
        %v317 = vld [vmem:[%s1 + $0xb0] sm:$0xff]
        %v318 = vld [vmem:[%s1 + $0xb8] sm:$0xff]
        %v319 = vld [vmem:[%s1 + $0xc0] sm:$0xff]
        %v320 = vld [vmem:[%s1 + $0xc8] sm:$0xff]
        %v321 = vld [vmem:[%s1 + $0xd0] sm:$0xff]
        %v322 = vld [vmem:[%s1 + $0xd8] sm:$0xff]
        %v323 = vld [vmem:[%s1 + $0xe0] sm:$0xff]
        %v324 = vld [vmem:[%s1 + $0xe8] sm:$0xff]
        %v325 = vld [vmem:[%s1 + $0xf0] sm:$0xff]
        %v326 = vld [vmem:[%s1 + $0xf8] sm:$0xff]
        %v327 = vld [vmem:[%s1 + $0x100] sm:$0xff]
        %v328 = vld [vmem:[%s1 + $0x108] sm:$0xff]
        %v329 = vld [vmem:[%s1 + $0x110] sm:$0xff]
        %v330 = vld [vmem:[%s1 + $0x118] sm:$0xff]
        %v331 = vld [vmem:[%s1 + $0x120] sm:$0xff]
        %v332 = vld [vmem:[%s1 + $0x128] sm:$0xff]
        %v333 = vld [vmem:[%s1 + $0x130] sm:$0xff]
        %v334 = vld [vmem:[%s1 + $0x138] sm:$0xff]
        %v335 = vld [vmem:[%s1 + $0x140] sm:$0xff]
        %v336 = vld [vmem:[%s1 + $0x148] sm:$0xff]
        %v337 = vld [vmem:[%s1 + $0x150] sm:$0xff]
        %v338 = vld [vmem:[%s1 + $0x158] sm:$0xff]
        %v339 = vld [vmem:[%s1 + $0x160] sm:$0xff]
        %v340 = vld [vmem:[%s1 + $0x168] sm:$0xff]
        %v341 = vld [vmem:[%s1 + $0x170] sm:$0xff]
        %v342 = vld [vmem:[%s1 + $0x178] sm:$0xff]
        %v343 = vld [vmem:[%s1 + $0x180] sm:$0xff]
        %v344 = vld [vmem:[%s1 + $0x188] sm:$0xff]
        %v345 = vld [vmem:[%s1 + $0x190] sm:$0xff]
        %v346 = vld [vmem:[%s1 + $0x198] sm:$0xff]
        %v347 = vld [vmem:[%s1 + $0x1a0] sm:$0xff]
        %v348 = vld [vmem:[%s1 + $0x1a8] sm:$0xff]
        %v349 = vld [vmem:[%s1 + $0x1b0] sm:$0xff]
        %v350 = vld [vmem:[%s1 + $0x1b8] sm:$0xff]
        %v351 = vld [vmem:[%s1 + $0x1c0] sm:$0xff]
        %v352 = vld [vmem:[%s1 + $0x1c8] sm:$0xff]
        %v353 = vld [vmem:[%s1 + $0x1d0] sm:$0xff]
        %v354 = vld [vmem:[%s1 + $0x1d8] sm:$0xff]
        %v355 = vld [vmem:[%s1 + $0x1e0] sm:$0xff]
        %v356 = vld [vmem:[%s1 + $0x1e8] sm:$0xff]
        %v357 = vld [vmem:[%s1 + $0x1f0] sm:$0xff]
        %v358 = vld [vmem:[%s1 + $0x1f8] sm:$0xff]
        %v359 = vld [vmem:[%s1 + $0x200] sm:$0xff]
        %v360 = vld [vmem:[%s1 + $0x208] sm:$0xff]
        %v361 = vld [vmem:[%s1 + $0x210] sm:$0xff]
        %v362 = vld [vmem:[%s1 + $0x218] sm:$0xff]
        %v363 = vld [vmem:[%s1 + $0x220] sm:$0xff]
        %v364 = vld [vmem:[%s1 + $0x228] sm:$0xff]
        %v365 = vld [vmem:[%s1 + $0x230] sm:$0xff]
        %v366 = vld [vmem:[%s1 + $0x238] sm:$0xff]
        %v367 = vld [vmem:[%s1 + $0x240] sm:$0xff]
        %v368 = vld [vmem:[%s1 + $0x248] sm:$0xff]
        %v369 = vld [vmem:[%s1 + $0x250] sm:$0xff]
        %v370 = vld [vmem:[%s1 + $0x258] sm:$0xff]
        %v371 = vld [vmem:[%s1 + $0x260] sm:$0xff]
        %v372 = vld [vmem:[%s1 + $0x268] sm:$0xff]
        %v373 = vld [vmem:[%s1 + $0x270] sm:$0xff]
        %v374 = vld [vmem:[%s1 + $0x278] sm:$0xff]
        %v375 = vld [vmem:[%s1 + $0x280] sm:$0xff]
        %v376 = vld [vmem:[%s1 + $0x288] sm:$0xff]
        %v377 = vld [vmem:[%s1 + $0x290] sm:$0xff]
        %v378 = vld [vmem:[%s1 + $0x298] sm:$0xff]
        %v379 = vld [vmem:[%s1 + $0x2a0] sm:$0xff]
        %v380 = vld [vmem:[%s1 + $0x2a8] sm:$0xff]
        %v381 = vld [vmem:[%s1 + $0x2b0] sm:$0xff]
        %v382 = vld [vmem:[%s1 + $0x2b8] sm:$0xff]
        %v383 = vld [vmem:[%s1 + $0x2c0] sm:$0xff]
        %v384 = vld [vmem:[%s1 + $0x2c8] sm:$0xff]
        %v385 = vld [vmem:[%s1 + $0x2d0] sm:$0xff]
        %v386 = vld [vmem:[%s1 + $0x2d8] sm:$0xff]
        %v387 = vld [vmem:[%s1 + $0x2e0] sm:$0xff]
        %v388 = vld [vmem:[%s1 + $0x2e8] sm:$0xff]
        %v389 = vld [vmem:[%s1 + $0x2f0] sm:$0xff]
        %v390 = vld [vmem:[%s1 + $0x2f8] sm:$0xff]
        %v391 = vld [vmem:[%s1 + $0x300] sm:$0xff]
        %v392 = vld [vmem:[%s1 + $0x308] sm:$0xff]
        %v393 = vld [vmem:[%s1 + $0x310] sm:$0xff]
        %v394 = vld [vmem:[%s1 + $0x318] sm:$0xff]
        %v395 = vld [vmem:[%s1 + $0x320] sm:$0xff]
        %v396 = vld [vmem:[%s1 + $0x328] sm:$0xff]
        %v397 = vld [vmem:[%s1 + $0x330] sm:$0xff]
        %v398 = vld [vmem:[%s1 + $0x338] sm:$0xff]
        %v399 = vld [vmem:[%s1 + $0x340] sm:$0xff]
        %v400 = vld [vmem:[%s1 + $0x348] sm:$0xff]
        %v401 = vld [vmem:[%s1 + $0x350] sm:$0xff]
        %v402 = vld [vmem:[%s1 + $0x358] sm:$0xff]
        %v403 = vld [vmem:[%s1 + $0x360] sm:$0xff]
        %v404 = vld [vmem:[%s1 + $0x368] sm:$0xff]
        %v405 = vld [vmem:[%s1 + $0x370] sm:$0xff]
        %v406 = vld [vmem:[%s1 + $0x378] sm:$0xff]
        %v407 = vld [vmem:[%s1 + $0x380] sm:$0xff]
        %v408 = vld [vmem:[%s1 + $0x388] sm:$0xff]
        %v409 = vld [vmem:[%s1 + $0x390] sm:$0xff]
        %v410 = vld [vmem:[%s1 + $0x398] sm:$0xff]
        %v411 = vld [vmem:[%s1 + $0x3a0] sm:$0xff]
        %v412 = vld [vmem:[%s1 + $0x3a8] sm:$0xff]
        %v413 = vld [vmem:[%s1 + $0x3b0] sm:$0xff]
        %v414 = vld [vmem:[%s1 + $0x3b8] sm:$0xff]
        %v415 = vld [vmem:[%s1 + $0x3c0] sm:$0xff]
        %v416 = vld [vmem:[%s1 + $0x3c8] sm:$0xff]
        %v417 = vld [vmem:[%s1 + $0x3d0] sm:$0xff]
        %v418 = vld [vmem:[%s1 + $0x3d8] sm:$0xff]
        %v419 = vld [vmem:[%s1 + $0x3e0] sm:$0xff]
        %v420 = vld [vmem:[%s1 + $0x3e8] sm:$0xff]
        %v421 = vld [vmem:[%s1 + $0x3f0] sm:$0xff]
        %v422 = vld [vmem:[%s1 + $0x3f8] sm:$0xff]
        %v423 = vld [vmem:[%s1 + $0x400] sm:$0xff]
        %v424 = vld [vmem:[%s1 + $0x408] sm:$0xff]
        %v425 = vld [vmem:[%s1 + $0x410] sm:$0xff]
        %v426 = vld [vmem:[%s1 + $0x418] sm:$0xff]
        %v427 = vld [vmem:[%s1 + $0x420] sm:$0xff]
        %v428 = vld [vmem:[%s1 + $0x428] sm:$0xff]
        %v429 = vld [vmem:[%s1 + $0x430] sm:$0xff]
        %v430 = vld [vmem:[%s1 + $0x438] sm:$0xff]
        %v431 = vld [vmem:[%s1 + $0x440] sm:$0xff]
        %v432 = vld [vmem:[%s1 + $0x448] sm:$0xff]
        %v433 = vld [vmem:[%s1 + $0x450] sm:$0xff]
        %v434 = vld [vmem:[%s1 + $0x458] sm:$0xff]
        %v435 = vld [vmem:[%s1 + $0x460] sm:$0xff]
        %v436 = vld [vmem:[%s1 + $0x468] sm:$0xff]
        %v437 = vld [vmem:[%s1 + $0x470] sm:$0xff]
        %v438 = vld [vmem:[%s1 + $0x478] sm:$0xff]
        %439 = vmatpush.msra.mxu0 %v310
        %440 = vmatpush.msra.mxu0 %v309
        %441 = vmatpush.msra.mxu0 %v308
        %442 = vmatpush.msra.mxu0 %v307
        %443 = vmatpush.msra.mxu0 %v306
        %444 = vmatpush.msra.mxu0 %v305
        %445 = vmatpush.msra.mxu0 %v304
        %446 = vmatpush.msra.mxu0 %v303
        %447 = vmatpush.msra.mxu0 %v302
        %448 = vmatpush.msra.mxu0 %v301
        %449 = vmatpush.msra.mxu0 %v300
        %450 = vmatpush.msra.mxu0 %v299
        %451 = vmatpush.msra.mxu0 %v298
        %452 = vmatpush.msra.mxu0 %v297
        %453 = vmatpush.msra.mxu0 %v296
        %454 = vmatpush.msra.mxu0 %v295
        %455 = vmatmul.f32.gmra.mxu0 %v223
        %v456 = vpop.f32.mrf.mxu0
        %v457 = vadd.f32 0.0, %v456
        %458 = vmatmul.f32.gmra.mxu0 %v232
        %v459 = vpop.f32.mrf.mxu0
        %v460 = vadd.f32 0.0, %v459
        %461 = vmatmul.f32.gmra.mxu0 %v241
        %v462 = vpop.f32.mrf.mxu0
        %v463 = vadd.f32 0.0, %v462
        %464 = vmatmul.f32.gmra.mxu0 %v250
        %v465 = vpop.f32.mrf.mxu0
        %v466 = vadd.f32 0.0, %v465
        %467 = vmatmul.f32.gmra.mxu0 %v259
        %v468 = vpop.f32.mrf.mxu0
        %v469 = vadd.f32 0.0, %v468
        %470 = vmatmul.f32.gmra.mxu0 %v268
        %v471 = vpop.f32.mrf.mxu0
        %v472 = vadd.f32 0.0, %v471
        %473 = vmatmul.f32.gmra.mxu0 %v277
        %v474 = vpop.f32.mrf.mxu0
        %v475 = vadd.f32 0.0, %v474
        %476 = vmatmul.f32.gmra.mxu0 %v286
        %v477 = vpop.f32.mrf.mxu0
        %v478 = vadd.f32 0.0, %v477
        %479 = vdwg.mxu0
        %480 = vmatpush.msra.mxu0 %v326
        %481 = vmatpush.msra.mxu0 %v325
        %482 = vmatpush.msra.mxu0 %v324
        %483 = vmatpush.msra.mxu0 %v323
        %484 = vmatpush.msra.mxu0 %v322
        %485 = vmatpush.msra.mxu0 %v321
        %486 = vmatpush.msra.mxu0 %v320
        %487 = vmatpush.msra.mxu0 %v319
        %488 = vmatpush.msra.mxu0 %v318
        %489 = vmatpush.msra.mxu0 %v317
        %490 = vmatpush.msra.mxu0 %v316
        %491 = vmatpush.msra.mxu0 %v315
        %492 = vmatpush.msra.mxu0 %v314
        %493 = vmatpush.msra.mxu0 %v313
        %494 = vmatpush.msra.mxu0 %v312
        %495 = vmatpush.msra.mxu0 %v311
        %496 = vmatmul.f32.gmra.mxu0 %v224
        %v497 = vpop.f32.mrf.mxu0
        %v498 = vadd.f32 %v457, %v497
        %499 = vmatmul.f32.gmra.mxu0 %v233
        %v500 = vpop.f32.mrf.mxu0
        %v501 = vadd.f32 %v460, %v500
        %502 = vmatmul.f32.gmra.mxu0 %v242
        %v503 = vpop.f32.mrf.mxu0
        %v504 = vadd.f32 %v463, %v503
        %505 = vmatmul.f32.gmra.mxu0 %v251
        %v506 = vpop.f32.mrf.mxu0
        %v507 = vadd.f32 %v466, %v506
        %508 = vmatmul.f32.gmra.mxu0 %v260
        %v509 = vpop.f32.mrf.mxu0
        %v510 = vadd.f32 %v469, %v509
        %511 = vmatmul.f32.gmra.mxu0 %v269
        %v512 = vpop.f32.mrf.mxu0
        %v513 = vadd.f32 %v472, %v512
        %514 = vmatmul.f32.gmra.mxu0 %v278
        %v515 = vpop.f32.mrf.mxu0
        %v516 = vadd.f32 %v475, %v515
        %517 = vmatmul.f32.gmra.mxu0 %v287
        %v518 = vpop.f32.mrf.mxu0
        %v519 = vadd.f32 %v478, %v518
        %520 = vdwg.mxu0
        %521 = vmatpush.msra.mxu0 %v342
        %522 = vmatpush.msra.mxu0 %v341
        %523 = vmatpush.msra.mxu0 %v340
        %524 = vmatpush.msra.mxu0 %v339
        %525 = vmatpush.msra.mxu0 %v338
        %526 = vmatpush.msra.mxu0 %v337
        %527 = vmatpush.msra.mxu0 %v336
        %528 = vmatpush.msra.mxu0 %v335
        %529 = vmatpush.msra.mxu0 %v334
        %530 = vmatpush.msra.mxu0 %v333
        %531 = vmatpush.msra.mxu0 %v332
        %532 = vmatpush.msra.mxu0 %v331
        %533 = vmatpush.msra.mxu0 %v330
        %534 = vmatpush.msra.mxu0 %v329
        %535 = vmatpush.msra.mxu0 %v328
        %536 = vmatpush.msra.mxu0 %v327
        %537 = vmatmul.f32.gmra.mxu0 %v225
        %v538 = vpop.f32.mrf.mxu0
        %v539 = vadd.f32 %v498, %v538
        %540 = vmatmul.f32.gmra.mxu0 %v234
        %v541 = vpop.f32.mrf.mxu0
        %v542 = vadd.f32 %v501, %v541
        %543 = vmatmul.f32.gmra.mxu0 %v243
        %v544 = vpop.f32.mrf.mxu0
        %v545 = vadd.f32 %v504, %v544
        %546 = vmatmul.f32.gmra.mxu0 %v252
        %v547 = vpop.f32.mrf.mxu0
        %v548 = vadd.f32 %v507, %v547
        %549 = vmatmul.f32.gmra.mxu0 %v261
        %v550 = vpop.f32.mrf.mxu0
        %v551 = vadd.f32 %v510, %v550
        %552 = vmatmul.f32.gmra.mxu0 %v270
        %v553 = vpop.f32.mrf.mxu0
        %v554 = vadd.f32 %v513, %v553
        %555 = vmatmul.f32.gmra.mxu0 %v279
        %v556 = vpop.f32.mrf.mxu0
        %v557 = vadd.f32 %v516, %v556
        %558 = vmatmul.f32.gmra.mxu0 %v288
        %v559 = vpop.f32.mrf.mxu0
        %v560 = vadd.f32 %v519, %v559
        %561 = vdwg.mxu0
        %562 = vmatpush.msra.mxu0 %v358
        %563 = vmatpush.msra.mxu0 %v357
        %564 = vmatpush.msra.mxu0 %v356
        %565 = vmatpush.msra.mxu0 %v355
        %566 = vmatpush.msra.mxu0 %v354
        %567 = vmatpush.msra.mxu0 %v353
        %568 = vmatpush.msra.mxu0 %v352
        %569 = vmatpush.msra.mxu0 %v351
        %570 = vmatpush.msra.mxu0 %v350
        %571 = vmatpush.msra.mxu0 %v349
        %572 = vmatpush.msra.mxu0 %v348
        %573 = vmatpush.msra.mxu0 %v347
        %574 = vmatpush.msra.mxu0 %v346
        %575 = vmatpush.msra.mxu0 %v345
        %576 = vmatpush.msra.mxu0 %v344
        %577 = vmatpush.msra.mxu0 %v343
        %578 = vmatmul.f32.gmra.mxu0 %v226
        %v579 = vpop.f32.mrf.mxu0
        %v580 = vadd.f32 %v539, %v579
        %581 = vmatmul.f32.gmra.mxu0 %v235
        %v582 = vpop.f32.mrf.mxu0
        %v583 = vadd.f32 %v542, %v582
        %584 = vmatmul.f32.gmra.mxu0 %v244
        %v585 = vpop.f32.mrf.mxu0
        %v586 = vadd.f32 %v545, %v585
        %587 = vmatmul.f32.gmra.mxu0 %v253
        %v588 = vpop.f32.mrf.mxu0
        %v589 = vadd.f32 %v548, %v588
        %590 = vmatmul.f32.gmra.mxu0 %v262
        %v591 = vpop.f32.mrf.mxu0
        %v592 = vadd.f32 %v551, %v591
        %593 = vmatmul.f32.gmra.mxu0 %v271
        %v594 = vpop.f32.mrf.mxu0
        %v595 = vadd.f32 %v554, %v594
        %596 = vmatmul.f32.gmra.mxu0 %v280
        %v597 = vpop.f32.mrf.mxu0
        %v598 = vadd.f32 %v557, %v597
        %599 = vmatmul.f32.gmra.mxu0 %v289
        %v600 = vpop.f32.mrf.mxu0
        %v601 = vadd.f32 %v560, %v600
        %602 = vdwg.mxu0
        %603 = vmatpush.msra.mxu0 %v374
        %604 = vmatpush.msra.mxu0 %v373
        %605 = vmatpush.msra.mxu0 %v372
        %606 = vmatpush.msra.mxu0 %v371
        %607 = vmatpush.msra.mxu0 %v370
        %608 = vmatpush.msra.mxu0 %v369
        %609 = vmatpush.msra.mxu0 %v368
        %610 = vmatpush.msra.mxu0 %v367
        %611 = vmatpush.msra.mxu0 %v366
        %612 = vmatpush.msra.mxu0 %v365
        %613 = vmatpush.msra.mxu0 %v364
        %614 = vmatpush.msra.mxu0 %v363
        %615 = vmatpush.msra.mxu0 %v362
        %616 = vmatpush.msra.mxu0 %v361
        %617 = vmatpush.msra.mxu0 %v360
        %618 = vmatpush.msra.mxu0 %v359
        %619 = vmatmul.f32.gmra.mxu0 %v227
        %v620 = vpop.f32.mrf.mxu0
        %v621 = vadd.f32 %v580, %v620
        %622 = vmatmul.f32.gmra.mxu0 %v236
        %v623 = vpop.f32.mrf.mxu0
        %v624 = vadd.f32 %v583, %v623
        %625 = vmatmul.f32.gmra.mxu0 %v245
        %v626 = vpop.f32.mrf.mxu0
        %v627 = vadd.f32 %v586, %v626
        %628 = vmatmul.f32.gmra.mxu0 %v254
        %v629 = vpop.f32.mrf.mxu0
        %v630 = vadd.f32 %v589, %v629
        %631 = vmatmul.f32.gmra.mxu0 %v263
        %v632 = vpop.f32.mrf.mxu0
        %v633 = vadd.f32 %v592, %v632
        %634 = vmatmul.f32.gmra.mxu0 %v272
        %v635 = vpop.f32.mrf.mxu0
        %v636 = vadd.f32 %v595, %v635
        %637 = vmatmul.f32.gmra.mxu0 %v281
        %v638 = vpop.f32.mrf.mxu0
        %v639 = vadd.f32 %v598, %v638
        %640 = vmatmul.f32.gmra.mxu0 %v290
        %v641 = vpop.f32.mrf.mxu0
        %v642 = vadd.f32 %v601, %v641
        %643 = vdwg.mxu0
        %644 = vmatpush.msra.mxu0 %v390
        %645 = vmatpush.msra.mxu0 %v389
        %646 = vmatpush.msra.mxu0 %v388
        %647 = vmatpush.msra.mxu0 %v387
        %648 = vmatpush.msra.mxu0 %v386
        %649 = vmatpush.msra.mxu0 %v385
        %650 = vmatpush.msra.mxu0 %v384
        %651 = vmatpush.msra.mxu0 %v383
        %652 = vmatpush.msra.mxu0 %v382
        %653 = vmatpush.msra.mxu0 %v381
        %654 = vmatpush.msra.mxu0 %v380
        %655 = vmatpush.msra.mxu0 %v379
        %656 = vmatpush.msra.mxu0 %v378
        %657 = vmatpush.msra.mxu0 %v377
        %658 = vmatpush.msra.mxu0 %v376
        %659 = vmatpush.msra.mxu0 %v375
        %660 = vmatmul.f32.gmra.mxu0 %v228
        %v661 = vpop.f32.mrf.mxu0
        %v662 = vadd.f32 %v621, %v661
        %663 = vmatmul.f32.gmra.mxu0 %v237
        %v664 = vpop.f32.mrf.mxu0
        %v665 = vadd.f32 %v624, %v664
        %666 = vmatmul.f32.gmra.mxu0 %v246
        %v667 = vpop.f32.mrf.mxu0
        %v668 = vadd.f32 %v627, %v667
        %669 = vmatmul.f32.gmra.mxu0 %v255
        %v670 = vpop.f32.mrf.mxu0
        %v671 = vadd.f32 %v630, %v670
        %672 = vmatmul.f32.gmra.mxu0 %v264
        %v673 = vpop.f32.mrf.mxu0
        %v674 = vadd.f32 %v633, %v673
        %675 = vmatmul.f32.gmra.mxu0 %v273
        %v676 = vpop.f32.mrf.mxu0
        %v677 = vadd.f32 %v636, %v676
        %678 = vmatmul.f32.gmra.mxu0 %v282
        %v679 = vpop.f32.mrf.mxu0
        %v680 = vadd.f32 %v639, %v679
        %681 = vmatmul.f32.gmra.mxu0 %v291
        %v682 = vpop.f32.mrf.mxu0
        %v683 = vadd.f32 %v642, %v682
        %684 = vdwg.mxu0
        %685 = vmatpush.msra.mxu0 %v406
        %686 = vmatpush.msra.mxu0 %v405
        %687 = vmatpush.msra.mxu0 %v404
        %688 = vmatpush.msra.mxu0 %v403
        %689 = vmatpush.msra.mxu0 %v402
        %690 = vmatpush.msra.mxu0 %v401
        %691 = vmatpush.msra.mxu0 %v400
        %692 = vmatpush.msra.mxu0 %v399
        %693 = vmatpush.msra.mxu0 %v398
        %694 = vmatpush.msra.mxu0 %v397
        %695 = vmatpush.msra.mxu0 %v396
        %696 = vmatpush.msra.mxu0 %v395
        %697 = vmatpush.msra.mxu0 %v394
        %698 = vmatpush.msra.mxu0 %v393
        %699 = vmatpush.msra.mxu0 %v392
        %700 = vmatpush.msra.mxu0 %v391
        %701 = vmatmul.f32.gmra.mxu0 %v229
        %v702 = vpop.f32.mrf.mxu0
        %v703 = vadd.f32 %v662, %v702
        %704 = vmatmul.f32.gmra.mxu0 %v238
        %v705 = vpop.f32.mrf.mxu0
        %v706 = vadd.f32 %v665, %v705
        %707 = vmatmul.f32.gmra.mxu0 %v247
        %v708 = vpop.f32.mrf.mxu0
        %v709 = vadd.f32 %v668, %v708
        %710 = vmatmul.f32.gmra.mxu0 %v256
        %v711 = vpop.f32.mrf.mxu0
        %v712 = vadd.f32 %v671, %v711
        %713 = vmatmul.f32.gmra.mxu0 %v265
        %v714 = vpop.f32.mrf.mxu0
        %v715 = vadd.f32 %v674, %v714
        %716 = vmatmul.f32.gmra.mxu0 %v274
        %v717 = vpop.f32.mrf.mxu0
        %v718 = vadd.f32 %v677, %v717
        %719 = vmatmul.f32.gmra.mxu0 %v283
        %v720 = vpop.f32.mrf.mxu0
        %v721 = vadd.f32 %v680, %v720
        %722 = vmatmul.f32.gmra.mxu0 %v292
        %v723 = vpop.f32.mrf.mxu0
        %v724 = vadd.f32 %v683, %v723
        %725 = vdwg.mxu0
        %726 = vmatpush.msra.mxu0 %v422
        %727 = vmatpush.msra.mxu0 %v421
        %728 = vmatpush.msra.mxu0 %v420
        %729 = vmatpush.msra.mxu0 %v419
        %730 = vmatpush.msra.mxu0 %v418
        %731 = vmatpush.msra.mxu0 %v417
        %732 = vmatpush.msra.mxu0 %v416
        %733 = vmatpush.msra.mxu0 %v415
        %734 = vmatpush.msra.mxu0 %v414
        %735 = vmatpush.msra.mxu0 %v413
        %736 = vmatpush.msra.mxu0 %v412
        %737 = vmatpush.msra.mxu0 %v411
        %738 = vmatpush.msra.mxu0 %v410
        %739 = vmatpush.msra.mxu0 %v409
        %740 = vmatpush.msra.mxu0 %v408
        %741 = vmatpush.msra.mxu0 %v407
        %742 = vmatmul.f32.gmra.mxu0 %v230
        %v743 = vpop.f32.mrf.mxu0
        %v744 = vadd.f32 %v703, %v743
        %745 = vmatmul.f32.gmra.mxu0 %v239
        %v746 = vpop.f32.mrf.mxu0
        %v747 = vadd.f32 %v706, %v746
        %748 = vmatmul.f32.gmra.mxu0 %v248
        %v749 = vpop.f32.mrf.mxu0
        %v750 = vadd.f32 %v709, %v749
        %751 = vmatmul.f32.gmra.mxu0 %v257
        %v752 = vpop.f32.mrf.mxu0
        %v753 = vadd.f32 %v712, %v752
        %754 = vmatmul.f32.gmra.mxu0 %v266
        %v755 = vpop.f32.mrf.mxu0
        %v756 = vadd.f32 %v715, %v755
        %757 = vmatmul.f32.gmra.mxu0 %v275
        %v758 = vpop.f32.mrf.mxu0
        %v759 = vadd.f32 %v718, %v758
        %760 = vmatmul.f32.gmra.mxu0 %v284
        %v761 = vpop.f32.mrf.mxu0
        %v762 = vadd.f32 %v721, %v761
        %763 = vmatmul.f32.gmra.mxu0 %v293
        %v764 = vpop.f32.mrf.mxu0
        %v765 = vadd.f32 %v724, %v764
        %766 = vdwg.mxu0
        %767 = vmatpush.msra.mxu0 %v438
        %768 = vmatpush.msra.mxu0 %v437
        %769 = vmatpush.msra.mxu0 %v436
        %770 = vmatpush.msra.mxu0 %v435
        %771 = vmatpush.msra.mxu0 %v434
        %772 = vmatpush.msra.mxu0 %v433
        %773 = vmatpush.msra.mxu0 %v432
        %774 = vmatpush.msra.mxu0 %v431
        %775 = vmatpush.msra.mxu0 %v430
        %776 = vmatpush.msra.mxu0 %v429
        %777 = vmatpush.msra.mxu0 %v428
        %778 = vmatpush.msra.mxu0 %v427
        %779 = vmatpush.msra.mxu0 %v426
        %780 = vmatpush.msra.mxu0 %v425
        %781 = vmatpush.msra.mxu0 %v424
        %782 = vmatpush.msra.mxu0 %v423
        %783 = vmatmul.f32.gmra.mxu0 %v231
        %v784 = vpop.f32.mrf.mxu0
        %v785 = vadd.f32 %v744, %v784
        %786 = vmatmul.f32.gmra.mxu0 %v240
        %v787 = vpop.f32.mrf.mxu0
        %v788 = vadd.f32 %v747, %v787
        %789 = vmatmul.f32.gmra.mxu0 %v249
        %v790 = vpop.f32.mrf.mxu0
        %v791 = vadd.f32 %v750, %v790
        %792 = vmatmul.f32.gmra.mxu0 %v258
        %v793 = vpop.f32.mrf.mxu0
        %v794 = vadd.f32 %v753, %v793
        %795 = vmatmul.f32.gmra.mxu0 %v267
        %v796 = vpop.f32.mrf.mxu0
        %v797 = vadd.f32 %v756, %v796
        %798 = vmatmul.f32.gmra.mxu0 %v276
        %v799 = vpop.f32.mrf.mxu0
        %v800 = vadd.f32 %v759, %v799
        %801 = vmatmul.f32.gmra.mxu0 %v285
        %v802 = vpop.f32.mrf.mxu0
        %v803 = vadd.f32 %v762, %v802
        %804 = vmatmul.f32.gmra.mxu0 %v294
        %v805 = vpop.f32.mrf.mxu0
        %v806 = vadd.f32 %v765, %v805
        %807 = vdwg.mxu0
        %v808 = vld [vmem:[%s2] sm:$0x1]
        %v810 = vperm.slane %v808, 0
        %v812 = vmul.f32 %v785, %v810
        %v813 = vmul.f32 %v788, %v810
        %v814 = vmul.f32 %v791, %v810
        %v815 = vmul.f32 %v794, %v810
        %v816 = vmul.f32 %v797, %v810
        %v817 = vmul.f32 %v800, %v810
        %v818 = vmul.f32 %v803, %v810
        %v819 = vmul.f32 %v806, %v810
        %v820 = vld [vmem:[%s3] sm:$0x1]
        %v822 = vperm.slane %v820, 0
        %v824 = vadd.f32 %v812, %v822
        %v825 = vadd.f32 %v813, %v822
        %v826 = vadd.f32 %v814, %v822
        %v827 = vadd.f32 %v815, %v822
        %v828 = vadd.f32 %v816, %v822
        %v829 = vadd.f32 %v817, %v822
        %v830 = vadd.f32 %v818, %v822
        %v831 = vadd.f32 %v819, %v822
        %v832 = vld [vmem:[%s4] sm:$0xff]
        %v833 = vld [vmem:[%s4 + $0x8] sm:$0xff]
        %vm834 = vcmask 523264
        %v836 = vsel %vm834, %v832, 0
        %v839 = vsel %vm834, %v833, 0
        %841 = vmatpush.msra.mxu0 0.0
        %842 = vmatpush.msra.mxu0 0.0
        %843 = vmatpush.msra.mxu0 0.0
        %844 = vmatpush.msra.mxu0 0.0
        %845 = vmatpush.msra.mxu0 0.0
        %846 = vmatpush.msra.mxu0 0.0
        %847 = vmatpush.msra.mxu0 0.0
        %848 = vmatpush.msra.mxu0 0.0
        %849 = vmatpush.msra.mxu0 %v831
        %850 = vmatpush.msra.mxu0 %v830
        %851 = vmatpush.msra.mxu0 %v829
        %852 = vmatpush.msra.mxu0 %v828
        %853 = vmatpush.msra.mxu0 %v827
        %854 = vmatpush.msra.mxu0 %v826
        %855 = vmatpush.msra.mxu0 %v825
        %856 = vmatpush.msra.mxu0 %v824
        %857 = vmatmul.f32.gmra.mxu0 %v836
        %v858 = vpop.f32.mrf.mxu0
        %v859 = vadd.f32 0.0, %v858
        %860 = vmatmul.f32.gmra.mxu0 %v839
        %v861 = vpop.f32.mrf.mxu0
        %v862 = vadd.f32 0.0, %v861
        %863 = vdwg.mxu0
        %864 = vst [vmem:[%s217] sm:$0xff] %v859
        %865 = vst [vmem:[%s217 + $0x8] sm:$0xff] %v862
        %s866 = sand.u32 %s137, 1
        %s867 = scalar_lea.sflag [#allocation3], %s866
        %s868 = sand.u32 %s137, 1
        %s869 = smul.addr %s868, 16
        %s870 = scalar_lea.vmem [#allocation2], %s869
        // Predicated region
        $region41: #{_lambda_.11} parent=39 // pred_check
          %p871 = pneg %p147
        $region42: #{_lambda_.11} parent=39 // pred_check_branch
          %873 = sbr.rel (%p871) target = $region44
        $region43: #{_lambda_.11} parent=39 // pred_region
          %875 = vsyncadd %s867, 0
          %s876 = smul.addr %s19, 2
          %s877 = smul.addr %s876, 8
          %s878 = scalar_lea.hbm %s5, %s877
          %s879 = sshll.u32 %s870, 4
          %s880 = int_to_ptr.vmem [resolvable:$true] %s879
          %s881 = sshll.u32 %s878, 4
          %s882 = int_to_ptr.hbm [resolvable:$true] %s881
          %887 = dma.vmem_to_hbm [thread:$0]  %s880, 256, %s882, %s867, 128, 128, 8
        $region44: #{_lambda_.11} parent=39 // pred_fallthru
          _
      $region40: #{_lambda_.11} parent=5 // pred_fallthru
        _
      %p888 = scmp.le.s32.totalorder 2, %s14
      // Predicated region
      $region45: #{_lambda_.11} parent=5 // pred_check
        %p889 = pneg %p888
      $region46: #{_lambda_.11} parent=5 // pred_check_branch
        %891 = sbr.rel (%p889) target = $region48
      $region47: #{_lambda_.11} parent=5 // pred_region
        %s892 = ssub.s32 %s14, 2
        // Predicated region
        $region49: #{_lambda_.11} parent=47 // pred_check
          %p893 = pneg %p153
        $region50: #{_lambda_.11} parent=47 // pred_check_branch
          %895 = sbr.rel (%p893) target = $region52
        $region51: #{_lambda_.11} parent=47 // pred_region
          %s896 = sand.u32 %s138, 1
          %s897 = scalar_lea.sflag [#allocation3], %s896
          %s898 = sand.u32 %s138, 1
          %s899 = smul.addr %s898, 16
          %s900 = scalar_lea.vmem [#allocation2], %s899
          %902 = dma.done %s897, 256
        $region52: #{_lambda_.11} parent=47 // pred_fallthru
          _
      $region48: #{_lambda_.11} parent=5 // pred_fallthru
        _
    $region6: #{_lambda_.11} parent=1 // loop_footer
      %s18 = sadd.s32 1, %s14
    $region7: #{_lambda_.11} parent=1 // loop_footer_branch
      %13 = sbr.rel target = $region3
    $region8: #{_lambda_.11} parent=1 // loop_exit
      _
    %903 = vsyncpa [#allocation3], 1
    %s904 = scalar_lea.sflag [#allocation3], 1
    %905 = vsyncpa %s904, 1

</llo_original>
